<compile_context>
chip_gen: v7x
topology: tpu7x:2x2x1
jax: 0.10.0
libtpu: 0.0.40
codegen_flags: <defaults>
</compile_context>

<pallas_src>
import functools
import math

import jax
import jax.numpy as jnp
from jax.experimental import pallas as pl
from jax.experimental.pallas import tpu as pltpu

# ----------------------------- config (small) -----------------------------
BATCH = 2
SEQ = 8
D_MODEL = 32          # bart.config.d_model (scaled down)
N_HEADS = 4
D_HEAD = D_MODEL // N_HEADS
D_FF = 64
N_LAYERS = 2
VOCAB = 64
MAX_POS = 32
SEM_DIM = 384         # fixed by the module
NUM_LABELS = 10       # CIFAR-10
AUX_LOSS_WEIGHT = 0.5

F32 = jnp.float32
VMEM_SPEC = pl.BlockSpec(memory_space=pltpu.MemorySpace.VMEM)


def _r8(n):
  return ((n + 7) // 8) * 8


# --------------------- weight-slab row layouts (static) ---------------------
# Per-layer slab: (N_LAYERS, L_ROWS, 128) f32, all offsets sublane-aligned.
R_WQKV = 0                              # (D, 3D)  packed q|k|v, q pre-scaled
R_WO = R_WQKV + _r8(D_MODEL)            # (D, D)
R_W1 = R_WO + _r8(D_MODEL)              # (D, D_FF)
R_W2 = R_W1 + _r8(D_MODEL)              # (D_FF, D)
R_VEC = R_W2 + _r8(D_FF)                # 8 rows of biases / LN params
L_ROWS = R_VEC + 8                      # 168

# Global slab: (G_ROWS, 128) f32.
G_WP = 0                                # (SEM_DIM, D)  sem_proj weight
G_WCLS = G_WP + _r8(SEM_DIM)            # (2D, 2C)      [fusion | aux] weight
G_TOK = G_WCLS + _r8(2 * D_MODEL)       # (VOCAB, D)    token embedding table
G_POS = G_TOK + _r8(VOCAB)              # (SEQ, D)      pos embedding rows 2..
G_SELH = G_POS + _r8(SEQ)               # (D, H)        per-head lane-sum sel
G_SELT = G_SELH + _r8(D_MODEL)          # (H, D)        head->lane replicator
G_VEC = G_SELT + _r8(N_HEADS)           # 8 rows of biases / LN params
G_ROWS = G_VEC + 8                      # 568


# --------------------------- the fused Pallas kernel -----------------------
def _fused_forward_kernel(ids_ref, mask_ref, labels_ref, sem_ref,
                          wl_ref, wg_ref, out_ref, *,
                          batch, seq, d_model, n_heads, d_head, d_ff,
                          n_layers, vocab, num_labels, aux_loss_weight):
  """Whole forward pass; all weights resident in two VMEM slabs."""
  B, S, D, H = batch, seq, d_model, n_heads
  BS = B * S
  C = num_labels

  def layernorm(x, g, b):
    mu = jnp.mean(x, axis=-1, keepdims=True)
    var = jnp.mean(jnp.square(x - mu), axis=-1, keepdims=True)
    return (x - mu) * jax.lax.rsqrt(var + 1e-5) * g + b

  gvec = wg_ref[G_VEC:G_VEC + 8, :]                      # (8, 128) misc rows

  # ---- embeddings: in-kernel one-hot gather + pre-sliced positions ----
  ids = ids_ref[...]                                     # (BS, 1) int32
  tok_oh = (jax.lax.broadcasted_iota(jnp.int32, (BS, vocab), 1)
            == ids).astype(F32)                          # (BS, V)
  tok_tab = wg_ref[G_TOK:G_TOK + vocab, 0:D]             # (V, D)
  pos_tab = wg_ref[G_POS:G_POS + S, 0:D]                 # (S, D)
  h0 = jnp.dot(tok_oh, tok_tab, preferred_element_type=F32)
  h0 = h0 + jnp.broadcast_to(pos_tab[None], (B, S, D)).reshape(BS, D)
  # BART layernorm_embedding (post tok+pos add, embed_scale == 1 for base).
  x = layernorm(h0, gvec[0:1, 0:D], gvec[1:2, 0:D])      # (BS, D)

  # ---- attention bias: built once, broadcast hoisted out of the loop ----
  maskf = mask_ref[...].astype(F32)                      # (BS, 1)
  bias = jnp.broadcast_to(
      ((1.0 - maskf) * jnp.float32(-1e9)).reshape(B, 1, S, 1),
      (B, S, S, H))                                      # (B, Sq, Sk, H)
  sel = wg_ref[G_SELH:G_SELH + D, 0:H]                   # (D, H)
  sel_t = wg_ref[G_SELT:G_SELT + H, 0:D]                 # (H, D)

  for l in range(n_layers):                              # static unroll
    lvec = wl_ref[l, R_VEC:R_VEC + 8, :]                 # (8, 128) bias rows

    # -- self-attention, all heads at once (heads stay in the lane dim) --
    wqkv = wl_ref[l, R_WQKV:R_WQKV + D, 0:3 * D]         # (D, 3D)
    qkv = jnp.dot(x, wqkv, preferred_element_type=F32) + lvec[0:1, 0:3 * D]
    q3 = qkv[:, 0:D].reshape(B, S, D)
    k3 = qkv[:, D:2 * D].reshape(B, S, D)
    v3 = qkv[:, 2 * D:3 * D].reshape(B, S, D)
    # per-lane products over (query, key) pairs, then per-head lane-sum
    e = q3[:, :, None, :] * k3[:, None, :, :]            # (B, Sq, Sk, D)
    s = jnp.dot(e.reshape(BS * S, D), sel,
                preferred_element_type=F32).reshape(B, S, S, H) + bias
    m = jnp.max(s, axis=2, keepdims=True)                # softmax over keys
    p = jnp.exp(s - m)
    p = p * pl.reciprocal(jnp.sum(p, axis=2, keepdims=True), approx=True)
    # broadcast each head prob across its d_head lanes, weight V, sum keys
    p_l = jnp.dot(p.reshape(BS * S, H), sel_t,
                  preferred_element_type=F32).reshape(B, S, S, D)
    o = jnp.sum(p_l * v3[:, None, :, :], axis=2).reshape(BS, D)
    wo = wl_ref[l, R_WO:R_WO + D, 0:D]
    attn = jnp.dot(o, wo, preferred_element_type=F32) + lvec[1:2, 0:D]
    x = layernorm(x + attn, lvec[2:3, 0:D], lvec[3:4, 0:D])   # post-LN (BART)

    # -- feed-forward --
    w1 = wl_ref[l, R_W1:R_W1 + D, 0:d_ff]
    w2 = wl_ref[l, R_W2:R_W2 + d_ff, 0:D]
    ff = jnp.dot(x, w1, preferred_element_type=F32) + lvec[4:5, 0:d_ff]
    # TODO(synk): HF BART uses exact erf GELU; tanh approximation here.
    ff = jax.nn.gelu(ff, approximate=True)
    ff = jnp.dot(ff, w2, preferred_element_type=F32) + lvec[5:6, 0:D]
    x = layernorm(x + ff, lvec[6:7, 0:D], lvec[7:8, 0:D])

  # ---- beit_repr = last_hidden_state[:, 0, :] : direct first-token extract --
  beit_repr = x.reshape(B, S, D)[:, 0:1, :].reshape(B, D)      # (B, D)

  # ---- classification heads (fusion + aux fused into one matmul) ----
  wp = wg_ref[G_WP:G_WP + SEM_DIM, 0:D]                        # (384, D)
  sem_proj = (jnp.dot(sem_ref[...], wp, preferred_element_type=F32)
              + gvec[2:3, 0:D])                                # (B, D)
  fused = jnp.concatenate([beit_repr, sem_proj], axis=1)       # (B, 2D)
  wcls = wg_ref[G_WCLS:G_WCLS + 2 * D, 0:2 * C]                # (2D, 2C)
  logits_both = (jnp.dot(fused, wcls, preferred_element_type=F32)
                 + gvec[3:4, 0:2 * C])                         # (B, 2C)
  fusion_logits = logits_both[:, 0:C]
  aux_logits = logits_both[:, C:2 * C]

  # ---- cross-entropy losses (label one-hot built in-kernel) ----
  labels = labels_ref[...]                                     # (B, 1) int32
  onehot = (jax.lax.broadcasted_iota(jnp.int32, (B, C), 1)
            == labels).astype(F32)

  def ce(lg):                                                  # (B, 1)
    mm = jnp.max(lg, axis=-1, keepdims=True)
    lse = mm + jnp.log(jnp.sum(jnp.exp(lg - mm), axis=-1, keepdims=True))
    return lse - jnp.sum(onehot * lg, axis=-1, keepdims=True)

  loss = (jnp.sum(ce(fusion_logits), axis=0, keepdims=True)
          + aux_loss_weight * jnp.sum(ce(aux_logits), axis=0, keepdims=True)
          ) * (1.0 / B)                                        # (1, 1)

  # ---- single lane-dense output slab: one output DMA ----
  out_ref[...] = jnp.zeros_like(out_ref)
  out_ref[0:B, 0:2 * C] = logits_both
  out_ref[B:B + 1, 0:1] = loss


# ----------------------------- jitted wrapper -------------------------------
@jax.jit
def _forward_jit(wl, wg, beit_input_ids, beit_attention_mask, labels, sem_emb):
  b, s = beit_input_ids.shape
  c = NUM_LABELS
  ids_col = beit_input_ids.astype(jnp.int32).reshape(b * s, 1)
  mask_col = beit_attention_mask.astype(jnp.int32).reshape(b * s, 1)
  labels_col = labels.astype(jnp.int32).reshape(b, 1)
  kernel = functools.partial(
      _fused_forward_kernel,
      batch=b, seq=s, d_model=D_MODEL, n_heads=N_HEADS, d_head=D_HEAD,
      d_ff=D_FF, n_layers=N_LAYERS, vocab=VOCAB, num_labels=c,
      aux_loss_weight=float(AUX_LOSS_WEIGHT))
  out = pl.pallas_call(
      kernel,
      out_shape=jax.ShapeDtypeStruct((8, 128), F32),
      in_specs=[VMEM_SPEC] * 6,
      out_specs=VMEM_SPEC,
  )(ids_col, mask_col, labels_col, sem_emb.astype(F32), wl, wg)
  logits_both = out[0:b, 0:2 * c]
  return logits_both[:, 0:c], logits_both[:, c:2 * c], out[b, 0]


def forward(prep, beit_input_ids, beit_attention_mask, sem_emb, labels=None):
  b = beit_input_ids.shape[0]
  lab = labels if labels is not None else jnp.zeros((b,), jnp.int32)
  fusion_logits, aux_logits, loss = _forward_jit(
      prep["wl"], prep["wg"], beit_input_ids, beit_attention_mask, lab, sem_emb)
  return {"loss": loss if labels is not None else None,
          "fusion_logits": fusion_logits, "aux_logits": aux_logits}


# --------------------- one-time parameter packing (hoisted) ----------------
def prepare_params(params):
  """Pack every weight/bias into two VMEM slabs, once, outside the hot path."""
  d, dff, c, h, dh = D_MODEL, D_FF, NUM_LABELS, N_HEADS, D_HEAD
  scale = 1.0 / math.sqrt(dh)

  def layer_block(lp):
    blk = jnp.zeros((L_ROWS, 128), F32)
    wqkv = jnp.concatenate([lp["wq"].T * scale, lp["wk"].T, lp["wv"].T], axis=1)
    blk = blk.at[R_WQKV:R_WQKV + d, 0:3 * d].set(wqkv)
    blk = blk.at[R_WO:R_WO + d, 0:d].set(lp["wo"].T)
    blk = blk.at[R_W1:R_W1 + d, 0:dff].set(lp["w1"].T)
    blk = blk.at[R_W2:R_W2 + dff, 0:d].set(lp["w2"].T)
    bqkv = jnp.concatenate([lp["bq"] * scale, lp["bk"], lp["bv"]])
    blk = blk.at[R_VEC + 0, 0:3 * d].set(bqkv)
    blk = blk.at[R_VEC + 1, 0:d].set(lp["bo"])
    blk = blk.at[R_VEC + 2, 0:d].set(lp["ln1_g"])
    blk = blk.at[R_VEC + 3, 0:d].set(lp["ln1_b"])
    blk = blk.at[R_VEC + 4, 0:dff].set(lp["b1"])
    blk = blk.at[R_VEC + 5, 0:d].set(lp["b2"])
    blk = blk.at[R_VEC + 6, 0:d].set(lp["ln2_g"])
    blk = blk.at[R_VEC + 7, 0:d].set(lp["ln2_b"])
    return blk

  wl = jnp.stack([layer_block(lp) for lp in params["layers"]])

  wg = jnp.zeros((G_ROWS, 128), F32)
  wg = wg.at[G_WP:G_WP + SEM_DIM, 0:d].set(params["sem_proj_w"].T)
  # Fused classifier: [fusion_logits | aux_logits] = [beit | sem_proj] @ wcls.
  wcls = jnp.zeros((2 * d, 2 * c), F32)
  wcls = wcls.at[:, 0:c].set(params["fusion_w"].T)          # (2D, C)
  wcls = wcls.at[d:2 * d, c:2 * c].set(params["aux_w"].T)   # sem half only
  wg = wg.at[G_WCLS:G_WCLS + 2 * d, 0:2 * c].set(wcls)
  wg = wg.at[G_TOK:G_TOK + VOCAB, 0:d].set(params["tok_emb"])
  wg = wg.at[G_POS:G_POS + SEQ, 0:d].set(params["pos_emb"][2:2 + SEQ])  # offset 2
  lane = jnp.arange(d)
  sel = (lane[:, None] // dh == jnp.arange(h)[None, :]).astype(F32)     # (D, H)
  wg = wg.at[G_SELH:G_SELH + d, 0:h].set(sel)
  wg = wg.at[G_SELT:G_SELT + h, 0:d].set(sel.T)
  wg = wg.at[G_VEC + 0, 0:d].set(params["ln_emb_g"])
  wg = wg.at[G_VEC + 1, 0:d].set(params["ln_emb_b"])
  wg = wg.at[G_VEC + 2, 0:d].set(params["sem_proj_b"])
  wg = wg.at[G_VEC + 3, 0:2 * c].set(
      jnp.concatenate([params["fusion_b"], params["aux_b"]]))
  return {"wl": wl, "wg": wg}


# ----------------------------- parameter init -------------------------------
def init_params(key):
  def nrm(k, shape):
    return jax.random.normal(k, shape, F32) * 0.02

  ks = iter(jax.random.split(key, 128))
  params = {
      "tok_emb": nrm(next(ks), (VOCAB, D_MODEL)),
      "pos_emb": nrm(next(ks), (MAX_POS, D_MODEL)),
      "ln_emb_g": jnp.ones((D_MODEL,), F32),
      "ln_emb_b": jnp.zeros((D_MODEL,), F32),
      "layers": [],
      "sem_proj_w": nrm(next(ks), (D_MODEL, SEM_DIM)),
      "sem_proj_b": jnp.zeros((D_MODEL,), F32),
      "fusion_w": nrm(next(ks), (NUM_LABELS, 2 * D_MODEL)),
      "fusion_b": jnp.zeros((NUM_LABELS,), F32),
      "aux_w": nrm(next(ks), (NUM_LABELS, D_MODEL)),
      "aux_b": jnp.zeros((NUM_LABELS,), F32),
  }
  for _ in range(N_LAYERS):
    lp = {
        "wq": nrm(next(ks), (D_MODEL, D_MODEL)), "bq": jnp.zeros((D_MODEL,)),
        "wk": nrm(next(ks), (D_MODEL, D_MODEL)), "bk": jnp.zeros((D_MODEL,)),
        "wv": nrm(next(ks), (D_MODEL, D_MODEL)), "bv": jnp.zeros((D_MODEL,)),
        "wo": nrm(next(ks), (D_MODEL, D_MODEL)), "bo": jnp.zeros((D_MODEL,)),
        "ln1_g": jnp.ones((D_MODEL,)), "ln1_b": jnp.zeros((D_MODEL,)),
        "w1": nrm(next(ks), (D_FF, D_MODEL)), "b1": jnp.zeros((D_FF,)),
        "w2": nrm(next(ks), (D_MODEL, D_FF)), "b2": jnp.zeros((D_MODEL,)),
        "ln2_g": jnp.ones((D_MODEL,)), "ln2_b": jnp.zeros((D_MODEL,)),
    }
    params["layers"].append(lp)
  return params


# ----------------------------------- main -----------------------------------
if __name__ == "__main__":
  key = jax.random.PRNGKey(0)
  kp, kid, ksem, klab = jax.random.split(key, 4)

  params = init_params(kp)
  prep = prepare_params(params)   # one-time slab packing, outside hot path

  beit_input_ids = jax.random.randint(kid, (BATCH, SEQ), 0, VOCAB,
                                      dtype=jnp.int32)
  beit_attention_mask = jnp.ones((BATCH, SEQ), jnp.int32).at[1, SEQ - 3:].set(0)
  # Precomputed sentence-transformer embedding of blip_raw (frozen, no_grad).
  sem_emb = jax.random.normal(ksem, (BATCH, SEM_DIM), F32)
  labels = jax.random.randint(klab, (BATCH,), 0, NUM_LABELS, dtype=jnp.int32)

  out = forward(prep, beit_input_ids, beit_attention_mask, sem_emb, labels)
  jax.block_until_ready((out["loss"], out["fusion_logits"], out["aux_logits"]))

  assert out["fusion_logits"].shape == (BATCH, NUM_LABELS)
  assert out["aux_logits"].shape == (BATCH, NUM_LABELS)
  assert out["loss"].shape == ()
  assert bool(jnp.isfinite(out["loss"]))
  assert bool(jnp.all(jnp.isfinite(out["fusion_logits"])))
  assert bool(jnp.all(jnp.isfinite(out["aux_logits"])))
  print("KERNEL_OK")
</pallas_src>

<mosaic_0001>
module attributes {stable_mosaic.version = 11 : i64} {
  func.func @_fused_forward_kernel(%arg0: memref<16x1xi32, #tpu.memory_space<vmem>>, %arg1: memref<16x1xi32, #tpu.memory_space<vmem>>, %arg2: memref<2x1xi32, #tpu.memory_space<vmem>>, %arg3: memref<2x384xf32, #tpu.memory_space<vmem>>, %arg4: memref<2x168x128xf32, #tpu.memory_space<vmem>>, %arg5: memref<568x128xf32, #tpu.memory_space<vmem>>, %arg6: memref<8x128xf32, #tpu.memory_space<vmem>>) attributes {dimension_semantics = [], scalar_prefetch = 0 : i64, scratch_operands = 0 : i64, tpu.core_type = #tpu.core_type<tc>} {
    %c560 = arith.constant 560 : index
    %c0 = arith.constant 0 : index
    %0 = vector.load %arg5[%c560, %c0] : memref<568x128xf32, #tpu.memory_space<vmem>>, vector<8x128xf32>
    %c0_0 = arith.constant 0 : index
    %c0_1 = arith.constant 0 : index
    %1 = vector.load %arg0[%c0_0, %c0_1] : memref<16x1xi32, #tpu.memory_space<vmem>>, vector<16x1xi32>
    %2 = tpu.iota {dimensions = array<i32: 1>} : vector<16x64xi32>
    %3 = vector.broadcast %1 : vector<16x1xi32> to vector<16x64xi32>
    %4 = arith.cmpi eq, %2, %3 : vector<16x64xi32>
    %5 = arith.extui %4 : vector<16x64xi1> to vector<16x64xi32>
    %6 = arith.sitofp %5 : vector<16x64xi32> to vector<16x64xf32>
    %c448 = arith.constant 448 : index
    %c0_2 = arith.constant 0 : index
    %7 = vector.load %arg5[%c448, %c0_2] : memref<568x128xf32, #tpu.memory_space<vmem>>, vector<64x32xf32>
    %c512 = arith.constant 512 : index
    %c0_3 = arith.constant 0 : index
    %8 = vector.load %arg5[%c512, %c0_3] : memref<568x128xf32, #tpu.memory_space<vmem>>, vector<8x32xf32>
    %cst = arith.constant dense<0.000000e+00> : vector<16x32xf32>
    %9 = tpu.matmul %6, %7, %cst {dimension_numbers = #tpu.dot_dimension_numbers<[1], [0], [0], [1], [0, 0, 1, 1], [], []>} : vector<16x64xf32>, vector<64x32xf32>, vector<16x32xf32> -> vector<16x32xf32>
    %10 = vector.shape_cast %8 : vector<8x32xf32> to vector<1x8x32xf32>
    %11 = vector.shape_cast %10 : vector<1x8x32xf32> to vector<1x8x32xf32>
    %12 = vector.broadcast %11 : vector<1x8x32xf32> to vector<2x8x32xf32>
    %13 = vector.shape_cast %12 : vector<2x8x32xf32> to vector<16x32xf32>
    %14 = arith.addf %9, %13 : vector<16x32xf32>
    %15 = vector.extract_strided_slice %0 {offsets = [0, 0], sizes = [1, 32], strides = [1, 1]} : vector<8x128xf32> to vector<1x32xf32>
    %16 = vector.extract_strided_slice %0 {offsets = [1, 0], sizes = [1, 32], strides = [1, 1]} : vector<8x128xf32> to vector<1x32xf32>
    %cst_4 = arith.constant dense<0.000000e+00> : vector<16xf32>
    %17 = vector.multi_reduction <add>, %14, %cst_4 [1] : vector<16x32xf32> to vector<16xf32>
    %18 = vector.shape_cast %17 : vector<16xf32> to vector<16x1xf32>
    %cst_5 = arith.constant 3.200000e+01 : f32
    %19 = vector.broadcast %cst_5 : f32 to vector<16x1xf32>
    %20 = arith.divf %18, %19 : vector<16x1xf32>
    %21 = vector.broadcast %20 : vector<16x1xf32> to vector<16x32xf32>
    %22 = arith.subf %14, %21 : vector<16x32xf32>
    %23 = arith.mulf %22, %22 : vector<16x32xf32>
    %cst_6 = arith.constant dense<0.000000e+00> : vector<16xf32>
    %24 = vector.multi_reduction <add>, %23, %cst_6 [1] : vector<16x32xf32> to vector<16xf32>
    %25 = vector.shape_cast %24 : vector<16xf32> to vector<16x1xf32>
    %cst_7 = arith.constant 3.200000e+01 : f32
    %26 = vector.broadcast %cst_7 : f32 to vector<16x1xf32>
    %27 = arith.divf %25, %26 : vector<16x1xf32>
    %28 = vector.broadcast %20 : vector<16x1xf32> to vector<16x32xf32>
    %29 = arith.subf %14, %28 : vector<16x32xf32>
    %cst_8 = arith.constant 9.99999974E-6 : f32
    %30 = vector.broadcast %cst_8 : f32 to vector<16x1xf32>
    %31 = arith.addf %27, %30 : vector<16x1xf32>
    %32 = math.rsqrt %31 : vector<16x1xf32>
    %33 = vector.broadcast %32 : vector<16x1xf32> to vector<16x32xf32>
    %34 = arith.mulf %29, %33 : vector<16x32xf32>
    %35 = vector.broadcast %15 : vector<1x32xf32> to vector<16x32xf32>
    %36 = arith.mulf %34, %35 : vector<16x32xf32>
    %37 = vector.broadcast %16 : vector<1x32xf32> to vector<16x32xf32>
    %38 = arith.addf %36, %37 : vector<16x32xf32>
    %c0_9 = arith.constant 0 : index
    %c0_10 = arith.constant 0 : index
    %39 = vector.load %arg1[%c0_9, %c0_10] : memref<16x1xi32, #tpu.memory_space<vmem>>, vector<16x1xi32>
    %40 = arith.sitofp %39 : vector<16x1xi32> to vector<16x1xf32>
    %cst_11 = arith.constant 1.000000e+00 : f32
    %41 = vector.broadcast %cst_11 : f32 to vector<16x1xf32>
    %42 = arith.subf %41, %40 : vector<16x1xf32>
    %cst_12 = arith.constant -1.000000e+09 : f32
    %43 = vector.broadcast %cst_12 : f32 to vector<16x1xf32>
    %44 = arith.mulf %42, %43 : vector<16x1xf32>
    %45 = vector.shape_cast %44 : vector<16x1xf32> to vector<2x1x8x1xf32>
    %46 = vector.shape_cast %45 : vector<2x1x8x1xf32> to vector<2x1x8x1xf32>
    %47 = vector.broadcast %46 : vector<2x1x8x1xf32> to vector<2x8x8x4xf32>
    %c520 = arith.constant 520 : index
    %c0_13 = arith.constant 0 : index
    %48 = vector.load %arg5[%c520, %c0_13] : memref<568x128xf32, #tpu.memory_space<vmem>>, vector<32x4xf32>
    %c552 = arith.constant 552 : index
    %c0_14 = arith.constant 0 : index
    %49 = vector.load %arg5[%c552, %c0_14] : memref<568x128xf32, #tpu.memory_space<vmem>>, vector<4x32xf32>
    %c0_15 = arith.constant 0 : index
    %c160 = arith.constant 160 : index
    %c0_16 = arith.constant 0 : index
    %50 = vector.load %arg4[%c0_15, %c160, %c0_16] : memref<2x168x128xf32, #tpu.memory_space<vmem>>, vector<1x8x128xf32>
    %51 = vector.shape_cast %50 : vector<1x8x128xf32> to vector<8x128xf32>
    %c0_17 = arith.constant 0 : index
    %c0_18 = arith.constant 0 : index
    %c0_19 = arith.constant 0 : index
    %52 = vector.load %arg4[%c0_17, %c0_18, %c0_19] : memref<2x168x128xf32, #tpu.memory_space<vmem>>, vector<1x32x96xf32>
    %53 = vector.shape_cast %52 : vector<1x32x96xf32> to vector<32x96xf32>
    %cst_20 = arith.constant dense<0.000000e+00> : vector<16x96xf32>
    %54 = tpu.matmul %38, %53, %cst_20 {dimension_numbers = #tpu.dot_dimension_numbers<[1], [0], [0], [1], [0, 0, 1, 1], [], []>} : vector<16x32xf32>, vector<32x96xf32>, vector<16x96xf32> -> vector<16x96xf32>
    %55 = vector.extract_strided_slice %51 {offsets = [0, 0], sizes = [1, 96], strides = [1, 1]} : vector<8x128xf32> to vector<1x96xf32>
    %56 = vector.broadcast %55 : vector<1x96xf32> to vector<16x96xf32>
    %57 = arith.addf %54, %56 : vector<16x96xf32>
    %58 = vector.extract_strided_slice %57 {offsets = [0, 0], sizes = [16, 32], strides = [1, 1]} : vector<16x96xf32> to vector<16x32xf32>
    %59 = vector.shape_cast %58 : vector<16x32xf32> to vector<2x8x32xf32>
    %60 = vector.extract_strided_slice %57 {offsets = [0, 32], sizes = [16, 32], strides = [1, 1]} : vector<16x96xf32> to vector<16x32xf32>
    %61 = vector.shape_cast %60 : vector<16x32xf32> to vector<2x8x32xf32>
    %62 = vector.extract_strided_slice %57 {offsets = [0, 64], sizes = [16, 32], strides = [1, 1]} : vector<16x96xf32> to vector<16x32xf32>
    %63 = vector.shape_cast %62 : vector<16x32xf32> to vector<2x8x32xf32>
    %64 = vector.shape_cast %59 : vector<2x8x32xf32> to vector<2x8x1x32xf32>
    %65 = vector.shape_cast %61 : vector<2x8x32xf32> to vector<2x1x8x32xf32>
    %66 = vector.broadcast %64 : vector<2x8x1x32xf32> to vector<2x8x8x32xf32>
    %67 = vector.broadcast %65 : vector<2x1x8x32xf32> to vector<2x8x8x32xf32>
    %68 = arith.mulf %66, %67 : vector<2x8x8x32xf32>
    %69 = vector.shape_cast %68 : vector<2x8x8x32xf32> to vector<128x32xf32>
    %cst_21 = arith.constant dense<0.000000e+00> : vector<128x4xf32>
    %70 = tpu.matmul %69, %48, %cst_21 {dimension_numbers = #tpu.dot_dimension_numbers<[1], [0], [0], [1], [0, 0, 1, 1], [], []>} : vector<128x32xf32>, vector<32x4xf32>, vector<128x4xf32> -> vector<128x4xf32>
    %71 = vector.shape_cast %70 : vector<128x4xf32> to vector<2x8x8x4xf32>
    %72 = arith.addf %71, %47 : vector<2x8x8x4xf32>
    %cst_22 = arith.constant dense<0xFF800000> : vector<2x8x4xf32>
    %73 = vector.multi_reduction <maximumf>, %72, %cst_22 [2] : vector<2x8x8x4xf32> to vector<2x8x4xf32>
    %74 = vector.shape_cast %73 : vector<2x8x4xf32> to vector<2x8x1x4xf32>
    %75 = vector.broadcast %74 : vector<2x8x1x4xf32> to vector<2x8x8x4xf32>
    %76 = arith.subf %72, %75 : vector<2x8x8x4xf32>
    %77 = math.exp %76 : vector<2x8x8x4xf32>
    %cst_23 = arith.constant dense<0.000000e+00> : vector<2x8x4xf32>
    %78 = vector.multi_reduction <add>, %77, %cst_23 [2] : vector<2x8x8x4xf32> to vector<2x8x4xf32>
    %79 = vector.shape_cast %78 : vector<2x8x4xf32> to vector<2x8x1x4xf32>
    %80 = tpu.reciprocal %79 {approx = true} : vector<2x8x1x4xf32> -> vector<2x8x1x4xf32>
    %81 = vector.broadcast %80 : vector<2x8x1x4xf32> to vector<2x8x8x4xf32>
    %82 = arith.mulf %77, %81 : vector<2x8x8x4xf32>
    %83 = vector.shape_cast %82 : vector<2x8x8x4xf32> to vector<128x4xf32>
    %cst_24 = arith.constant dense<0.000000e+00> : vector<128x32xf32>
    %84 = tpu.matmul %83, %49, %cst_24 {dimension_numbers = #tpu.dot_dimension_numbers<[1], [0], [0], [1], [0, 0, 1, 1], [], []>} : vector<128x4xf32>, vector<4x32xf32>, vector<128x32xf32> -> vector<128x32xf32>
    %85 = vector.shape_cast %84 : vector<128x32xf32> to vector<2x8x8x32xf32>
    %86 = vector.shape_cast %63 : vector<2x8x32xf32> to vector<2x1x8x32xf32>
    %87 = vector.broadcast %86 : vector<2x1x8x32xf32> to vector<2x8x8x32xf32>
    %88 = arith.mulf %85, %87 : vector<2x8x8x32xf32>
    %cst_25 = arith.constant dense<0.000000e+00> : vector<2x8x32xf32>
    %89 = vector.multi_reduction <add>, %88, %cst_25 [2] : vector<2x8x8x32xf32> to vector<2x8x32xf32>
    %90 = vector.shape_cast %89 : vector<2x8x32xf32> to vector<16x32xf32>
    %c0_26 = arith.constant 0 : index
    %c32 = arith.constant 32 : index
    %c0_27 = arith.constant 0 : index
    %91 = vector.load %arg4[%c0_26, %c32, %c0_27] : memref<2x168x128xf32, #tpu.memory_space<vmem>>, vector<1x32x32xf32>
    %92 = vector.shape_cast %91 : vector<1x32x32xf32> to vector<32x32xf32>
    %cst_28 = arith.constant dense<0.000000e+00> : vector<16x32xf32>
    %93 = tpu.matmul %90, %92, %cst_28 {dimension_numbers = #tpu.dot_dimension_numbers<[1], [0], [0], [1], [0, 0, 1, 1], [], []>} : vector<16x32xf32>, vector<32x32xf32>, vector<16x32xf32> -> vector<16x32xf32>
    %94 = vector.extract_strided_slice %51 {offsets = [1, 0], sizes = [1, 32], strides = [1, 1]} : vector<8x128xf32> to vector<1x32xf32>
    %95 = vector.broadcast %94 : vector<1x32xf32> to vector<16x32xf32>
    %96 = arith.addf %93, %95 : vector<16x32xf32>
    %97 = arith.addf %38, %96 : vector<16x32xf32>
    %98 = vector.extract_strided_slice %51 {offsets = [2, 0], sizes = [1, 32], strides = [1, 1]} : vector<8x128xf32> to vector<1x32xf32>
    %99 = vector.extract_strided_slice %51 {offsets = [3, 0], sizes = [1, 32], strides = [1, 1]} : vector<8x128xf32> to vector<1x32xf32>
    %cst_29 = arith.constant dense<0.000000e+00> : vector<16xf32>
    %100 = vector.multi_reduction <add>, %97, %cst_29 [1] : vector<16x32xf32> to vector<16xf32>
    %101 = vector.shape_cast %100 : vector<16xf32> to vector<16x1xf32>
    %cst_30 = arith.constant 3.200000e+01 : f32
    %102 = vector.broadcast %cst_30 : f32 to vector<16x1xf32>
    %103 = arith.divf %101, %102 : vector<16x1xf32>
    %104 = vector.broadcast %103 : vector<16x1xf32> to vector<16x32xf32>
    %105 = arith.subf %97, %104 : vector<16x32xf32>
    %106 = arith.mulf %105, %105 : vector<16x32xf32>
    %cst_31 = arith.constant dense<0.000000e+00> : vector<16xf32>
    %107 = vector.multi_reduction <add>, %106, %cst_31 [1] : vector<16x32xf32> to vector<16xf32>
    %108 = vector.shape_cast %107 : vector<16xf32> to vector<16x1xf32>
    %cst_32 = arith.constant 3.200000e+01 : f32
    %109 = vector.broadcast %cst_32 : f32 to vector<16x1xf32>
    %110 = arith.divf %108, %109 : vector<16x1xf32>
    %111 = vector.broadcast %103 : vector<16x1xf32> to vector<16x32xf32>
    %112 = arith.subf %97, %111 : vector<16x32xf32>
    %cst_33 = arith.constant 9.99999974E-6 : f32
    %113 = vector.broadcast %cst_33 : f32 to vector<16x1xf32>
    %114 = arith.addf %110, %113 : vector<16x1xf32>
    %115 = math.rsqrt %114 : vector<16x1xf32>
    %116 = vector.broadcast %115 : vector<16x1xf32> to vector<16x32xf32>
    %117 = arith.mulf %112, %116 : vector<16x32xf32>
    %118 = vector.broadcast %98 : vector<1x32xf32> to vector<16x32xf32>
    %119 = arith.mulf %117, %118 : vector<16x32xf32>
    %120 = vector.broadcast %99 : vector<1x32xf32> to vector<16x32xf32>
    %121 = arith.addf %119, %120 : vector<16x32xf32>
    %c0_34 = arith.constant 0 : index
    %c64 = arith.constant 64 : index
    %c0_35 = arith.constant 0 : index
    %122 = vector.load %arg4[%c0_34, %c64, %c0_35] : memref<2x168x128xf32, #tpu.memory_space<vmem>>, vector<1x32x64xf32>
    %123 = vector.shape_cast %122 : vector<1x32x64xf32> to vector<32x64xf32>
    %c0_36 = arith.constant 0 : index
    %c96 = arith.constant 96 : index
    %c0_37 = arith.constant 0 : index
    %124 = vector.load %arg4[%c0_36, %c96, %c0_37] : memref<2x168x128xf32, #tpu.memory_space<vmem>>, vector<1x64x32xf32>
    %125 = vector.shape_cast %124 : vector<1x64x32xf32> to vector<64x32xf32>
    %cst_38 = arith.constant dense<0.000000e+00> : vector<16x64xf32>
    %126 = tpu.matmul %121, %123, %cst_38 {dimension_numbers = #tpu.dot_dimension_numbers<[1], [0], [0], [1], [0, 0, 1, 1], [], []>} : vector<16x32xf32>, vector<32x64xf32>, vector<16x64xf32> -> vector<16x64xf32>
    %127 = vector.extract_strided_slice %51 {offsets = [4, 0], sizes = [1, 64], strides = [1, 1]} : vector<8x128xf32> to vector<1x64xf32>
    %128 = vector.broadcast %127 : vector<1x64xf32> to vector<16x64xf32>
    %129 = arith.addf %126, %128 : vector<16x64xf32>
    %130 = arith.mulf %129, %129 : vector<16x64xf32>
    %131 = arith.mulf %129, %130 : vector<16x64xf32>
    %cst_39 = arith.constant 4.471500e-02 : f32
    %132 = vector.broadcast %cst_39 : f32 to vector<16x64xf32>
    %133 = arith.mulf %132, %131 : vector<16x64xf32>
    %134 = arith.addf %129, %133 : vector<16x64xf32>
    %cst_40 = arith.constant 0.797884583 : f32
    %135 = vector.broadcast %cst_40 : f32 to vector<16x64xf32>
    %136 = arith.mulf %135, %134 : vector<16x64xf32>
    %137 = math.tanh %136 : vector<16x64xf32>
    %cst_41 = arith.constant 1.000000e+00 : f32
    %138 = vector.broadcast %cst_41 : f32 to vector<16x64xf32>
    %139 = arith.addf %138, %137 : vector<16x64xf32>
    %cst_42 = arith.constant 5.000000e-01 : f32
    %140 = vector.broadcast %cst_42 : f32 to vector<16x64xf32>
    %141 = arith.mulf %140, %139 : vector<16x64xf32>
    %142 = arith.mulf %129, %141 : vector<16x64xf32>
    %cst_43 = arith.constant dense<0.000000e+00> : vector<16x32xf32>
    %143 = tpu.matmul %142, %125, %cst_43 {dimension_numbers = #tpu.dot_dimension_numbers<[1], [0], [0], [1], [0, 0, 1, 1], [], []>} : vector<16x64xf32>, vector<64x32xf32>, vector<16x32xf32> -> vector<16x32xf32>
    %144 = vector.extract_strided_slice %51 {offsets = [5, 0], sizes = [1, 32], strides = [1, 1]} : vector<8x128xf32> to vector<1x32xf32>
    %145 = vector.broadcast %144 : vector<1x32xf32> to vector<16x32xf32>
    %146 = arith.addf %143, %145 : vector<16x32xf32>
    %147 = arith.addf %121, %146 : vector<16x32xf32>
    %148 = vector.extract_strided_slice %51 {offsets = [6, 0], sizes = [1, 32], strides = [1, 1]} : vector<8x128xf32> to vector<1x32xf32>
    %149 = vector.extract_strided_slice %51 {offsets = [7, 0], sizes = [1, 32], strides = [1, 1]} : vector<8x128xf32> to vector<1x32xf32>
    %cst_44 = arith.constant dense<0.000000e+00> : vector<16xf32>
    %150 = vector.multi_reduction <add>, %147, %cst_44 [1] : vector<16x32xf32> to vector<16xf32>
    %151 = vector.shape_cast %150 : vector<16xf32> to vector<16x1xf32>
    %cst_45 = arith.constant 3.200000e+01 : f32
    %152 = vector.broadcast %cst_45 : f32 to vector<16x1xf32>
    %153 = arith.divf %151, %152 : vector<16x1xf32>
    %154 = vector.broadcast %153 : vector<16x1xf32> to vector<16x32xf32>
    %155 = arith.subf %147, %154 : vector<16x32xf32>
    %156 = arith.mulf %155, %155 : vector<16x32xf32>
    %cst_46 = arith.constant dense<0.000000e+00> : vector<16xf32>
    %157 = vector.multi_reduction <add>, %156, %cst_46 [1] : vector<16x32xf32> to vector<16xf32>
    %158 = vector.shape_cast %157 : vector<16xf32> to vector<16x1xf32>
    %cst_47 = arith.constant 3.200000e+01 : f32
    %159 = vector.broadcast %cst_47 : f32 to vector<16x1xf32>
    %160 = arith.divf %158, %159 : vector<16x1xf32>
    %161 = vector.broadcast %153 : vector<16x1xf32> to vector<16x32xf32>
    %162 = arith.subf %147, %161 : vector<16x32xf32>
    %cst_48 = arith.constant 9.99999974E-6 : f32
    %163 = vector.broadcast %cst_48 : f32 to vector<16x1xf32>
    %164 = arith.addf %160, %163 : vector<16x1xf32>
    %165 = math.rsqrt %164 : vector<16x1xf32>
    %166 = vector.broadcast %165 : vector<16x1xf32> to vector<16x32xf32>
    %167 = arith.mulf %162, %166 : vector<16x32xf32>
    %168 = vector.broadcast %148 : vector<1x32xf32> to vector<16x32xf32>
    %169 = arith.mulf %167, %168 : vector<16x32xf32>
    %170 = vector.broadcast %149 : vector<1x32xf32> to vector<16x32xf32>
    %171 = arith.addf %169, %170 : vector<16x32xf32>
    %c1 = arith.constant 1 : index
    %c160_49 = arith.constant 160 : index
    %c0_50 = arith.constant 0 : index
    %172 = vector.load %arg4[%c1, %c160_49, %c0_50] : memref<2x168x128xf32, #tpu.memory_space<vmem>>, vector<1x8x128xf32>
    %173 = vector.shape_cast %172 : vector<1x8x128xf32> to vector<8x128xf32>
    %c1_51 = arith.constant 1 : index
    %c0_52 = arith.constant 0 : index
    %c0_53 = arith.constant 0 : index
    %174 = vector.load %arg4[%c1_51, %c0_52, %c0_53] : memref<2x168x128xf32, #tpu.memory_space<vmem>>, vector<1x32x96xf32>
    %175 = vector.shape_cast %174 : vector<1x32x96xf32> to vector<32x96xf32>
    %cst_54 = arith.constant dense<0.000000e+00> : vector<16x96xf32>
    %176 = tpu.matmul %171, %175, %cst_54 {dimension_numbers = #tpu.dot_dimension_numbers<[1], [0], [0], [1], [0, 0, 1, 1], [], []>} : vector<16x32xf32>, vector<32x96xf32>, vector<16x96xf32> -> vector<16x96xf32>
    %177 = vector.extract_strided_slice %173 {offsets = [0, 0], sizes = [1, 96], strides = [1, 1]} : vector<8x128xf32> to vector<1x96xf32>
    %178 = vector.broadcast %177 : vector<1x96xf32> to vector<16x96xf32>
    %179 = arith.addf %176, %178 : vector<16x96xf32>
    %180 = vector.extract_strided_slice %179 {offsets = [0, 0], sizes = [16, 32], strides = [1, 1]} : vector<16x96xf32> to vector<16x32xf32>
    %181 = vector.shape_cast %180 : vector<16x32xf32> to vector<2x8x32xf32>
    %182 = vector.extract_strided_slice %179 {offsets = [0, 32], sizes = [16, 32], strides = [1, 1]} : vector<16x96xf32> to vector<16x32xf32>
    %183 = vector.shape_cast %182 : vector<16x32xf32> to vector<2x8x32xf32>
    %184 = vector.extract_strided_slice %179 {offsets = [0, 64], sizes = [16, 32], strides = [1, 1]} : vector<16x96xf32> to vector<16x32xf32>
    %185 = vector.shape_cast %184 : vector<16x32xf32> to vector<2x8x32xf32>
    %186 = vector.shape_cast %181 : vector<2x8x32xf32> to vector<2x8x1x32xf32>
    %187 = vector.shape_cast %183 : vector<2x8x32xf32> to vector<2x1x8x32xf32>
    %188 = vector.broadcast %186 : vector<2x8x1x32xf32> to vector<2x8x8x32xf32>
    %189 = vector.broadcast %187 : vector<2x1x8x32xf32> to vector<2x8x8x32xf32>
    %190 = arith.mulf %188, %189 : vector<2x8x8x32xf32>
    %191 = vector.shape_cast %190 : vector<2x8x8x32xf32> to vector<128x32xf32>
    %cst_55 = arith.constant dense<0.000000e+00> : vector<128x4xf32>
    %192 = tpu.matmul %191, %48, %cst_55 {dimension_numbers = #tpu.dot_dimension_numbers<[1], [0], [0], [1], [0, 0, 1, 1], [], []>} : vector<128x32xf32>, vector<32x4xf32>, vector<128x4xf32> -> vector<128x4xf32>
    %193 = vector.shape_cast %192 : vector<128x4xf32> to vector<2x8x8x4xf32>
    %194 = arith.addf %193, %47 : vector<2x8x8x4xf32>
    %cst_56 = arith.constant dense<0xFF800000> : vector<2x8x4xf32>
    %195 = vector.multi_reduction <maximumf>, %194, %cst_56 [2] : vector<2x8x8x4xf32> to vector<2x8x4xf32>
    %196 = vector.shape_cast %195 : vector<2x8x4xf32> to vector<2x8x1x4xf32>
    %197 = vector.broadcast %196 : vector<2x8x1x4xf32> to vector<2x8x8x4xf32>
    %198 = arith.subf %194, %197 : vector<2x8x8x4xf32>
    %199 = math.exp %198 : vector<2x8x8x4xf32>
    %cst_57 = arith.constant dense<0.000000e+00> : vector<2x8x4xf32>
    %200 = vector.multi_reduction <add>, %199, %cst_57 [2] : vector<2x8x8x4xf32> to vector<2x8x4xf32>
    %201 = vector.shape_cast %200 : vector<2x8x4xf32> to vector<2x8x1x4xf32>
    %202 = tpu.reciprocal %201 {approx = true} : vector<2x8x1x4xf32> -> vector<2x8x1x4xf32>
    %203 = vector.broadcast %202 : vector<2x8x1x4xf32> to vector<2x8x8x4xf32>
    %204 = arith.mulf %199, %203 : vector<2x8x8x4xf32>
    %205 = vector.shape_cast %204 : vector<2x8x8x4xf32> to vector<128x4xf32>
    %cst_58 = arith.constant dense<0.000000e+00> : vector<128x32xf32>
    %206 = tpu.matmul %205, %49, %cst_58 {dimension_numbers = #tpu.dot_dimension_numbers<[1], [0], [0], [1], [0, 0, 1, 1], [], []>} : vector<128x4xf32>, vector<4x32xf32>, vector<128x32xf32> -> vector<128x32xf32>
    %207 = vector.shape_cast %206 : vector<128x32xf32> to vector<2x8x8x32xf32>
    %208 = vector.shape_cast %185 : vector<2x8x32xf32> to vector<2x1x8x32xf32>
    %209 = vector.broadcast %208 : vector<2x1x8x32xf32> to vector<2x8x8x32xf32>
    %210 = arith.mulf %207, %209 : vector<2x8x8x32xf32>
    %cst_59 = arith.constant dense<0.000000e+00> : vector<2x8x32xf32>
    %211 = vector.multi_reduction <add>, %210, %cst_59 [2] : vector<2x8x8x32xf32> to vector<2x8x32xf32>
    %212 = vector.shape_cast %211 : vector<2x8x32xf32> to vector<16x32xf32>
    %c1_60 = arith.constant 1 : index
    %c32_61 = arith.constant 32 : index
    %c0_62 = arith.constant 0 : index
    %213 = vector.load %arg4[%c1_60, %c32_61, %c0_62] : memref<2x168x128xf32, #tpu.memory_space<vmem>>, vector<1x32x32xf32>
    %214 = vector.shape_cast %213 : vector<1x32x32xf32> to vector<32x32xf32>
    %cst_63 = arith.constant dense<0.000000e+00> : vector<16x32xf32>
    %215 = tpu.matmul %212, %214, %cst_63 {dimension_numbers = #tpu.dot_dimension_numbers<[1], [0], [0], [1], [0, 0, 1, 1], [], []>} : vector<16x32xf32>, vector<32x32xf32>, vector<16x32xf32> -> vector<16x32xf32>
    %216 = vector.extract_strided_slice %173 {offsets = [1, 0], sizes = [1, 32], strides = [1, 1]} : vector<8x128xf32> to vector<1x32xf32>
    %217 = vector.broadcast %216 : vector<1x32xf32> to vector<16x32xf32>
    %218 = arith.addf %215, %217 : vector<16x32xf32>
    %219 = arith.addf %171, %218 : vector<16x32xf32>
    %220 = vector.extract_strided_slice %173 {offsets = [2, 0], sizes = [1, 32], strides = [1, 1]} : vector<8x128xf32> to vector<1x32xf32>
    %221 = vector.extract_strided_slice %173 {offsets = [3, 0], sizes = [1, 32], strides = [1, 1]} : vector<8x128xf32> to vector<1x32xf32>
    %cst_64 = arith.constant dense<0.000000e+00> : vector<16xf32>
    %222 = vector.multi_reduction <add>, %219, %cst_64 [1] : vector<16x32xf32> to vector<16xf32>
    %223 = vector.shape_cast %222 : vector<16xf32> to vector<16x1xf32>
    %cst_65 = arith.constant 3.200000e+01 : f32
    %224 = vector.broadcast %cst_65 : f32 to vector<16x1xf32>
    %225 = arith.divf %223, %224 : vector<16x1xf32>
    %226 = vector.broadcast %225 : vector<16x1xf32> to vector<16x32xf32>
    %227 = arith.subf %219, %226 : vector<16x32xf32>
    %228 = arith.mulf %227, %227 : vector<16x32xf32>
    %cst_66 = arith.constant dense<0.000000e+00> : vector<16xf32>
    %229 = vector.multi_reduction <add>, %228, %cst_66 [1] : vector<16x32xf32> to vector<16xf32>
    %230 = vector.shape_cast %229 : vector<16xf32> to vector<16x1xf32>
    %cst_67 = arith.constant 3.200000e+01 : f32
    %231 = vector.broadcast %cst_67 : f32 to vector<16x1xf32>
    %232 = arith.divf %230, %231 : vector<16x1xf32>
    %233 = vector.broadcast %225 : vector<16x1xf32> to vector<16x32xf32>
    %234 = arith.subf %219, %233 : vector<16x32xf32>
    %cst_68 = arith.constant 9.99999974E-6 : f32
    %235 = vector.broadcast %cst_68 : f32 to vector<16x1xf32>
    %236 = arith.addf %232, %235 : vector<16x1xf32>
    %237 = math.rsqrt %236 : vector<16x1xf32>
    %238 = vector.broadcast %237 : vector<16x1xf32> to vector<16x32xf32>
    %239 = arith.mulf %234, %238 : vector<16x32xf32>
    %240 = vector.broadcast %220 : vector<1x32xf32> to vector<16x32xf32>
    %241 = arith.mulf %239, %240 : vector<16x32xf32>
    %242 = vector.broadcast %221 : vector<1x32xf32> to vector<16x32xf32>
    %243 = arith.addf %241, %242 : vector<16x32xf32>
    %c1_69 = arith.constant 1 : index
    %c64_70 = arith.constant 64 : index
    %c0_71 = arith.constant 0 : index
    %244 = vector.load %arg4[%c1_69, %c64_70, %c0_71] : memref<2x168x128xf32, #tpu.memory_space<vmem>>, vector<1x32x64xf32>
    %245 = vector.shape_cast %244 : vector<1x32x64xf32> to vector<32x64xf32>
    %c1_72 = arith.constant 1 : index
    %c96_73 = arith.constant 96 : index
    %c0_74 = arith.constant 0 : index
    %246 = vector.load %arg4[%c1_72, %c96_73, %c0_74] : memref<2x168x128xf32, #tpu.memory_space<vmem>>, vector<1x64x32xf32>
    %247 = vector.shape_cast %246 : vector<1x64x32xf32> to vector<64x32xf32>
    %cst_75 = arith.constant dense<0.000000e+00> : vector<16x64xf32>
    %248 = tpu.matmul %243, %245, %cst_75 {dimension_numbers = #tpu.dot_dimension_numbers<[1], [0], [0], [1], [0, 0, 1, 1], [], []>} : vector<16x32xf32>, vector<32x64xf32>, vector<16x64xf32> -> vector<16x64xf32>
    %249 = vector.extract_strided_slice %173 {offsets = [4, 0], sizes = [1, 64], strides = [1, 1]} : vector<8x128xf32> to vector<1x64xf32>
    %250 = vector.broadcast %249 : vector<1x64xf32> to vector<16x64xf32>
    %251 = arith.addf %248, %250 : vector<16x64xf32>
    %252 = arith.mulf %251, %251 : vector<16x64xf32>
    %253 = arith.mulf %251, %252 : vector<16x64xf32>
    %cst_76 = arith.constant 4.471500e-02 : f32
    %254 = vector.broadcast %cst_76 : f32 to vector<16x64xf32>
    %255 = arith.mulf %254, %253 : vector<16x64xf32>
    %256 = arith.addf %251, %255 : vector<16x64xf32>
    %cst_77 = arith.constant 0.797884583 : f32
    %257 = vector.broadcast %cst_77 : f32 to vector<16x64xf32>
    %258 = arith.mulf %257, %256 : vector<16x64xf32>
    %259 = math.tanh %258 : vector<16x64xf32>
    %cst_78 = arith.constant 1.000000e+00 : f32
    %260 = vector.broadcast %cst_78 : f32 to vector<16x64xf32>
    %261 = arith.addf %260, %259 : vector<16x64xf32>
    %cst_79 = arith.constant 5.000000e-01 : f32
    %262 = vector.broadcast %cst_79 : f32 to vector<16x64xf32>
    %263 = arith.mulf %262, %261 : vector<16x64xf32>
    %264 = arith.mulf %251, %263 : vector<16x64xf32>
    %cst_80 = arith.constant dense<0.000000e+00> : vector<16x32xf32>
    %265 = tpu.matmul %264, %247, %cst_80 {dimension_numbers = #tpu.dot_dimension_numbers<[1], [0], [0], [1], [0, 0, 1, 1], [], []>} : vector<16x64xf32>, vector<64x32xf32>, vector<16x32xf32> -> vector<16x32xf32>
    %266 = vector.extract_strided_slice %173 {offsets = [5, 0], sizes = [1, 32], strides = [1, 1]} : vector<8x128xf32> to vector<1x32xf32>
    %267 = vector.broadcast %266 : vector<1x32xf32> to vector<16x32xf32>
    %268 = arith.addf %265, %267 : vector<16x32xf32>
    %269 = arith.addf %243, %268 : vector<16x32xf32>
    %270 = vector.extract_strided_slice %173 {offsets = [6, 0], sizes = [1, 32], strides = [1, 1]} : vector<8x128xf32> to vector<1x32xf32>
    %271 = vector.extract_strided_slice %173 {offsets = [7, 0], sizes = [1, 32], strides = [1, 1]} : vector<8x128xf32> to vector<1x32xf32>
    %cst_81 = arith.constant dense<0.000000e+00> : vector<16xf32>
    %272 = vector.multi_reduction <add>, %269, %cst_81 [1] : vector<16x32xf32> to vector<16xf32>
    %273 = vector.shape_cast %272 : vector<16xf32> to vector<16x1xf32>
    %cst_82 = arith.constant 3.200000e+01 : f32
    %274 = vector.broadcast %cst_82 : f32 to vector<16x1xf32>
    %275 = arith.divf %273, %274 : vector<16x1xf32>
    %276 = vector.broadcast %275 : vector<16x1xf32> to vector<16x32xf32>
    %277 = arith.subf %269, %276 : vector<16x32xf32>
    %278 = arith.mulf %277, %277 : vector<16x32xf32>
    %cst_83 = arith.constant dense<0.000000e+00> : vector<16xf32>
    %279 = vector.multi_reduction <add>, %278, %cst_83 [1] : vector<16x32xf32> to vector<16xf32>
    %280 = vector.shape_cast %279 : vector<16xf32> to vector<16x1xf32>
    %cst_84 = arith.constant 3.200000e+01 : f32
    %281 = vector.broadcast %cst_84 : f32 to vector<16x1xf32>
    %282 = arith.divf %280, %281 : vector<16x1xf32>
    %283 = vector.broadcast %275 : vector<16x1xf32> to vector<16x32xf32>
    %284 = arith.subf %269, %283 : vector<16x32xf32>
    %cst_85 = arith.constant 9.99999974E-6 : f32
    %285 = vector.broadcast %cst_85 : f32 to vector<16x1xf32>
    %286 = arith.addf %282, %285 : vector<16x1xf32>
    %287 = math.rsqrt %286 : vector<16x1xf32>
    %288 = vector.broadcast %287 : vector<16x1xf32> to vector<16x32xf32>
    %289 = arith.mulf %284, %288 : vector<16x32xf32>
    %290 = vector.broadcast %270 : vector<1x32xf32> to vector<16x32xf32>
    %291 = arith.mulf %289, %290 : vector<16x32xf32>
    %292 = vector.broadcast %271 : vector<1x32xf32> to vector<16x32xf32>
    %293 = arith.addf %291, %292 : vector<16x32xf32>
    %294 = vector.shape_cast %293 : vector<16x32xf32> to vector<2x8x32xf32>
    %295 = vector.extract_strided_slice %294 {offsets = [0, 0, 0], sizes = [2, 1, 32], strides = [1, 1, 1]} : vector<2x8x32xf32> to vector<2x1x32xf32>
    %296 = vector.shape_cast %295 : vector<2x1x32xf32> to vector<2x32xf32>
    %c0_86 = arith.constant 0 : index
    %c0_87 = arith.constant 0 : index
    %297 = vector.load %arg5[%c0_86, %c0_87] : memref<568x128xf32, #tpu.memory_space<vmem>>, vector<384x32xf32>
    %c0_88 = arith.constant 0 : index
    %c0_89 = arith.constant 0 : index
    %298 = vector.load %arg3[%c0_88, %c0_89] : memref<2x384xf32, #tpu.memory_space<vmem>>, vector<2x384xf32>
    %cst_90 = arith.constant dense<0.000000e+00> : vector<2x32xf32>
    %299 = tpu.matmul %298, %297, %cst_90 {dimension_numbers = #tpu.dot_dimension_numbers<[1], [0], [0], [1], [0, 0, 1, 1], [], []>} : vector<2x384xf32>, vector<384x32xf32>, vector<2x32xf32> -> vector<2x32xf32>
    %300 = vector.extract_strided_slice %0 {offsets = [2, 0], sizes = [1, 32], strides = [1, 1]} : vector<8x128xf32> to vector<1x32xf32>
    %301 = vector.broadcast %300 : vector<1x32xf32> to vector<2x32xf32>
    %302 = arith.addf %299, %301 : vector<2x32xf32>
    %303 = tpu.concatenate %296, %302 in 1 : vector<2x32xf32>, vector<2x32xf32> -> vector<2x64xf32>
    %c384 = arith.constant 384 : index
    %c0_91 = arith.constant 0 : index
    %304 = vector.load %arg5[%c384, %c0_91] : memref<568x128xf32, #tpu.memory_space<vmem>>, vector<64x20xf32>
    %cst_92 = arith.constant dense<0.000000e+00> : vector<2x20xf32>
    %305 = tpu.matmul %303, %304, %cst_92 {dimension_numbers = #tpu.dot_dimension_numbers<[1], [0], [0], [1], [0, 0, 1, 1], [], []>} : vector<2x64xf32>, vector<64x20xf32>, vector<2x20xf32> -> vector<2x20xf32>
    %306 = vector.extract_strided_slice %0 {offsets = [3, 0], sizes = [1, 20], strides = [1, 1]} : vector<8x128xf32> to vector<1x20xf32>
    %307 = vector.broadcast %306 : vector<1x20xf32> to vector<2x20xf32>
    %308 = arith.addf %305, %307 : vector<2x20xf32>
    %309 = vector.extract_strided_slice %308 {offsets = [0, 0], sizes = [2, 10], strides = [1, 1]} : vector<2x20xf32> to vector<2x10xf32>
    %310 = vector.extract_strided_slice %308 {offsets = [0, 10], sizes = [2, 10], strides = [1, 1]} : vector<2x20xf32> to vector<2x10xf32>
    %c0_93 = arith.constant 0 : index
    %c0_94 = arith.constant 0 : index
    %311 = vector.load %arg2[%c0_93, %c0_94] : memref<2x1xi32, #tpu.memory_space<vmem>>, vector<2x1xi32>
    %312 = tpu.iota {dimensions = array<i32: 1>} : vector<2x10xi32>
    %313 = vector.broadcast %311 : vector<2x1xi32> to vector<2x10xi32>
    %314 = arith.cmpi eq, %312, %313 : vector<2x10xi32>
    %315 = arith.extui %314 : vector<2x10xi1> to vector<2x10xi32>
    %316 = arith.sitofp %315 : vector<2x10xi32> to vector<2x10xf32>
    %cst_95 = arith.constant dense<0xFF800000> : vector<2xf32>
    %317 = vector.multi_reduction <maximumf>, %309, %cst_95 [1] : vector<2x10xf32> to vector<2xf32>
    %318 = vector.shape_cast %317 : vector<2xf32> to vector<2x1xf32>
    %319 = vector.broadcast %318 : vector<2x1xf32> to vector<2x10xf32>
    %320 = arith.subf %309, %319 : vector<2x10xf32>
    %321 = math.exp %320 : vector<2x10xf32>
    %cst_96 = arith.constant dense<0.000000e+00> : vector<2xf32>
    %322 = vector.multi_reduction <add>, %321, %cst_96 [1] : vector<2x10xf32> to vector<2xf32>
    %323 = vector.shape_cast %322 : vector<2xf32> to vector<2x1xf32>
    %324 = math.log %323 : vector<2x1xf32>
    %325 = arith.addf %318, %324 : vector<2x1xf32>
    %326 = arith.mulf %316, %309 : vector<2x10xf32>
    %cst_97 = arith.constant dense<0.000000e+00> : vector<2xf32>
    %327 = vector.multi_reduction <add>, %326, %cst_97 [1] : vector<2x10xf32> to vector<2xf32>
    %328 = vector.shape_cast %327 : vector<2xf32> to vector<2x1xf32>
    %329 = arith.subf %325, %328 : vector<2x1xf32>
    %cst_98 = arith.constant dense<0.000000e+00> : vector<1xf32>
    %330 = vector.multi_reduction <add>, %329, %cst_98 [0] : vector<2x1xf32> to vector<1xf32>
    %331 = vector.shape_cast %330 : vector<1xf32> to vector<1x1xf32>
    %cst_99 = arith.constant dense<0xFF800000> : vector<2xf32>
    %332 = vector.multi_reduction <maximumf>, %310, %cst_99 [1] : vector<2x10xf32> to vector<2xf32>
    %333 = vector.shape_cast %332 : vector<2xf32> to vector<2x1xf32>
    %334 = vector.broadcast %333 : vector<2x1xf32> to vector<2x10xf32>
    %335 = arith.subf %310, %334 : vector<2x10xf32>
    %336 = math.exp %335 : vector<2x10xf32>
    %cst_100 = arith.constant dense<0.000000e+00> : vector<2xf32>
    %337 = vector.multi_reduction <add>, %336, %cst_100 [1] : vector<2x10xf32> to vector<2xf32>
    %338 = vector.shape_cast %337 : vector<2xf32> to vector<2x1xf32>
    %339 = math.log %338 : vector<2x1xf32>
    %340 = arith.addf %333, %339 : vector<2x1xf32>
    %341 = arith.mulf %316, %310 : vector<2x10xf32>
    %cst_101 = arith.constant dense<0.000000e+00> : vector<2xf32>
    %342 = vector.multi_reduction <add>, %341, %cst_101 [1] : vector<2x10xf32> to vector<2xf32>
    %343 = vector.shape_cast %342 : vector<2xf32> to vector<2x1xf32>
    %344 = arith.subf %340, %343 : vector<2x1xf32>
    %cst_102 = arith.constant dense<0.000000e+00> : vector<1xf32>
    %345 = vector.multi_reduction <add>, %344, %cst_102 [0] : vector<2x1xf32> to vector<1xf32>
    %346 = vector.shape_cast %345 : vector<1xf32> to vector<1x1xf32>
    %cst_103 = arith.constant 5.000000e-01 : f32
    %347 = vector.broadcast %cst_103 : f32 to vector<1x1xf32>
    %348 = arith.mulf %347, %346 : vector<1x1xf32>
    %349 = arith.addf %331, %348 : vector<1x1xf32>
    %cst_104 = arith.constant 5.000000e-01 : f32
    %350 = vector.broadcast %cst_104 : f32 to vector<1x1xf32>
    %351 = arith.mulf %349, %350 : vector<1x1xf32>
    %cst_105 = arith.constant 0.000000e+00 : f32
    %352 = vector.broadcast %cst_105 : f32 to vector<8x128xf32>
    %c0_106 = arith.constant 0 : index
    %c0_107 = arith.constant 0 : index
    %353 = vector.load %arg6[%c0_106, %c0_107] : memref<8x128xf32, #tpu.memory_space<vmem>>, vector<8x128xf32>
    tpu.vector_store %arg6[%c0_106, %c0_107], %352 {strides = array<i32>} : memref<8x128xf32, #tpu.memory_space<vmem>>, vector<8x128xf32>,
    %c0_108 = arith.constant 0 : index
    %c0_109 = arith.constant 0 : index
    %354 = vector.load %arg6[%c0_108, %c0_109] : memref<8x128xf32, #tpu.memory_space<vmem>>, vector<2x20xf32>
    tpu.vector_store %arg6[%c0_108, %c0_109], %308 {strides = array<i32>} : memref<8x128xf32, #tpu.memory_space<vmem>>, vector<2x20xf32>,
    %c2 = arith.constant 2 : index
    %c0_110 = arith.constant 0 : index
    %355 = vector.load %arg6[%c2, %c0_110] : memref<8x128xf32, #tpu.memory_space<vmem>>, vector<1x1xf32>
    tpu.vector_store %arg6[%c2, %c0_110], %351 {strides = array<i32>} : memref<8x128xf32, #tpu.memory_space<vmem>>, vector<1x1xf32>,
    return
  }
}

</mosaic_0001>

<llo_original>
// kernel: _forward_jit.1
$region0: #{_forward_jit.1}
  #allocation0 [shape = 'u32[]', space=smem, size = 0x4, offset = 0x4, fixed_abs, tag = 'smem constant byte address 0x4 - core index']
  #allocation1 [shape = 'u32[144,128]{1,0:T(1,128)}', space=vmem, size = 0x12000, scoped, tag = 'internal scratch']
  %s0 = inlined_call_operand.vmem [shape: s32[16,1], index: 0, kind: input, shape index: {}]
  %s1 = inlined_call_operand.vmem [shape: s32[16,1], index: 1, kind: input, shape index: {}]
  %s2 = inlined_call_operand.vmem [shape: s32[2,1], index: 2, kind: input, shape index: {}]
  %s3 = inlined_call_operand.vmem [shape: f32[2,384], index: 3, kind: input, shape index: {}]
  %s4 = inlined_call_operand.hbm [shape: f32[2,168,128], index: 4, kind: input, shape index: {}]
  %s5 = inlined_call_operand.hbm [shape: f32[568,128], index: 5, kind: input, shape index: {}]
  %s6 = inlined_call_operand.vmem [shape: f32[8,128], index: 6, kind: output, shape index: {}]
  %s7 = sld [smem:[#allocation0]]
  $region42: #{_forward_jit.1} parent=0
    _
  %s9 = ssub.s32 1, %s7
  %s10 = scalar_select 0, %s9, %s7
  $region1: #{_forward_jit.1} parent=0
    #allocation2 [shape = 'u8[172032]{0}', space=vmem, size = 0x2a000, scoped, tag = 'input window, operand 4, single buffered']
    #allocation3 [shape = 's32[1]{0}', space=sflag, size = 0x4, scoped, tag = 'scoped memory for _forward_jit.1']
    #allocation4 [shape = 'u8[290816]{0}', space=vmem, size = 0x47000, scoped, tag = 'input window, operand 5, single buffered']
    #allocation5 [shape = 's32[1]{0}', space=sflag, size = 0x4, scoped, tag = 'scoped memory for _forward_jit.1']
    %11 = vsyncpa [#allocation3], 0
    %12 = vsyncpa [#allocation5], 0
    // Predicated region
    $region2: #{_forward_jit.1} parent=1 // pred_check
      _
    $region3: #{_forward_jit.1} parent=1 // pred_check_branch
      %14 = sbr.rel (0) target = $region5
    $region4: #{_forward_jit.1} parent=1 // pred_region
      _
    $region5: #{_forward_jit.1} parent=1 // pred_fallthru
      _
    // Predicated region
    $region6: #{_forward_jit.1} parent=1 // pred_check
      _
    $region7: #{_forward_jit.1} parent=1 // pred_check_branch
      %16 = sbr.rel (0) target = $region9
    $region8: #{_forward_jit.1} parent=1 // pred_region
      _
    $region9: #{_forward_jit.1} parent=1 // pred_fallthru
      _
    // Predicated region
    $region10: #{_forward_jit.1} parent=1 // pred_check
      _
    $region11: #{_forward_jit.1} parent=1 // pred_check_branch
      %18 = sbr.rel (0) target = $region13
    $region12: #{_forward_jit.1} parent=1 // pred_region
      _
    $region13: #{_forward_jit.1} parent=1 // pred_fallthru
      _
    // Predicated region
    $region14: #{_forward_jit.1} parent=1 // pred_check
      _
    $region15: #{_forward_jit.1} parent=1 // pred_check_branch
      %20 = sbr.rel (0) target = $region17
    $region16: #{_forward_jit.1} parent=1 // pred_region
      _
    $region17: #{_forward_jit.1} parent=1 // pred_fallthru
      _
    // Predicated region
    $region18: #{_forward_jit.1} parent=1 // pred_check
      _
    $region19: #{_forward_jit.1} parent=1 // pred_check_branch
      %22 = sbr.rel (0) target = $region21
    $region20: #{_forward_jit.1} parent=1 // pred_region
      %s24 = ssub.s32 5376, 5376
      %25 = vsyncadd [#allocation3], %s24
      %s26 = sshll.u32 [#allocation2], 4
      %s27 = int_to_ptr.vmem [resolvable:$true] %s26
      %32 = dma.hbm_to_vmem [thread:$0]  %s4, 5376, %s27, [#allocation3], 128, 128, 8
    $region21: #{_forward_jit.1} parent=1 // pred_fallthru
      _
    // Predicated region
    $region22: #{_forward_jit.1} parent=1 // pred_check
      _
    $region23: #{_forward_jit.1} parent=1 // pred_check_branch
      %34 = sbr.rel (0) target = $region25
    $region24: #{_forward_jit.1} parent=1 // pred_region
      %s36 = ssub.s32 9088, 9088
      %37 = vsyncadd [#allocation5], %s36
      %s38 = sshll.u32 [#allocation4], 4
      %s39 = int_to_ptr.vmem [resolvable:$true] %s38
      %44 = dma.hbm_to_vmem [thread:$0]  %s5, 9088, %s39, [#allocation5], 128, 128, 8
    $region25: #{_forward_jit.1} parent=1 // pred_fallthru
      _
    // Predicated region
    $region26: #{_forward_jit.1} parent=1 // pred_check
      _
    $region27: #{_forward_jit.1} parent=1 // pred_check_branch
      %46 = sbr.rel (0) target = $region29
    $region28: #{_forward_jit.1} parent=1 // pred_region
      %47 = dma.done [#allocation3], 5376
    $region29: #{_forward_jit.1} parent=1 // pred_fallthru
      _
    // Predicated region
    $region30: #{_forward_jit.1} parent=1 // pred_check
      _
    $region31: #{_forward_jit.1} parent=1 // pred_check_branch
      %49 = sbr.rel (0) target = $region33
    $region32: #{_forward_jit.1} parent=1 // pred_region
      %50 = dma.done [#allocation5], 9088
    $region33: #{_forward_jit.1} parent=1 // pred_fallthru
      _
    %v51 = vld [vmem:[#allocation4 + $0x230] sm:$0xff]
    %v52 = vld [vmem:[%s0] sm:$0xff]
    %v53 = vld [vmem:[%s0 + $0x8] sm:$0xff]
    %v54 = vlaneseq
    %v55 = vand.u32 %v54, 127
    %56 = vset.pattern.permute.xlu0 0
    %57 = vperm.xlu0 %56, %v52
    %v58 = vpop.permute.xlu0 %57
    %59 = vset.pattern.permute.xlu0 0
    %60 = vperm.xlu0 %59, %v53
    %v61 = vpop.permute.xlu0 %60
    %vm62 = vcmp.eq.s32.totalorder %v55, %v58
    %vm63 = vcmp.eq.s32.totalorder %v55, %v61
    %v64 = vsel %vm62, 1, 0
    %v65 = vsel %vm63, 1, 0
    %v66 = vcvt.s32.f32 %v64
    %v67 = vcvt.s32.f32 %v65
    %v68 = vld [vmem:[#allocation4 + $0x1c0] sm:$0xff]
    %v69 = vld [vmem:[#allocation4 + $0x1c8] sm:$0xff]
    %v70 = vld [vmem:[#allocation4 + $0x1d0] sm:$0xff]
    %v71 = vld [vmem:[#allocation4 + $0x1d8] sm:$0xff]
    %v72 = vld [vmem:[#allocation4 + $0x1e0] sm:$0xff]
    %v73 = vld [vmem:[#allocation4 + $0x1e8] sm:$0xff]
    %v74 = vld [vmem:[#allocation4 + $0x1f0] sm:$0xff]
    %v75 = vld [vmem:[#allocation4 + $0x1f8] sm:$0xff]
    %v76 = vld [vmem:[#allocation4 + $0x200] sm:$0xff]
    %vm77 = vcmask 523264
    %v79 = vsel %vm77, %v66, 0
    %v82 = vsel %vm77, %v67, 0
    %84 = vmatprep.subr.mxu0 0.0
    %85 = vmatpush1.msra.mxu0 %v68
    %86 = vmatprep.subr.mxu0 0.0
    %87 = vmatpush1.msra.mxu0 %v69
    %88 = vmatprep.subr.mxu0 0.0
    %89 = vmatpush1.msra.mxu0 %v70
    %90 = vmatprep.subr.mxu0 0.0
    %91 = vmatpush1.msra.mxu0 %v71
    %92 = vmatprep.subr.mxu0 0.0
    %93 = vmatpush1.msra.mxu0 %v72
    %94 = vmatprep.subr.mxu0 0.0
    %95 = vmatpush1.msra.mxu0 %v73
    %96 = vmatprep.subr.mxu0 0.0
    %97 = vmatpush1.msra.mxu0 %v74
    %98 = vmatprep.subr.mxu0 0.0
    %99 = vmatpush1.msra.mxu0 %v75
    %100 = vmatprep.subr.mxu0 0.0
    %101 = vmatpush1.msra.mxu0 0.0
    %102 = vmatprep.subr.mxu0 0.0
    %103 = vmatpush1.msra.mxu0 0.0
    %104 = vmatprep.subr.mxu0 0.0
    %105 = vmatpush1.msra.mxu0 0.0
    %106 = vmatprep.subr.mxu0 0.0
    %107 = vmatpush1.msra.mxu0 0.0
    %108 = vmatprep.subr.mxu0 0.0
    %109 = vmatpush1.msra.mxu0 0.0
    %110 = vmatprep.subr.mxu0 0.0
    %111 = vmatpush1.msra.mxu0 0.0
    %112 = vmatprep.subr.mxu0 0.0
    %113 = vmatpush1.msra.mxu0 0.0
    %114 = vmatprep.subr.mxu0 0.0
    %115 = vmatpush1.msra.mxu0 0.0
    %116 = vmatprep.subr.mxu0 0.0
    %117 = vmatpush1.msra.mxu0 0.0
    %118 = vmatprep.subr.mxu0 0.0
    %119 = vmatpush1.msra.mxu0 0.0
    %120 = vmatprep.subr.mxu0 0.0
    %121 = vmatpush1.msra.mxu0 0.0
    %122 = vmatprep.subr.mxu0 0.0
    %123 = vmatpush1.msra.mxu0 0.0
    %124 = vmatprep.subr.mxu0 0.0
    %125 = vmatpush1.msra.mxu0 0.0
    %126 = vmatprep.subr.mxu0 0.0
    %127 = vmatpush1.msra.mxu0 0.0
    %128 = vmatprep.subr.mxu0 0.0
    %129 = vmatpush1.msra.mxu0 0.0
    %130 = vmatprep.subr.mxu0 0.0
    %131 = vmatpush1.msra.mxu0 0.0
    %132 = vmatprep.subr.mxu0 0.0
    %133 = vmatpush1.msra.mxu0 0.0
    %134 = vmatprep.subr.mxu0 0.0
    %135 = vmatpush1.msra.mxu0 0.0
    %136 = vmatprep.subr.mxu0 0.0
    %137 = vmatpush1.msra.mxu0 0.0
    %138 = vmatprep.subr.mxu0 0.0
    %139 = vmatpush1.msra.mxu0 0.0
    %140 = vmatprep.subr.mxu0 0.0
    %141 = vmatpush1.msra.mxu0 0.0
    %142 = vmatprep.subr.mxu0 0.0
    %143 = vmatpush1.msra.mxu0 0.0
    %144 = vmatprep.subr.mxu0 0.0
    %145 = vmatpush1.msra.mxu0 0.0
    %146 = vmatprep.subr.mxu0 0.0
    %147 = vmatpush1.msra.mxu0 0.0
    %148 = vmatprep.mubr.f32.mxu0 0.0
    %149 = vmatmul.mubr.f32.gmra.mrb[0].mxu0 %v79
    %v150 = vpop.f32.mrb[0].mxu0
    %v151 = vadd.f32 %v76, %v150
    %v152 = vpop.f32.mrb[0].mxu0
    %153 = vmatprep.mubr.f32.mxu0 0.0
    %154 = vmatmul.mubr.f32.gmra.mrb[0].mxu0 %v82
    %v155 = vpop.f32.mrb[0].mxu0
    %v156 = vadd.f32 %v76, %v155
    %v157 = vpop.f32.mrb[0].mxu0
    %158 = vdwg.mxu0
    %vm159 = vcmask 261120
    %v160 = vsel %vm159, %v151, 0.0
    %161 = vadd.xlane.f32.xlu0 %v160
    %v162 = vpop.xlane.xlu0 %161
    %v163 = vsel %vm159, %v156, 0.0
    %164 = vadd.xlane.f32.xlu0 %v163
    %v165 = vpop.xlane.xlu0 %164
    %v166 = vrcp.pop 32.0
    %v167 = vmul.f32 %v162, %v166
    %v168 = vmul.f32 %v165, %v166
    %v169 = vsub.f32 %v151, %v167
    %v170 = vsub.f32 %v156, %v168
    %v171 = vmul.f32 %v169, %v169
    %v172 = vmul.f32 %v170, %v170
    %v173 = vsel %vm159, %v171, 0.0
    %174 = vadd.xlane.f32.xlu0 %v173
    %v175 = vpop.xlane.xlu0 %174
    %v176 = vsel %vm159, %v172, 0.0
    %177 = vadd.xlane.f32.xlu0 %v176
    %v178 = vpop.xlane.xlu0 %177
    %v179 = vmul.f32 %v175, %v166
    %v180 = vmul.f32 %v178, %v166
    %v181 = vadd.f32 %v179, 1e-05
    %v182 = vadd.f32 %v180, 1e-05
    %v183 = vrsqrt.pop %v181
    %v184 = vrsqrt.pop %v182
    %v185 = vmul.f32 %v169, %v183
    %v186 = vmul.f32 %v170, %v184
    %v187 = vlaneseq
    %v188 = vshrl.u32 %v187, 7
    %v189 = vsub.s32 0, %v188
    %v190 = vrot.slane %v51, %v189
    %v191 = vmul.f32 %v185, %v190
    %v192 = vmul.f32 %v186, %v190
    %v193 = vlaneseq
    %v194 = vshrl.u32 %v193, 7
    %v195 = vsub.s32 1, %v194
    %v196 = vrot.slane %v51, %v195
    %v197 = vadd.f32 %v191, %v196
    %v198 = vadd.f32 %v192, %v196
    %v199 = vld [vmem:[%s1] sm:$0xff]
    %v200 = vld [vmem:[%s1 + $0x8] sm:$0xff]
    %v201 = vcvt.s32.f32 %v199
    %v202 = vcvt.s32.f32 %v200
    %v203 = vsub.f32 1.0, %v201
    %v204 = vsub.f32 1.0, %v202
    %v205 = vmul.f32 %v203, -1e+09
    %v206 = vmul.f32 %v204, -1e+09
    %208 = vset.pattern.permute.xlu0 0
    %209 = vperm.xlu0 %208, %v205
    %v210 = vpop.permute.xlu0 %209
    %213 = vset.pattern.permute.xlu0 0
    %214 = vperm.xlu0 %213, %v206
    %v215 = vpop.permute.xlu0 %214
    %v217 = vld [vmem:[#allocation4 + $0x208] sm:$0xff]
    %v218 = vld [vmem:[#allocation4 + $0x210] sm:$0xff]
    %v219 = vld [vmem:[#allocation4 + $0x218] sm:$0xff]
    %v220 = vld [vmem:[#allocation4 + $0x220] sm:$0xff]
    %v221 = vld [vmem:[#allocation4 + $0x228] sm:$0xf]
    %v222 = vld [vmem:[#allocation2 + $0xa0] sm:$0xff]
    %v223 = vld [vmem:[#allocation2] sm:$0xff]
    %v224 = vld [vmem:[#allocation2 + $0x8] sm:$0xff]
    %v225 = vld [vmem:[#allocation2 + $0x10] sm:$0xff]
    %v226 = vld [vmem:[#allocation2 + $0x18] sm:$0xff]
    %v227 = vlaneseq
    %v228 = vshrl.u32 %v227, 7
    %v229 = vsub.s32 0, %v228
    %v230 = vrot.slane %v222, %v229
    %v232 = vsel %vm159, %v197, 0
    %v235 = vsel %vm159, %v198, 0
    %237 = vmatprep.subr.mxu0 0.0
    %238 = vmatpush1.msra.mxu0 %v223
    %239 = vmatprep.subr.mxu0 0.0
    %240 = vmatpush1.msra.mxu0 %v224
    %241 = vmatprep.subr.mxu0 0.0
    %242 = vmatpush1.msra.mxu0 %v225
    %243 = vmatprep.subr.mxu0 0.0
    %244 = vmatpush1.msra.mxu0 %v226
    %245 = vmatprep.subr.mxu0 0.0
    %246 = vmatpush1.msra.mxu0 0.0
    %247 = vmatprep.subr.mxu0 0.0
    %248 = vmatpush1.msra.mxu0 0.0
    %249 = vmatprep.subr.mxu0 0.0
    %250 = vmatpush1.msra.mxu0 0.0
    %251 = vmatprep.subr.mxu0 0.0
    %252 = vmatpush1.msra.mxu0 0.0
    %253 = vmatprep.subr.mxu0 0.0
    %254 = vmatpush1.msra.mxu0 0.0
    %255 = vmatprep.subr.mxu0 0.0
    %256 = vmatpush1.msra.mxu0 0.0
    %257 = vmatprep.subr.mxu0 0.0
    %258 = vmatpush1.msra.mxu0 0.0
    %259 = vmatprep.subr.mxu0 0.0
    %260 = vmatpush1.msra.mxu0 0.0
    %261 = vmatprep.subr.mxu0 0.0
    %262 = vmatpush1.msra.mxu0 0.0
    %263 = vmatprep.subr.mxu0 0.0
    %264 = vmatpush1.msra.mxu0 0.0
    %265 = vmatprep.subr.mxu0 0.0
    %266 = vmatpush1.msra.mxu0 0.0
    %267 = vmatprep.subr.mxu0 0.0
    %268 = vmatpush1.msra.mxu0 0.0
    %269 = vmatprep.subr.mxu0 0.0
    %270 = vmatpush1.msra.mxu0 0.0
    %271 = vmatprep.subr.mxu0 0.0
    %272 = vmatpush1.msra.mxu0 0.0
    %273 = vmatprep.subr.mxu0 0.0
    %274 = vmatpush1.msra.mxu0 0.0
    %275 = vmatprep.subr.mxu0 0.0
    %276 = vmatpush1.msra.mxu0 0.0
    %277 = vmatprep.subr.mxu0 0.0
    %278 = vmatpush1.msra.mxu0 0.0
    %279 = vmatprep.subr.mxu0 0.0
    %280 = vmatpush1.msra.mxu0 0.0
    %281 = vmatprep.subr.mxu0 0.0
    %282 = vmatpush1.msra.mxu0 0.0
    %283 = vmatprep.subr.mxu0 0.0
    %284 = vmatpush1.msra.mxu0 0.0
    %285 = vmatprep.subr.mxu0 0.0
    %286 = vmatpush1.msra.mxu0 0.0
    %287 = vmatprep.subr.mxu0 0.0
    %288 = vmatpush1.msra.mxu0 0.0
    %289 = vmatprep.subr.mxu0 0.0
    %290 = vmatpush1.msra.mxu0 0.0
    %291 = vmatprep.subr.mxu0 0.0
    %292 = vmatpush1.msra.mxu0 0.0
    %293 = vmatprep.subr.mxu0 0.0
    %294 = vmatpush1.msra.mxu0 0.0
    %295 = vmatprep.subr.mxu0 0.0
    %296 = vmatpush1.msra.mxu0 0.0
    %297 = vmatprep.subr.mxu0 0.0
    %298 = vmatpush1.msra.mxu0 0.0
    %299 = vmatprep.subr.mxu0 0.0
    %300 = vmatpush1.msra.mxu0 0.0
    %301 = vmatprep.mubr.f32.mxu0 0.0
    %302 = vmatmul.mubr.f32.gmra.mrb[0].mxu0 %v232
    %v303 = vpop.f32.mrb[0].mxu0
    %v304 = vadd.f32 %v230, %v303
    %v305 = vpop.f32.mrb[0].mxu0
    %306 = vmatprep.mubr.f32.mxu0 0.0
    %307 = vmatmul.mubr.f32.gmra.mrb[0].mxu0 %v235
    %v308 = vpop.f32.mrb[0].mxu0
    %v309 = vadd.f32 %v230, %v308
    %v310 = vpop.f32.mrb[0].mxu0
    %311 = vdwg.mxu0
    %v314 = vcombine.high %v304, %v304
    %v316 = vunpack.c.l.s4 1966171168
    %v317 = vunpack.c.0.s8 %v316
    %v318 = vlaneseq
    %v319 = vshrl.u32 %v318, 7
    %v320 = vsub.s32 %v317, %v319
    %v321 = vrot.slane %v304, %v320
    %v323 = vunpack.c.l.s4 1966171168
    %v324 = vunpack.c.0.s8 %v323
    %v325 = vlaneseq
    %v326 = vshrl.u32 %v325, 7
    %v327 = vsub.s32 %v324, %v326
    %v328 = vrot.slane %v314, %v327
    %v329 = vcombine.high %v321, %v321
    %v330 = vcombine.high %v328, %v328
    %v332 = vunpack.c.l.s4 1966171168
    %v333 = vunpack.c.0.s8 %v332
    %v334 = vlaneseq
    %v335 = vshrl.u32 %v334, 7
    %v336 = vsub.s32 %v333, %v335
    %v337 = vrot.slane %v321, %v336
    %v339 = vunpack.c.l.s4 1966171168
    %v340 = vunpack.c.0.s8 %v339
    %v341 = vlaneseq
    %v342 = vshrl.u32 %v341, 7
    %v343 = vsub.s32 %v340, %v342
    %v344 = vrot.slane %v328, %v343
    %v346 = vunpack.c.l.s4 1966171168
    %v347 = vunpack.c.0.s8 %v346
    %v348 = vlaneseq
    %v349 = vshrl.u32 %v348, 7
    %v350 = vsub.s32 %v347, %v349
    %v351 = vrot.slane %v329, %v350
    %v353 = vunpack.c.l.s4 1966171168
    %v354 = vunpack.c.0.s8 %v353
    %v355 = vlaneseq
    %v356 = vshrl.u32 %v355, 7
    %v357 = vsub.s32 %v354, %v356
    %v358 = vrot.slane %v330, %v357
    %v359 = vcombine.high %v337, %v337
    %v360 = vcombine.high %v344, %v344
    %v361 = vcombine.high %v351, %v351
    %v362 = vcombine.high %v358, %v358
    %v363 = vcombine.high %v309, %v309
    %v365 = vunpack.c.l.s4 1966171168
    %v366 = vunpack.c.0.s8 %v365
    %v367 = vlaneseq
    %v368 = vshrl.u32 %v367, 7
    %v369 = vsub.s32 %v366, %v368
    %v370 = vrot.slane %v309, %v369
    %v372 = vunpack.c.l.s4 1966171168
    %v373 = vunpack.c.0.s8 %v372
    %v374 = vlaneseq
    %v375 = vshrl.u32 %v374, 7
    %v376 = vsub.s32 %v373, %v375
    %v377 = vrot.slane %v363, %v376
    %v378 = vcombine.high %v370, %v370
    %v379 = vcombine.high %v377, %v377
    %v381 = vunpack.c.l.s4 1966171168
    %v382 = vunpack.c.0.s8 %v381
    %v383 = vlaneseq
    %v384 = vshrl.u32 %v383, 7
    %v385 = vsub.s32 %v382, %v384
    %v386 = vrot.slane %v370, %v385
    %v388 = vunpack.c.l.s4 1966171168
    %v389 = vunpack.c.0.s8 %v388
    %v390 = vlaneseq
    %v391 = vshrl.u32 %v390, 7
    %v392 = vsub.s32 %v389, %v391
    %v393 = vrot.slane %v377, %v392
    %v395 = vunpack.c.l.s4 1966171168
    %v396 = vunpack.c.0.s8 %v395
    %v397 = vlaneseq
    %v398 = vshrl.u32 %v397, 7
    %v399 = vsub.s32 %v396, %v398
    %v400 = vrot.slane %v378, %v399
    %v402 = vunpack.c.l.s4 1966171168
    %v403 = vunpack.c.0.s8 %v402
    %v404 = vlaneseq
    %v405 = vshrl.u32 %v404, 7
    %v406 = vsub.s32 %v403, %v405
    %v407 = vrot.slane %v379, %v406
    %v408 = vcombine.high %v386, %v386
    %v409 = vcombine.high %v393, %v393
    %v410 = vcombine.high %v400, %v400
    %v411 = vcombine.high %v407, %v407
    %v412 = vlaneseq
    %v413 = vshrl.u32 %v412, 7
    %v414 = vsub.s32 0, %v413
    %v415 = vrot.slane %v337, %v414
    %v416 = vlaneseq
    %v417 = vshrl.u32 %v416, 7
    %v418 = vsub.s32 0, %v417
    %v419 = vrot.slane %v351, %v418
    %v420 = vlaneseq
    %v421 = vshrl.u32 %v420, 7
    %v422 = vsub.s32 0, %v421
    %v423 = vrot.slane %v359, %v422
    %v424 = vlaneseq
    %v425 = vshrl.u32 %v424, 7
    %v426 = vsub.s32 0, %v425
    %v427 = vrot.slane %v361, %v426
    %v428 = vlaneseq
    %v429 = vshrl.u32 %v428, 7
    %v430 = vsub.s32 0, %v429
    %v431 = vrot.slane %v344, %v430
    %v432 = vlaneseq
    %v433 = vshrl.u32 %v432, 7
    %v434 = vsub.s32 0, %v433
    %v435 = vrot.slane %v358, %v434
    %v436 = vlaneseq
    %v437 = vshrl.u32 %v436, 7
    %v438 = vsub.s32 0, %v437
    %v439 = vrot.slane %v360, %v438
    %v440 = vlaneseq
    %v441 = vshrl.u32 %v440, 7
    %v442 = vsub.s32 0, %v441
    %v443 = vrot.slane %v362, %v442
    %v444 = vlaneseq
    %v445 = vshrl.u32 %v444, 7
    %v446 = vsub.s32 0, %v445
    %v447 = vrot.slane %v386, %v446
    %v448 = vlaneseq
    %v449 = vshrl.u32 %v448, 7
    %v450 = vsub.s32 0, %v449
    %v451 = vrot.slane %v400, %v450
    %v452 = vlaneseq
    %v453 = vshrl.u32 %v452, 7
    %v454 = vsub.s32 0, %v453
    %v455 = vrot.slane %v408, %v454
    %v456 = vlaneseq
    %v457 = vshrl.u32 %v456, 7
    %v458 = vsub.s32 0, %v457
    %v459 = vrot.slane %v410, %v458
    %v460 = vlaneseq
    %v461 = vshrl.u32 %v460, 7
    %v462 = vsub.s32 0, %v461
    %v463 = vrot.slane %v393, %v462
    %v464 = vlaneseq
    %v465 = vshrl.u32 %v464, 7
    %v466 = vsub.s32 0, %v465
    %v467 = vrot.slane %v407, %v466
    %v468 = vlaneseq
    %v469 = vshrl.u32 %v468, 7
    %v470 = vsub.s32 0, %v469
    %v471 = vrot.slane %v409, %v470
    %v472 = vlaneseq
    %v473 = vshrl.u32 %v472, 7
    %v474 = vsub.s32 0, %v473
    %v475 = vrot.slane %v411, %v474
    %492 = vrot.lane.b32.xlu0 %v304, 96
    %v493 = vpop.permute.xlu0 %492
    %494 = vrot.lane.b32.xlu0 %v309, 96
    %v495 = vpop.permute.xlu0 %494
    %v498 = vmul.f32 %v415, %v493
    %v499 = vmul.f32 %v419, %v493
    %v500 = vmul.f32 %v423, %v493
    %v501 = vmul.f32 %v427, %v493
    %v502 = vmul.f32 %v431, %v493
    %v503 = vmul.f32 %v435, %v493
    %v504 = vmul.f32 %v439, %v493
    %v505 = vmul.f32 %v443, %v493
    %v506 = vmul.f32 %v447, %v495
    %v507 = vmul.f32 %v451, %v495
    %v508 = vmul.f32 %v455, %v495
    %v509 = vmul.f32 %v459, %v495
    %v510 = vmul.f32 %v463, %v495
    %v511 = vmul.f32 %v467, %v495
    %v512 = vmul.f32 %v471, %v495
    %v513 = vmul.f32 %v475, %v495
    %v515 = vsel %vm159, %v498, 0
    %v518 = vsel %vm159, %v499, 0
    %v521 = vsel %vm159, %v500, 0
    %v524 = vsel %vm159, %v501, 0
    %v527 = vsel %vm159, %v502, 0
    %v530 = vsel %vm159, %v503, 0
    %v533 = vsel %vm159, %v504, 0
    %v536 = vsel %vm159, %v505, 0
    %v539 = vsel %vm159, %v506, 0
    %v542 = vsel %vm159, %v507, 0
    %v545 = vsel %vm159, %v508, 0
    %v548 = vsel %vm159, %v509, 0
    %v551 = vsel %vm159, %v510, 0
    %v554 = vsel %vm159, %v511, 0
    %v557 = vsel %vm159, %v512, 0
    %v560 = vsel %vm159, %v513, 0
    %562 = vmatprep.subr.mxu0 0.0
    %563 = vmatpush1.msra.mxu0 %v217
    %564 = vmatprep.subr.mxu0 0.0
    %565 = vmatpush1.msra.mxu0 %v218
    %566 = vmatprep.subr.mxu0 0.0
    %567 = vmatpush1.msra.mxu0 %v219
    %568 = vmatprep.subr.mxu0 0.0
    %569 = vmatpush1.msra.mxu0 %v220
    %570 = vmatprep.subr.mxu0 0.0
    %571 = vmatpush1.msra.mxu0 0.0
    %572 = vmatprep.subr.mxu0 0.0
    %573 = vmatpush1.msra.mxu0 0.0
    %574 = vmatprep.subr.mxu0 0.0
    %575 = vmatpush1.msra.mxu0 0.0
    %576 = vmatprep.subr.mxu0 0.0
    %577 = vmatpush1.msra.mxu0 0.0
    %578 = vmatprep.subr.mxu0 0.0
    %579 = vmatpush1.msra.mxu0 0.0
    %580 = vmatprep.subr.mxu0 0.0
    %581 = vmatpush1.msra.mxu0 0.0
    %582 = vmatprep.subr.mxu0 0.0
    %583 = vmatpush1.msra.mxu0 0.0
    %584 = vmatprep.subr.mxu0 0.0
    %585 = vmatpush1.msra.mxu0 0.0
    %586 = vmatprep.subr.mxu0 0.0
    %587 = vmatpush1.msra.mxu0 0.0
    %588 = vmatprep.subr.mxu0 0.0
    %589 = vmatpush1.msra.mxu0 0.0
    %590 = vmatprep.subr.mxu0 0.0
    %591 = vmatpush1.msra.mxu0 0.0
    %592 = vmatprep.subr.mxu0 0.0
    %593 = vmatpush1.msra.mxu0 0.0
    %594 = vmatprep.subr.mxu0 0.0
    %595 = vmatpush1.msra.mxu0 0.0
    %596 = vmatprep.subr.mxu0 0.0
    %597 = vmatpush1.msra.mxu0 0.0
    %598 = vmatprep.subr.mxu0 0.0
    %599 = vmatpush1.msra.mxu0 0.0
    %600 = vmatprep.subr.mxu0 0.0
    %601 = vmatpush1.msra.mxu0 0.0
    %602 = vmatprep.subr.mxu0 0.0
    %603 = vmatpush1.msra.mxu0 0.0
    %604 = vmatprep.subr.mxu0 0.0
    %605 = vmatpush1.msra.mxu0 0.0
    %606 = vmatprep.subr.mxu0 0.0
    %607 = vmatpush1.msra.mxu0 0.0
    %608 = vmatprep.subr.mxu0 0.0
    %609 = vmatpush1.msra.mxu0 0.0
    %610 = vmatprep.subr.mxu0 0.0
    %611 = vmatpush1.msra.mxu0 0.0
    %612 = vmatprep.subr.mxu0 0.0
    %613 = vmatpush1.msra.mxu0 0.0
    %614 = vmatprep.subr.mxu0 0.0
    %615 = vmatpush1.msra.mxu0 0.0
    %616 = vmatprep.subr.mxu0 0.0
    %617 = vmatpush1.msra.mxu0 0.0
    %618 = vmatprep.subr.mxu0 0.0
    %619 = vmatpush1.msra.mxu0 0.0
    %620 = vmatprep.subr.mxu0 0.0
    %621 = vmatpush1.msra.mxu0 0.0
    %622 = vmatprep.subr.mxu0 0.0
    %623 = vmatpush1.msra.mxu0 0.0
    %624 = vmatprep.subr.mxu0 0.0
    %625 = vmatpush1.msra.mxu0 0.0
    %626 = vmatprep.mubr.f32.mxu0 0.0
    %627 = vmatmul.mubr.f32.gmra.mrb[0].mxu0 %v515
    %v628 = vpop.f32.mrb[0].mxu0
    %v629 = vadd.f32 0.0, %v628
    %v630 = vpop.f32.mrb[0].mxu0
    %631 = vmatprep.mubr.f32.mxu0 0.0
    %632 = vmatmul.mubr.f32.gmra.mrb[0].mxu0 %v518
    %v633 = vpop.f32.mrb[0].mxu0
    %v634 = vadd.f32 0.0, %v633
    %v635 = vpop.f32.mrb[0].mxu0
    %636 = vmatprep.mubr.f32.mxu0 0.0
    %637 = vmatmul.mubr.f32.gmra.mrb[0].mxu0 %v521
    %v638 = vpop.f32.mrb[0].mxu0
    %v639 = vadd.f32 0.0, %v638
    %v640 = vpop.f32.mrb[0].mxu0
    %641 = vmatprep.mubr.f32.mxu0 0.0
    %642 = vmatmul.mubr.f32.gmra.mrb[0].mxu0 %v524
    %v643 = vpop.f32.mrb[0].mxu0
    %v644 = vadd.f32 0.0, %v643
    %v645 = vpop.f32.mrb[0].mxu0
    %646 = vmatprep.mubr.f32.mxu0 0.0
    %647 = vmatmul.mubr.f32.gmra.mrb[0].mxu0 %v527
    %v648 = vpop.f32.mrb[0].mxu0
    %v649 = vadd.f32 0.0, %v648
    %v650 = vpop.f32.mrb[0].mxu0
    %651 = vmatprep.mubr.f32.mxu0 0.0
    %652 = vmatmul.mubr.f32.gmra.mrb[0].mxu0 %v530
    %v653 = vpop.f32.mrb[0].mxu0
    %v654 = vadd.f32 0.0, %v653
    %v655 = vpop.f32.mrb[0].mxu0
    %656 = vmatprep.mubr.f32.mxu0 0.0
    %657 = vmatmul.mubr.f32.gmra.mrb[0].mxu0 %v533
    %v658 = vpop.f32.mrb[0].mxu0
    %v659 = vadd.f32 0.0, %v658
    %v660 = vpop.f32.mrb[0].mxu0
    %661 = vmatprep.mubr.f32.mxu0 0.0
    %662 = vmatmul.mubr.f32.gmra.mrb[0].mxu0 %v536
    %v663 = vpop.f32.mrb[0].mxu0
    %v664 = vadd.f32 0.0, %v663
    %v665 = vpop.f32.mrb[0].mxu0
    %666 = vmatprep.mubr.f32.mxu0 0.0
    %667 = vmatmul.mubr.f32.gmra.mrb[0].mxu0 %v539
    %v668 = vpop.f32.mrb[0].mxu0
    %v669 = vadd.f32 0.0, %v668
    %v670 = vpop.f32.mrb[0].mxu0
    %671 = vmatprep.mubr.f32.mxu0 0.0
    %672 = vmatmul.mubr.f32.gmra.mrb[0].mxu0 %v542
    %v673 = vpop.f32.mrb[0].mxu0
    %v674 = vadd.f32 0.0, %v673
    %v675 = vpop.f32.mrb[0].mxu0
    %676 = vmatprep.mubr.f32.mxu0 0.0
    %677 = vmatmul.mubr.f32.gmra.mrb[0].mxu0 %v545
    %v678 = vpop.f32.mrb[0].mxu0
    %v679 = vadd.f32 0.0, %v678
    %v680 = vpop.f32.mrb[0].mxu0
    %681 = vmatprep.mubr.f32.mxu0 0.0
    %682 = vmatmul.mubr.f32.gmra.mrb[0].mxu0 %v548
    %v683 = vpop.f32.mrb[0].mxu0
    %v684 = vadd.f32 0.0, %v683
    %v685 = vpop.f32.mrb[0].mxu0
    %686 = vmatprep.mubr.f32.mxu0 0.0
    %687 = vmatmul.mubr.f32.gmra.mrb[0].mxu0 %v551
    %v688 = vpop.f32.mrb[0].mxu0
    %v689 = vadd.f32 0.0, %v688
    %v690 = vpop.f32.mrb[0].mxu0
    %691 = vmatprep.mubr.f32.mxu0 0.0
    %692 = vmatmul.mubr.f32.gmra.mrb[0].mxu0 %v554
    %v693 = vpop.f32.mrb[0].mxu0
    %v694 = vadd.f32 0.0, %v693
    %v695 = vpop.f32.mrb[0].mxu0
    %696 = vmatprep.mubr.f32.mxu0 0.0
    %697 = vmatmul.mubr.f32.gmra.mrb[0].mxu0 %v557
    %v698 = vpop.f32.mrb[0].mxu0
    %v699 = vadd.f32 0.0, %v698
    %v700 = vpop.f32.mrb[0].mxu0
    %701 = vmatprep.mubr.f32.mxu0 0.0
    %702 = vmatmul.mubr.f32.gmra.mrb[0].mxu0 %v560
    %v703 = vpop.f32.mrb[0].mxu0
    %v704 = vadd.f32 0.0, %v703
    %v705 = vpop.f32.mrb[0].mxu0
    %706 = vdwg.mxu0
    %v707 = vadd.f32 %v629, %v210
    %v708 = vadd.f32 %v634, %v210
    %v709 = vadd.f32 %v639, %v210
    %v710 = vadd.f32 %v644, %v210
    %v711 = vadd.f32 %v649, %v210
    %v712 = vadd.f32 %v654, %v210
    %v713 = vadd.f32 %v659, %v210
    %v714 = vadd.f32 %v664, %v210
    %v715 = vadd.f32 %v669, %v215
    %v716 = vadd.f32 %v674, %v215
    %v717 = vadd.f32 %v679, %v215
    %v718 = vadd.f32 %v684, %v215
    %v719 = vadd.f32 %v689, %v215
    %v720 = vadd.f32 %v694, %v215
    %v721 = vadd.f32 %v699, %v215
    %v722 = vadd.f32 %v704, %v215
    %vm723 = vcmask 31744
    %v724 = vsel %vm723, %v707, -inf
    %v725 = vrot.slane %v724, 4
    %v726 = vmax.f32 %v724, %v725
    %v727 = vrot.slane %v726, 2
    %v728 = vmax.f32 %v726, %v727
    %v729 = vrot.slane %v728, 1
    %v730 = vmax.f32 %v728, %v729
    %v731 = vsel %vm723, %v708, -inf
    %v732 = vrot.slane %v731, 4
    %v733 = vmax.f32 %v731, %v732
    %v734 = vrot.slane %v733, 2
    %v735 = vmax.f32 %v733, %v734
    %v736 = vrot.slane %v735, 1
    %v737 = vmax.f32 %v735, %v736
    %v738 = vsel %vm723, %v709, -inf
    %v739 = vrot.slane %v738, 4
    %v740 = vmax.f32 %v738, %v739
    %v741 = vrot.slane %v740, 2
    %v742 = vmax.f32 %v740, %v741
    %v743 = vrot.slane %v742, 1
    %v744 = vmax.f32 %v742, %v743
    %v745 = vsel %vm723, %v710, -inf
    %v746 = vrot.slane %v745, 4
    %v747 = vmax.f32 %v745, %v746
    %v748 = vrot.slane %v747, 2
    %v749 = vmax.f32 %v747, %v748
    %v750 = vrot.slane %v749, 1
    %v751 = vmax.f32 %v749, %v750
    %v752 = vsel %vm723, %v711, -inf
    %v753 = vrot.slane %v752, 4
    %v754 = vmax.f32 %v752, %v753
    %v755 = vrot.slane %v754, 2
    %v756 = vmax.f32 %v754, %v755
    %v757 = vrot.slane %v756, 1
    %v758 = vmax.f32 %v756, %v757
    %v759 = vsel %vm723, %v712, -inf
    %v760 = vrot.slane %v759, 4
    %v761 = vmax.f32 %v759, %v760
    %v762 = vrot.slane %v761, 2
    %v763 = vmax.f32 %v761, %v762
    %v764 = vrot.slane %v763, 1
    %v765 = vmax.f32 %v763, %v764
    %v766 = vsel %vm723, %v713, -inf
    %v767 = vrot.slane %v766, 4
    %v768 = vmax.f32 %v766, %v767
    %v769 = vrot.slane %v768, 2
    %v770 = vmax.f32 %v768, %v769
    %v771 = vrot.slane %v770, 1
    %v772 = vmax.f32 %v770, %v771
    %v773 = vsel %vm723, %v714, -inf
    %v774 = vrot.slane %v773, 4
    %v775 = vmax.f32 %v773, %v774
    %v776 = vrot.slane %v775, 2
    %v777 = vmax.f32 %v775, %v776
    %v778 = vrot.slane %v777, 1
    %v779 = vmax.f32 %v777, %v778
    %v780 = vsel %vm723, %v715, -inf
    %v781 = vrot.slane %v780, 4
    %v782 = vmax.f32 %v780, %v781
    %v783 = vrot.slane %v782, 2
    %v784 = vmax.f32 %v782, %v783
    %v785 = vrot.slane %v784, 1
    %v786 = vmax.f32 %v784, %v785
    %v787 = vsel %vm723, %v716, -inf
    %v788 = vrot.slane %v787, 4
    %v789 = vmax.f32 %v787, %v788
    %v790 = vrot.slane %v789, 2
    %v791 = vmax.f32 %v789, %v790
    %v792 = vrot.slane %v791, 1
    %v793 = vmax.f32 %v791, %v792
    %v794 = vsel %vm723, %v717, -inf
    %v795 = vrot.slane %v794, 4
    %v796 = vmax.f32 %v794, %v795
    %v797 = vrot.slane %v796, 2
    %v798 = vmax.f32 %v796, %v797
    %v799 = vrot.slane %v798, 1
    %v800 = vmax.f32 %v798, %v799
    %v801 = vsel %vm723, %v718, -inf
    %v802 = vrot.slane %v801, 4
    %v803 = vmax.f32 %v801, %v802
    %v804 = vrot.slane %v803, 2
    %v805 = vmax.f32 %v803, %v804
    %v806 = vrot.slane %v805, 1
    %v807 = vmax.f32 %v805, %v806
    %v808 = vsel %vm723, %v719, -inf
    %v809 = vrot.slane %v808, 4
    %v810 = vmax.f32 %v808, %v809
    %v811 = vrot.slane %v810, 2
    %v812 = vmax.f32 %v810, %v811
    %v813 = vrot.slane %v812, 1
    %v814 = vmax.f32 %v812, %v813
    %v815 = vsel %vm723, %v720, -inf
    %v816 = vrot.slane %v815, 4
    %v817 = vmax.f32 %v815, %v816
    %v818 = vrot.slane %v817, 2
    %v819 = vmax.f32 %v817, %v818
    %v820 = vrot.slane %v819, 1
    %v821 = vmax.f32 %v819, %v820
    %v822 = vsel %vm723, %v721, -inf
    %v823 = vrot.slane %v822, 4
    %v824 = vmax.f32 %v822, %v823
    %v825 = vrot.slane %v824, 2
    %v826 = vmax.f32 %v824, %v825
    %v827 = vrot.slane %v826, 1
    %v828 = vmax.f32 %v826, %v827
    %v829 = vsel %vm723, %v722, -inf
    %v830 = vrot.slane %v829, 4
    %v831 = vmax.f32 %v829, %v830
    %v832 = vrot.slane %v831, 2
    %v833 = vmax.f32 %v831, %v832
    %v834 = vrot.slane %v833, 1
    %v835 = vmax.f32 %v833, %v834
    %v836 = vsub.f32 %v707, %v730
    %v837 = vsub.f32 %v708, %v737
    %v838 = vsub.f32 %v709, %v744
    %v839 = vsub.f32 %v710, %v751
    %v840 = vsub.f32 %v711, %v758
    %v841 = vsub.f32 %v712, %v765
    %v842 = vsub.f32 %v713, %v772
    %v843 = vsub.f32 %v714, %v779
    %v844 = vsub.f32 %v715, %v786
    %v845 = vsub.f32 %v716, %v793
    %v846 = vsub.f32 %v717, %v800
    %v847 = vsub.f32 %v718, %v807
    %v848 = vsub.f32 %v719, %v814
    %v849 = vsub.f32 %v720, %v821
    %v850 = vsub.f32 %v721, %v828
    %v851 = vsub.f32 %v722, %v835
    %v852 = vmul.f32 %v836, 1.442695
    %v853 = vpow.pop %v852
    %v854 = vmul.f32 %v837, 1.442695
    %v855 = vpow.pop %v854
    %v856 = vmul.f32 %v838, 1.442695
    %v857 = vpow.pop %v856
    %v858 = vmul.f32 %v839, 1.442695
    %v859 = vpow.pop %v858
    %v860 = vmul.f32 %v840, 1.442695
    %v861 = vpow.pop %v860
    %v862 = vmul.f32 %v841, 1.442695
    %v863 = vpow.pop %v862
    %v864 = vmul.f32 %v842, 1.442695
    %v865 = vpow.pop %v864
    %v866 = vmul.f32 %v843, 1.442695
    %v867 = vpow.pop %v866
    %v868 = vmul.f32 %v844, 1.442695
    %v869 = vpow.pop %v868
    %v870 = vmul.f32 %v845, 1.442695
    %v871 = vpow.pop %v870
    %v872 = vmul.f32 %v846, 1.442695
    %v873 = vpow.pop %v872
    %v874 = vmul.f32 %v847, 1.442695
    %v875 = vpow.pop %v874
    %v876 = vmul.f32 %v848, 1.442695
    %v877 = vpow.pop %v876
    %v878 = vmul.f32 %v849, 1.442695
    %v879 = vpow.pop %v878
    %v880 = vmul.f32 %v850, 1.442695
    %v881 = vpow.pop %v880
    %v882 = vmul.f32 %v851, 1.442695
    %v883 = vpow.pop %v882
    %v884 = vsel %vm723, %v853, 0.0
    %v885 = vrot.slane %v884, 4
    %v886 = vadd.f32 %v884, %v885
    %v887 = vrot.slane %v886, 2
    %v888 = vadd.f32 %v886, %v887
    %v889 = vrot.slane %v888, 1
    %v890 = vadd.f32 %v888, %v889
    %v891 = vsel %vm723, %v855, 0.0
    %v892 = vrot.slane %v891, 4
    %v893 = vadd.f32 %v891, %v892
    %v894 = vrot.slane %v893, 2
    %v895 = vadd.f32 %v893, %v894
    %v896 = vrot.slane %v895, 1
    %v897 = vadd.f32 %v895, %v896
    %v898 = vsel %vm723, %v857, 0.0
    %v899 = vrot.slane %v898, 4
    %v900 = vadd.f32 %v898, %v899
    %v901 = vrot.slane %v900, 2
    %v902 = vadd.f32 %v900, %v901
    %v903 = vrot.slane %v902, 1
    %v904 = vadd.f32 %v902, %v903
    %v905 = vsel %vm723, %v859, 0.0
    %v906 = vrot.slane %v905, 4
    %v907 = vadd.f32 %v905, %v906
    %v908 = vrot.slane %v907, 2
    %v909 = vadd.f32 %v907, %v908
    %v910 = vrot.slane %v909, 1
    %v911 = vadd.f32 %v909, %v910
    %v912 = vsel %vm723, %v861, 0.0
    %v913 = vrot.slane %v912, 4
    %v914 = vadd.f32 %v912, %v913
    %v915 = vrot.slane %v914, 2
    %v916 = vadd.f32 %v914, %v915
    %v917 = vrot.slane %v916, 1
    %v918 = vadd.f32 %v916, %v917
    %v919 = vsel %vm723, %v863, 0.0
    %v920 = vrot.slane %v919, 4
    %v921 = vadd.f32 %v919, %v920
    %v922 = vrot.slane %v921, 2
    %v923 = vadd.f32 %v921, %v922
    %v924 = vrot.slane %v923, 1
    %v925 = vadd.f32 %v923, %v924
    %v926 = vsel %vm723, %v865, 0.0
    %v927 = vrot.slane %v926, 4
    %v928 = vadd.f32 %v926, %v927
    %v929 = vrot.slane %v928, 2
    %v930 = vadd.f32 %v928, %v929
    %v931 = vrot.slane %v930, 1
    %v932 = vadd.f32 %v930, %v931
    %v933 = vsel %vm723, %v867, 0.0
    %v934 = vrot.slane %v933, 4
    %v935 = vadd.f32 %v933, %v934
    %v936 = vrot.slane %v935, 2
    %v937 = vadd.f32 %v935, %v936
    %v938 = vrot.slane %v937, 1
    %v939 = vadd.f32 %v937, %v938
    %v940 = vsel %vm723, %v869, 0.0
    %v941 = vrot.slane %v940, 4
    %v942 = vadd.f32 %v940, %v941
    %v943 = vrot.slane %v942, 2
    %v944 = vadd.f32 %v942, %v943
    %v945 = vrot.slane %v944, 1
    %v946 = vadd.f32 %v944, %v945
    %v947 = vsel %vm723, %v871, 0.0
    %v948 = vrot.slane %v947, 4
    %v949 = vadd.f32 %v947, %v948
    %v950 = vrot.slane %v949, 2
    %v951 = vadd.f32 %v949, %v950
    %v952 = vrot.slane %v951, 1
    %v953 = vadd.f32 %v951, %v952
    %v954 = vsel %vm723, %v873, 0.0
    %v955 = vrot.slane %v954, 4
    %v956 = vadd.f32 %v954, %v955
    %v957 = vrot.slane %v956, 2
    %v958 = vadd.f32 %v956, %v957
    %v959 = vrot.slane %v958, 1
    %v960 = vadd.f32 %v958, %v959
    %v961 = vsel %vm723, %v875, 0.0
    %v962 = vrot.slane %v961, 4
    %v963 = vadd.f32 %v961, %v962
    %v964 = vrot.slane %v963, 2
    %v965 = vadd.f32 %v963, %v964
    %v966 = vrot.slane %v965, 1
    %v967 = vadd.f32 %v965, %v966
    %v968 = vsel %vm723, %v877, 0.0
    %v969 = vrot.slane %v968, 4
    %v970 = vadd.f32 %v968, %v969
    %v971 = vrot.slane %v970, 2
    %v972 = vadd.f32 %v970, %v971
    %v973 = vrot.slane %v972, 1
    %v974 = vadd.f32 %v972, %v973
    %v975 = vsel %vm723, %v879, 0.0
    %v976 = vrot.slane %v975, 4
    %v977 = vadd.f32 %v975, %v976
    %v978 = vrot.slane %v977, 2
    %v979 = vadd.f32 %v977, %v978
    %v980 = vrot.slane %v979, 1
    %v981 = vadd.f32 %v979, %v980
    %v982 = vsel %vm723, %v881, 0.0
    %v983 = vrot.slane %v982, 4
    %v984 = vadd.f32 %v982, %v983
    %v985 = vrot.slane %v984, 2
    %v986 = vadd.f32 %v984, %v985
    %v987 = vrot.slane %v986, 1
    %v988 = vadd.f32 %v986, %v987
    %v989 = vsel %vm723, %v883, 0.0
    %v990 = vrot.slane %v989, 4
    %v991 = vadd.f32 %v989, %v990
    %v992 = vrot.slane %v991, 2
    %v993 = vadd.f32 %v991, %v992
    %v994 = vrot.slane %v993, 1
    %v995 = vadd.f32 %v993, %v994
    %v996 = vrcp.pop %v890
    %v997 = vrcp.pop %v897
    %v998 = vrcp.pop %v904
    %v999 = vrcp.pop %v911
    %v1000 = vrcp.pop %v918
    %v1001 = vrcp.pop %v925
    %v1002 = vrcp.pop %v932
    %v1003 = vrcp.pop %v939
    %v1004 = vrcp.pop %v946
    %v1005 = vrcp.pop %v953
    %v1006 = vrcp.pop %v960
    %v1007 = vrcp.pop %v967
    %v1008 = vrcp.pop %v974
    %v1009 = vrcp.pop %v981
    %v1010 = vrcp.pop %v988
    %v1011 = vrcp.pop %v995
    %v1012 = vmul.f32 %v853, %v996
    %v1013 = vmul.f32 %v855, %v997
    %v1014 = vmul.f32 %v857, %v998
    %v1015 = vmul.f32 %v859, %v999
    %v1016 = vmul.f32 %v861, %v1000
    %v1017 = vmul.f32 %v863, %v1001
    %v1018 = vmul.f32 %v865, %v1002
    %v1019 = vmul.f32 %v867, %v1003
    %v1020 = vmul.f32 %v869, %v1004
    %v1021 = vmul.f32 %v871, %v1005
    %v1022 = vmul.f32 %v873, %v1006
    %v1023 = vmul.f32 %v875, %v1007
    %v1024 = vmul.f32 %v877, %v1008
    %v1025 = vmul.f32 %v879, %v1009
    %v1026 = vmul.f32 %v881, %v1010
    %v1027 = vmul.f32 %v883, %v1011
    %v1029 = vsel %vm723, %v1012, 0
    %v1032 = vsel %vm723, %v1013, 0
    %v1035 = vsel %vm723, %v1014, 0
    %v1038 = vsel %vm723, %v1015, 0
    %v1041 = vsel %vm723, %v1016, 0
    %v1044 = vsel %vm723, %v1017, 0
    %v1047 = vsel %vm723, %v1018, 0
    %v1050 = vsel %vm723, %v1019, 0
    %v1053 = vsel %vm723, %v1020, 0
    %v1056 = vsel %vm723, %v1021, 0
    %v1059 = vsel %vm723, %v1022, 0
    %v1062 = vsel %vm723, %v1023, 0
    %v1065 = vsel %vm723, %v1024, 0
    %v1068 = vsel %vm723, %v1025, 0
    %v1071 = vsel %vm723, %v1026, 0
    %v1074 = vsel %vm723, %v1027, 0
    %vm1076 = vcmask 1043456
    %v1078 = vsel %vm1076, %v221, 0
    %1080 = vmatprep.subr.mxu0 0.0
    %1081 = vmatpush1.msra.mxu0 %v1078
    %1082 = vmatprep.subr.mxu0 0.0
    %1083 = vmatpush1.msra.mxu0 0.0
    %1084 = vmatprep.subr.mxu0 0.0
    %1085 = vmatpush1.msra.mxu0 0.0
    %1086 = vmatprep.subr.mxu0 0.0
    %1087 = vmatpush1.msra.mxu0 0.0
    %1088 = vmatprep.subr.mxu0 0.0
    %1089 = vmatpush1.msra.mxu0 0.0
    %1090 = vmatprep.subr.mxu0 0.0
    %1091 = vmatpush1.msra.mxu0 0.0
    %1092 = vmatprep.subr.mxu0 0.0
    %1093 = vmatpush1.msra.mxu0 0.0
    %1094 = vmatprep.subr.mxu0 0.0
    %1095 = vmatpush1.msra.mxu0 0.0
    %1096 = vmatprep.subr.mxu0 0.0
    %1097 = vmatpush1.msra.mxu0 0.0
    %1098 = vmatprep.subr.mxu0 0.0
    %1099 = vmatpush1.msra.mxu0 0.0
    %1100 = vmatprep.subr.mxu0 0.0
    %1101 = vmatpush1.msra.mxu0 0.0
    %1102 = vmatprep.subr.mxu0 0.0
    %1103 = vmatpush1.msra.mxu0 0.0
    %1104 = vmatprep.subr.mxu0 0.0
    %1105 = vmatpush1.msra.mxu0 0.0
    %1106 = vmatprep.subr.mxu0 0.0
    %1107 = vmatpush1.msra.mxu0 0.0
    %1108 = vmatprep.subr.mxu0 0.0
    %1109 = vmatpush1.msra.mxu0 0.0
    %1110 = vmatprep.subr.mxu0 0.0
    %1111 = vmatpush1.msra.mxu0 0.0
    %1112 = vmatprep.subr.mxu0 0.0
    %1113 = vmatpush1.msra.mxu0 0.0
    %1114 = vmatprep.subr.mxu0 0.0
    %1115 = vmatpush1.msra.mxu0 0.0
    %1116 = vmatprep.subr.mxu0 0.0
    %1117 = vmatpush1.msra.mxu0 0.0
    %1118 = vmatprep.subr.mxu0 0.0
    %1119 = vmatpush1.msra.mxu0 0.0
    %1120 = vmatprep.subr.mxu0 0.0
    %1121 = vmatpush1.msra.mxu0 0.0
    %1122 = vmatprep.subr.mxu0 0.0
    %1123 = vmatpush1.msra.mxu0 0.0
    %1124 = vmatprep.subr.mxu0 0.0
    %1125 = vmatpush1.msra.mxu0 0.0
    %1126 = vmatprep.subr.mxu0 0.0
    %1127 = vmatpush1.msra.mxu0 0.0
    %1128 = vmatprep.subr.mxu0 0.0
    %1129 = vmatpush1.msra.mxu0 0.0
    %1130 = vmatprep.subr.mxu0 0.0
    %1131 = vmatpush1.msra.mxu0 0.0
    %1132 = vmatprep.subr.mxu0 0.0
    %1133 = vmatpush1.msra.mxu0 0.0
    %1134 = vmatprep.subr.mxu0 0.0
    %1135 = vmatpush1.msra.mxu0 0.0
    %1136 = vmatprep.subr.mxu0 0.0
    %1137 = vmatpush1.msra.mxu0 0.0
    %1138 = vmatprep.subr.mxu0 0.0
    %1139 = vmatpush1.msra.mxu0 0.0
    %1140 = vmatprep.subr.mxu0 0.0
    %1141 = vmatpush1.msra.mxu0 0.0
    %1142 = vmatprep.subr.mxu0 0.0
    %1143 = vmatpush1.msra.mxu0 0.0
    %1144 = vmatprep.mubr.f32.mxu0 0.0
    %1145 = vmatmul.mubr.f32.gmra.mrb[0].mxu0 %v1029
    %v1146 = vpop.f32.mrb[0].mxu0
    %v1147 = vadd.f32 0.0, %v1146
    %v1148 = vpop.f32.mrb[0].mxu0
    %1149 = vmatprep.mubr.f32.mxu0 0.0
    %1150 = vmatmul.mubr.f32.gmra.mrb[0].mxu0 %v1032
    %v1151 = vpop.f32.mrb[0].mxu0
    %v1152 = vadd.f32 0.0, %v1151
    %v1153 = vpop.f32.mrb[0].mxu0
    %1154 = vmatprep.mubr.f32.mxu0 0.0
    %1155 = vmatmul.mubr.f32.gmra.mrb[0].mxu0 %v1035
    %v1156 = vpop.f32.mrb[0].mxu0
    %v1157 = vadd.f32 0.0, %v1156
    %v1158 = vpop.f32.mrb[0].mxu0
    %1159 = vmatprep.mubr.f32.mxu0 0.0
    %1160 = vmatmul.mubr.f32.gmra.mrb[0].mxu0 %v1038
    %v1161 = vpop.f32.mrb[0].mxu0
    %v1162 = vadd.f32 0.0, %v1161
    %v1163 = vpop.f32.mrb[0].mxu0
    %1164 = vmatprep.mubr.f32.mxu0 0.0
    %1165 = vmatmul.mubr.f32.gmra.mrb[0].mxu0 %v1041
    %v1166 = vpop.f32.mrb[0].mxu0
    %v1167 = vadd.f32 0.0, %v1166
    %v1168 = vpop.f32.mrb[0].mxu0
    %1169 = vmatprep.mubr.f32.mxu0 0.0
    %1170 = vmatmul.mubr.f32.gmra.mrb[0].mxu0 %v1044
    %v1171 = vpop.f32.mrb[0].mxu0
    %v1172 = vadd.f32 0.0, %v1171
    %v1173 = vpop.f32.mrb[0].mxu0
    %1174 = vmatprep.mubr.f32.mxu0 0.0
    %1175 = vmatmul.mubr.f32.gmra.mrb[0].mxu0 %v1047
    %v1176 = vpop.f32.mrb[0].mxu0
    %v1177 = vadd.f32 0.0, %v1176
    %v1178 = vpop.f32.mrb[0].mxu0
    %1179 = vmatprep.mubr.f32.mxu0 0.0
    %1180 = vmatmul.mubr.f32.gmra.mrb[0].mxu0 %v1050
    %v1181 = vpop.f32.mrb[0].mxu0
    %v1182 = vadd.f32 0.0, %v1181
    %v1183 = vpop.f32.mrb[0].mxu0
    %1184 = vmatprep.mubr.f32.mxu0 0.0
    %1185 = vmatmul.mubr.f32.gmra.mrb[0].mxu0 %v1053
    %v1186 = vpop.f32.mrb[0].mxu0
    %v1187 = vadd.f32 0.0, %v1186
    %v1188 = vpop.f32.mrb[0].mxu0
    %1189 = vmatprep.mubr.f32.mxu0 0.0
    %1190 = vmatmul.mubr.f32.gmra.mrb[0].mxu0 %v1056
    %v1191 = vpop.f32.mrb[0].mxu0
    %v1192 = vadd.f32 0.0, %v1191
    %v1193 = vpop.f32.mrb[0].mxu0
    %1194 = vmatprep.mubr.f32.mxu0 0.0
    %1195 = vmatmul.mubr.f32.gmra.mrb[0].mxu0 %v1059
    %v1196 = vpop.f32.mrb[0].mxu0
    %v1197 = vadd.f32 0.0, %v1196
    %v1198 = vpop.f32.mrb[0].mxu0
    %1199 = vmatprep.mubr.f32.mxu0 0.0
    %1200 = vmatmul.mubr.f32.gmra.mrb[0].mxu0 %v1062
    %v1201 = vpop.f32.mrb[0].mxu0
    %v1202 = vadd.f32 0.0, %v1201
    %v1203 = vpop.f32.mrb[0].mxu0
    %1204 = vmatprep.mubr.f32.mxu0 0.0
    %1205 = vmatmul.mubr.f32.gmra.mrb[0].mxu0 %v1065
    %v1206 = vpop.f32.mrb[0].mxu0
    %v1207 = vadd.f32 0.0, %v1206
    %v1208 = vpop.f32.mrb[0].mxu0
    %1209 = vmatprep.mubr.f32.mxu0 0.0
    %1210 = vmatmul.mubr.f32.gmra.mrb[0].mxu0 %v1068
    %v1211 = vpop.f32.mrb[0].mxu0
    %v1212 = vadd.f32 0.0, %v1211
    %v1213 = vpop.f32.mrb[0].mxu0
    %1214 = vmatprep.mubr.f32.mxu0 0.0
    %1215 = vmatmul.mubr.f32.gmra.mrb[0].mxu0 %v1071
    %v1216 = vpop.f32.mrb[0].mxu0
    %v1217 = vadd.f32 0.0, %v1216
    %v1218 = vpop.f32.mrb[0].mxu0
    %1219 = vmatprep.mubr.f32.mxu0 0.0
    %1220 = vmatmul.mubr.f32.gmra.mrb[0].mxu0 %v1074
    %v1221 = vpop.f32.mrb[0].mxu0
    %v1222 = vadd.f32 0.0, %v1221
    %v1223 = vpop.f32.mrb[0].mxu0
    %1224 = vdwg.mxu0
    %1225 = vrot.lane.b32.xlu0 %v304, 64
    %v1226 = vpop.permute.xlu0 %1225
    %1227 = vrot.lane.b32.xlu0 %v309, 64
    %v1228 = vpop.permute.xlu0 %1227
    %v1231 = vmul.f32 %v1147, %v1226
    %v1232 = vmul.f32 %v1152, %v1226
    %v1233 = vmul.f32 %v1157, %v1226
    %v1234 = vmul.f32 %v1162, %v1226
    %v1235 = vmul.f32 %v1167, %v1226
    %v1236 = vmul.f32 %v1172, %v1226
    %v1237 = vmul.f32 %v1177, %v1226
    %v1238 = vmul.f32 %v1182, %v1226
    %v1239 = vmul.f32 %v1187, %v1228
    %v1240 = vmul.f32 %v1192, %v1228
    %v1241 = vmul.f32 %v1197, %v1228
    %v1242 = vmul.f32 %v1202, %v1228
    %v1243 = vmul.f32 %v1207, %v1228
    %v1244 = vmul.f32 %v1212, %v1228
    %v1245 = vmul.f32 %v1217, %v1228
    %v1246 = vmul.f32 %v1222, %v1228
    %v1247 = vsel %vm159, %v1231, 0.0
    %v1248 = vrot.slane %v1247, 4
    %v1249 = vadd.f32 %v1247, %v1248
    %v1250 = vrot.slane %v1249, 2
    %v1251 = vadd.f32 %v1249, %v1250
    %v1252 = vrot.slane %v1251, 1
    %v1253 = vadd.f32 %v1251, %v1252
    %v1254 = vsel %vm159, %v1232, 0.0
    %v1255 = vrot.slane %v1254, 4
    %v1256 = vadd.f32 %v1254, %v1255
    %v1257 = vrot.slane %v1256, 2
    %v1258 = vadd.f32 %v1256, %v1257
    %v1259 = vrot.slane %v1258, 1
    %v1260 = vadd.f32 %v1258, %v1259
    %v1261 = vsel %vm159, %v1233, 0.0
    %v1262 = vrot.slane %v1261, 4
    %v1263 = vadd.f32 %v1261, %v1262
    %v1264 = vrot.slane %v1263, 2
    %v1265 = vadd.f32 %v1263, %v1264
    %v1266 = vrot.slane %v1265, 1
    %v1267 = vadd.f32 %v1265, %v1266
    %v1268 = vsel %vm159, %v1234, 0.0
    %v1269 = vrot.slane %v1268, 4
    %v1270 = vadd.f32 %v1268, %v1269
    %v1271 = vrot.slane %v1270, 2
    %v1272 = vadd.f32 %v1270, %v1271
    %v1273 = vrot.slane %v1272, 1
    %v1274 = vadd.f32 %v1272, %v1273
    %v1275 = vsel %vm159, %v1235, 0.0
    %v1276 = vrot.slane %v1275, 4
    %v1277 = vadd.f32 %v1275, %v1276
    %v1278 = vrot.slane %v1277, 2
    %v1279 = vadd.f32 %v1277, %v1278
    %v1280 = vrot.slane %v1279, 1
    %v1281 = vadd.f32 %v1279, %v1280
    %v1282 = vsel %vm159, %v1236, 0.0
    %v1283 = vrot.slane %v1282, 4
    %v1284 = vadd.f32 %v1282, %v1283
    %v1285 = vrot.slane %v1284, 2
    %v1286 = vadd.f32 %v1284, %v1285
    %v1287 = vrot.slane %v1286, 1
    %v1288 = vadd.f32 %v1286, %v1287
    %v1289 = vsel %vm159, %v1237, 0.0
    %v1290 = vrot.slane %v1289, 4
    %v1291 = vadd.f32 %v1289, %v1290
    %v1292 = vrot.slane %v1291, 2
    %v1293 = vadd.f32 %v1291, %v1292
    %v1294 = vrot.slane %v1293, 1
    %v1295 = vadd.f32 %v1293, %v1294
    %v1296 = vsel %vm159, %v1238, 0.0
    %v1297 = vrot.slane %v1296, 4
    %v1298 = vadd.f32 %v1296, %v1297
    %v1299 = vrot.slane %v1298, 2
    %v1300 = vadd.f32 %v1298, %v1299
    %v1301 = vrot.slane %v1300, 1
    %v1302 = vadd.f32 %v1300, %v1301
    %v1303 = vsel %vm159, %v1239, 0.0
    %v1304 = vrot.slane %v1303, 4
    %v1305 = vadd.f32 %v1303, %v1304
    %v1306 = vrot.slane %v1305, 2
    %v1307 = vadd.f32 %v1305, %v1306
    %v1308 = vrot.slane %v1307, 1
    %v1309 = vadd.f32 %v1307, %v1308
    %v1310 = vsel %vm159, %v1240, 0.0
    %v1311 = vrot.slane %v1310, 4
    %v1312 = vadd.f32 %v1310, %v1311
    %v1313 = vrot.slane %v1312, 2
    %v1314 = vadd.f32 %v1312, %v1313
    %v1315 = vrot.slane %v1314, 1
    %v1316 = vadd.f32 %v1314, %v1315
    %v1317 = vsel %vm159, %v1241, 0.0
    %v1318 = vrot.slane %v1317, 4
    %v1319 = vadd.f32 %v1317, %v1318
    %v1320 = vrot.slane %v1319, 2
    %v1321 = vadd.f32 %v1319, %v1320
    %v1322 = vrot.slane %v1321, 1
    %v1323 = vadd.f32 %v1321, %v1322
    %v1324 = vsel %vm159, %v1242, 0.0
    %v1325 = vrot.slane %v1324, 4
    %v1326 = vadd.f32 %v1324, %v1325
    %v1327 = vrot.slane %v1326, 2
    %v1328 = vadd.f32 %v1326, %v1327
    %v1329 = vrot.slane %v1328, 1
    %v1330 = vadd.f32 %v1328, %v1329
    %v1331 = vsel %vm159, %v1243, 0.0
    %v1332 = vrot.slane %v1331, 4
    %v1333 = vadd.f32 %v1331, %v1332
    %v1334 = vrot.slane %v1333, 2
    %v1335 = vadd.f32 %v1333, %v1334
    %v1336 = vrot.slane %v1335, 1
    %v1337 = vadd.f32 %v1335, %v1336
    %v1338 = vsel %vm159, %v1244, 0.0
    %v1339 = vrot.slane %v1338, 4
    %v1340 = vadd.f32 %v1338, %v1339
    %v1341 = vrot.slane %v1340, 2
    %v1342 = vadd.f32 %v1340, %v1341
    %v1343 = vrot.slane %v1342, 1
    %v1344 = vadd.f32 %v1342, %v1343
    %v1345 = vsel %vm159, %v1245, 0.0
    %v1346 = vrot.slane %v1345, 4
    %v1347 = vadd.f32 %v1345, %v1346
    %v1348 = vrot.slane %v1347, 2
    %v1349 = vadd.f32 %v1347, %v1348
    %v1350 = vrot.slane %v1349, 1
    %v1351 = vadd.f32 %v1349, %v1350
    %v1352 = vsel %vm159, %v1246, 0.0
    %v1353 = vrot.slane %v1352, 4
    %v1354 = vadd.f32 %v1352, %v1353
    %v1355 = vrot.slane %v1354, 2
    %v1356 = vadd.f32 %v1354, %v1355
    %v1357 = vrot.slane %v1356, 1
    %v1358 = vadd.f32 %v1356, %v1357
    %v1359 = vld [vmem:[#allocation2 + $0x20] sm:$0xff]
    %v1360 = vld [vmem:[#allocation2 + $0x28] sm:$0xff]
    %v1361 = vld [vmem:[#allocation2 + $0x30] sm:$0xff]
    %v1362 = vld [vmem:[#allocation2 + $0x38] sm:$0xff]
    %v1363 = vlaneseq
    %v1364 = vshrl.u32 %v1363, 7
    %v1365 = vsub.s32 1, %v1364
    %v1366 = vrot.slane %v222, %v1365
    %vm1383 = vcmask 1041409
    %v1384 = vsel %vm1383, %v1260, %v1253
    %vm1385 = vcmask 1042434
    %v1386 = vsel %vm1385, %v1267, %v1384
    %vm1387 = vcmask 1043459
    %v1388 = vsel %vm1387, %v1274, %v1386
    %vm1389 = vcmask 1044484
    %v1390 = vsel %vm1389, %v1281, %v1388
    %vm1391 = vcmask 1045509
    %v1392 = vsel %vm1391, %v1288, %v1390
    %vm1393 = vcmask 1046534
    %v1394 = vsel %vm1393, %v1295, %v1392
    %vm1395 = vcmask 1047559
    %v1396 = vsel %vm1395, %v1302, %v1394
    %v1397 = vsel %vm1383, %v1316, %v1309
    %v1398 = vsel %vm1385, %v1323, %v1397
    %v1399 = vsel %vm1387, %v1330, %v1398
    %v1400 = vsel %vm1389, %v1337, %v1399
    %v1401 = vsel %vm1391, %v1344, %v1400
    %v1402 = vsel %vm1393, %v1351, %v1401
    %v1403 = vsel %vm1395, %v1358, %v1402
    %v1404 = vsel %vm159, %v1396, 0
    %v1406 = vsel %vm159, %v1403, 0
    %1408 = vmatprep.subr.mxu0 0.0
    %1409 = vmatpush1.msra.mxu0 %v1359
    %1410 = vmatprep.subr.mxu0 0.0
    %1411 = vmatpush1.msra.mxu0 %v1360
    %1412 = vmatprep.subr.mxu0 0.0
    %1413 = vmatpush1.msra.mxu0 %v1361
    %1414 = vmatprep.subr.mxu0 0.0
    %1415 = vmatpush1.msra.mxu0 %v1362
    %1416 = vmatprep.subr.mxu0 0.0
    %1417 = vmatpush1.msra.mxu0 0.0
    %1418 = vmatprep.subr.mxu0 0.0
    %1419 = vmatpush1.msra.mxu0 0.0
    %1420 = vmatprep.subr.mxu0 0.0
    %1421 = vmatpush1.msra.mxu0 0.0
    %1422 = vmatprep.subr.mxu0 0.0
    %1423 = vmatpush1.msra.mxu0 0.0
    %1424 = vmatprep.subr.mxu0 0.0
    %1425 = vmatpush1.msra.mxu0 0.0
    %1426 = vmatprep.subr.mxu0 0.0
    %1427 = vmatpush1.msra.mxu0 0.0
    %1428 = vmatprep.subr.mxu0 0.0
    %1429 = vmatpush1.msra.mxu0 0.0
    %1430 = vmatprep.subr.mxu0 0.0
    %1431 = vmatpush1.msra.mxu0 0.0
    %1432 = vmatprep.subr.mxu0 0.0
    %1433 = vmatpush1.msra.mxu0 0.0
    %1434 = vmatprep.subr.mxu0 0.0
    %1435 = vmatpush1.msra.mxu0 0.0
    %1436 = vmatprep.subr.mxu0 0.0
    %1437 = vmatpush1.msra.mxu0 0.0
    %1438 = vmatprep.subr.mxu0 0.0
    %1439 = vmatpush1.msra.mxu0 0.0
    %1440 = vmatprep.subr.mxu0 0.0
    %1441 = vmatpush1.msra.mxu0 0.0
    %1442 = vmatprep.subr.mxu0 0.0
    %1443 = vmatpush1.msra.mxu0 0.0
    %1444 = vmatprep.subr.mxu0 0.0
    %1445 = vmatpush1.msra.mxu0 0.0
    %1446 = vmatprep.subr.mxu0 0.0
    %1447 = vmatpush1.msra.mxu0 0.0
    %1448 = vmatprep.subr.mxu0 0.0
    %1449 = vmatpush1.msra.mxu0 0.0
    %1450 = vmatprep.subr.mxu0 0.0
    %1451 = vmatpush1.msra.mxu0 0.0
    %1452 = vmatprep.subr.mxu0 0.0
    %1453 = vmatpush1.msra.mxu0 0.0
    %1454 = vmatprep.subr.mxu0 0.0
    %1455 = vmatpush1.msra.mxu0 0.0
    %1456 = vmatprep.subr.mxu0 0.0
    %1457 = vmatpush1.msra.mxu0 0.0
    %1458 = vmatprep.subr.mxu0 0.0
    %1459 = vmatpush1.msra.mxu0 0.0
    %1460 = vmatprep.subr.mxu0 0.0
    %1461 = vmatpush1.msra.mxu0 0.0
    %1462 = vmatprep.subr.mxu0 0.0
    %1463 = vmatpush1.msra.mxu0 0.0
    %1464 = vmatprep.subr.mxu0 0.0
    %1465 = vmatpush1.msra.mxu0 0.0
    %1466 = vmatprep.subr.mxu0 0.0
    %1467 = vmatpush1.msra.mxu0 0.0
    %1468 = vmatprep.subr.mxu0 0.0
    %1469 = vmatpush1.msra.mxu0 0.0
    %1470 = vmatprep.subr.mxu0 0.0
    %1471 = vmatpush1.msra.mxu0 0.0
    %1472 = vmatprep.mubr.f32.mxu0 0.0
    %1473 = vmatmul.mubr.f32.gmra.mrb[0].mxu0 %v1404
    %v1474 = vpop.f32.mrb[0].mxu0
    %v1475 = vadd.f32 %v1366, %v1474
    %v1476 = vpop.f32.mrb[0].mxu0
    %1477 = vmatprep.mubr.f32.mxu0 0.0
    %1478 = vmatmul.mubr.f32.gmra.mrb[0].mxu0 %v1406
    %v1479 = vpop.f32.mrb[0].mxu0
    %v1480 = vadd.f32 %v1366, %v1479
    %v1481 = vpop.f32.mrb[0].mxu0
    %1482 = vdwg.mxu0
    %v1483 = vadd.f32 %v197, %v1475
    %v1484 = vadd.f32 %v198, %v1480
    %v1485 = vsel %vm159, %v1483, 0.0
    %1486 = vadd.xlane.f32.xlu0 %v1485
    %v1487 = vpop.xlane.xlu0 %1486
    %v1488 = vsel %vm159, %v1484, 0.0
    %1489 = vadd.xlane.f32.xlu0 %v1488
    %v1490 = vpop.xlane.xlu0 %1489
    %v1491 = vmul.f32 %v1487, %v166
    %v1492 = vmul.f32 %v1490, %v166
    %v1493 = vsub.f32 %v1483, %v1491
    %v1494 = vsub.f32 %v1484, %v1492
    %v1495 = vmul.f32 %v1493, %v1493
    %v1496 = vmul.f32 %v1494, %v1494
    %v1497 = vsel %vm159, %v1495, 0.0
    %1498 = vadd.xlane.f32.xlu0 %v1497
    %v1499 = vpop.xlane.xlu0 %1498
    %v1500 = vsel %vm159, %v1496, 0.0
    %1501 = vadd.xlane.f32.xlu0 %v1500
    %v1502 = vpop.xlane.xlu0 %1501
    %v1503 = vmul.f32 %v1499, %v166
    %v1504 = vmul.f32 %v1502, %v166
    %v1505 = vadd.f32 %v1503, 1e-05
    %v1506 = vadd.f32 %v1504, 1e-05
    %v1507 = vrsqrt.pop %v1505
    %v1508 = vrsqrt.pop %v1506
    %v1509 = vmul.f32 %v1493, %v1507
    %v1510 = vmul.f32 %v1494, %v1508
    %v1511 = vlaneseq
    %v1512 = vshrl.u32 %v1511, 7
    %v1513 = vsub.s32 2, %v1512
    %v1514 = vrot.slane %v222, %v1513
    %v1515 = vmul.f32 %v1509, %v1514
    %v1516 = vmul.f32 %v1510, %v1514
    %v1517 = vlaneseq
    %v1518 = vshrl.u32 %v1517, 7
    %v1519 = vsub.s32 3, %v1518
    %v1520 = vrot.slane %v222, %v1519
    %v1521 = vadd.f32 %v1515, %v1520
    %v1522 = vadd.f32 %v1516, %v1520
    %v1523 = vld [vmem:[#allocation2 + $0x40] sm:$0xff]
    %v1524 = vld [vmem:[#allocation2 + $0x48] sm:$0xff]
    %v1525 = vld [vmem:[#allocation2 + $0x50] sm:$0xff]
    %v1526 = vld [vmem:[#allocation2 + $0x58] sm:$0xff]
    %v1527 = vld [vmem:[#allocation2 + $0x60] sm:$0xff]
    %v1528 = vld [vmem:[#allocation2 + $0x68] sm:$0xff]
    %v1529 = vld [vmem:[#allocation2 + $0x70] sm:$0xff]
    %v1530 = vld [vmem:[#allocation2 + $0x78] sm:$0xff]
    %v1531 = vld [vmem:[#allocation2 + $0x80] sm:$0xff]
    %v1532 = vld [vmem:[#allocation2 + $0x88] sm:$0xff]
    %v1533 = vld [vmem:[#allocation2 + $0x90] sm:$0xff]
    %v1534 = vld [vmem:[#allocation2 + $0x98] sm:$0xff]
    %v1535 = vlaneseq
    %v1536 = vshrl.u32 %v1535, 7
    %v1537 = vsub.s32 4, %v1536
    %v1538 = vrot.slane %v222, %v1537
    %v1540 = vsel %vm159, %v1521, 0
    %v1543 = vsel %vm159, %v1522, 0
    %1545 = vmatprep.subr.mxu0 0.0
    %1546 = vmatpush1.msra.mxu0 %v1523
    %1547 = vmatprep.subr.mxu0 0.0
    %1548 = vmatpush1.msra.mxu0 %v1524
    %1549 = vmatprep.subr.mxu0 0.0
    %1550 = vmatpush1.msra.mxu0 %v1525
    %1551 = vmatprep.subr.mxu0 0.0
    %1552 = vmatpush1.msra.mxu0 %v1526
    %1553 = vmatprep.subr.mxu0 0.0
    %1554 = vmatpush1.msra.mxu0 0.0
    %1555 = vmatprep.subr.mxu0 0.0
    %1556 = vmatpush1.msra.mxu0 0.0
    %1557 = vmatprep.subr.mxu0 0.0
    %1558 = vmatpush1.msra.mxu0 0.0
    %1559 = vmatprep.subr.mxu0 0.0
    %1560 = vmatpush1.msra.mxu0 0.0
    %1561 = vmatprep.subr.mxu0 0.0
    %1562 = vmatpush1.msra.mxu0 0.0
    %1563 = vmatprep.subr.mxu0 0.0
    %1564 = vmatpush1.msra.mxu0 0.0
    %1565 = vmatprep.subr.mxu0 0.0
    %1566 = vmatpush1.msra.mxu0 0.0
    %1567 = vmatprep.subr.mxu0 0.0
    %1568 = vmatpush1.msra.mxu0 0.0
    %1569 = vmatprep.subr.mxu0 0.0
    %1570 = vmatpush1.msra.mxu0 0.0
    %1571 = vmatprep.subr.mxu0 0.0
    %1572 = vmatpush1.msra.mxu0 0.0
    %1573 = vmatprep.subr.mxu0 0.0
    %1574 = vmatpush1.msra.mxu0 0.0
    %1575 = vmatprep.subr.mxu0 0.0
    %1576 = vmatpush1.msra.mxu0 0.0
    %1577 = vmatprep.subr.mxu0 0.0
    %1578 = vmatpush1.msra.mxu0 0.0
    %1579 = vmatprep.subr.mxu0 0.0
    %1580 = vmatpush1.msra.mxu0 0.0
    %1581 = vmatprep.subr.mxu0 0.0
    %1582 = vmatpush1.msra.mxu0 0.0
    %1583 = vmatprep.subr.mxu0 0.0
    %1584 = vmatpush1.msra.mxu0 0.0
    %1585 = vmatprep.subr.mxu0 0.0
    %1586 = vmatpush1.msra.mxu0 0.0
    %1587 = vmatprep.subr.mxu0 0.0
    %1588 = vmatpush1.msra.mxu0 0.0
    %1589 = vmatprep.subr.mxu0 0.0
    %1590 = vmatpush1.msra.mxu0 0.0
    %1591 = vmatprep.subr.mxu0 0.0
    %1592 = vmatpush1.msra.mxu0 0.0
    %1593 = vmatprep.subr.mxu0 0.0
    %1594 = vmatpush1.msra.mxu0 0.0
    %1595 = vmatprep.subr.mxu0 0.0
    %1596 = vmatpush1.msra.mxu0 0.0
    %1597 = vmatprep.subr.mxu0 0.0
    %1598 = vmatpush1.msra.mxu0 0.0
    %1599 = vmatprep.subr.mxu0 0.0
    %1600 = vmatpush1.msra.mxu0 0.0
    %1601 = vmatprep.subr.mxu0 0.0
    %1602 = vmatpush1.msra.mxu0 0.0
    %1603 = vmatprep.subr.mxu0 0.0
    %1604 = vmatpush1.msra.mxu0 0.0
    %1605 = vmatprep.subr.mxu0 0.0
    %1606 = vmatpush1.msra.mxu0 0.0
    %1607 = vmatprep.subr.mxu0 0.0
    %1608 = vmatpush1.msra.mxu0 0.0
    %1609 = vmatprep.mubr.f32.mxu0 0.0
    %1610 = vmatmul.mubr.f32.gmra.mrb[0].mxu0 %v1540
    %v1611 = vpop.f32.mrb[0].mxu0
    %v1612 = vadd.f32 %v1538, %v1611
    %v1613 = vpop.f32.mrb[0].mxu0
    %1614 = vmatprep.mubr.f32.mxu0 0.0
    %1615 = vmatmul.mubr.f32.gmra.mrb[0].mxu0 %v1543
    %v1616 = vpop.f32.mrb[0].mxu0
    %v1617 = vadd.f32 %v1538, %v1616
    %v1618 = vpop.f32.mrb[0].mxu0
    %1619 = vdwg.mxu0
    %v1620 = vmul.f32 %v1612, %v1612
    %v1621 = vmul.f32 %v1617, %v1617
    %v1622 = vmul.f32 %v1612, %v1620
    %v1623 = vmul.f32 %v1617, %v1621
    %v1624 = vmul.f32 %v1622, 0.044715
    %v1625 = vmul.f32 %v1623, 0.044715
    %v1626 = vadd.f32 %v1612, %v1624
    %v1627 = vadd.f32 %v1617, %v1625
    %v1628 = vmul.f32 %v1626, 0.7978846
    %v1629 = vmul.f32 %v1627, 0.7978846
    %v1630 = vtanh.pop %v1628
    %v1631 = vtanh.pop %v1629
    %v1632 = vadd.f32 %v1630, 1.0
    %v1633 = vadd.f32 %v1631, 1.0
    %v1634 = vmul.f32 %v1632, 0.5
    %v1635 = vmul.f32 %v1633, 0.5
    %v1636 = vmul.f32 %v1612, %v1634
    %v1637 = vmul.f32 %v1617, %v1635
    %v1638 = vlaneseq
    %v1639 = vshrl.u32 %v1638, 7
    %v1640 = vsub.s32 5, %v1639
    %v1641 = vrot.slane %v222, %v1640
    %v1643 = vsel %vm77, %v1636, 0
    %v1646 = vsel %vm77, %v1637, 0
    %1648 = vmatprep.subr.mxu0 0.0
    %1649 = vmatpush1.msra.mxu0 %v1527
    %1650 = vmatprep.subr.mxu0 0.0
    %1651 = vmatpush1.msra.mxu0 %v1528
    %1652 = vmatprep.subr.mxu0 0.0
    %1653 = vmatpush1.msra.mxu0 %v1529
    %1654 = vmatprep.subr.mxu0 0.0
    %1655 = vmatpush1.msra.mxu0 %v1530
    %1656 = vmatprep.subr.mxu0 0.0
    %1657 = vmatpush1.msra.mxu0 %v1531
    %1658 = vmatprep.subr.mxu0 0.0
    %1659 = vmatpush1.msra.mxu0 %v1532
    %1660 = vmatprep.subr.mxu0 0.0
    %1661 = vmatpush1.msra.mxu0 %v1533
    %1662 = vmatprep.subr.mxu0 0.0
    %1663 = vmatpush1.msra.mxu0 %v1534
    %1664 = vmatprep.subr.mxu0 0.0
    %1665 = vmatpush1.msra.mxu0 0.0
    %1666 = vmatprep.subr.mxu0 0.0
    %1667 = vmatpush1.msra.mxu0 0.0
    %1668 = vmatprep.subr.mxu0 0.0
    %1669 = vmatpush1.msra.mxu0 0.0
    %1670 = vmatprep.subr.mxu0 0.0
    %1671 = vmatpush1.msra.mxu0 0.0
    %1672 = vmatprep.subr.mxu0 0.0
    %1673 = vmatpush1.msra.mxu0 0.0
    %1674 = vmatprep.subr.mxu0 0.0
    %1675 = vmatpush1.msra.mxu0 0.0
    %1676 = vmatprep.subr.mxu0 0.0
    %1677 = vmatpush1.msra.mxu0 0.0
    %1678 = vmatprep.subr.mxu0 0.0
    %1679 = vmatpush1.msra.mxu0 0.0
    %1680 = vmatprep.subr.mxu0 0.0
    %1681 = vmatpush1.msra.mxu0 0.0
    %1682 = vmatprep.subr.mxu0 0.0
    %1683 = vmatpush1.msra.mxu0 0.0
    %1684 = vmatprep.subr.mxu0 0.0
    %1685 = vmatpush1.msra.mxu0 0.0
    %1686 = vmatprep.subr.mxu0 0.0
    %1687 = vmatpush1.msra.mxu0 0.0
    %1688 = vmatprep.subr.mxu0 0.0
    %1689 = vmatpush1.msra.mxu0 0.0
    %1690 = vmatprep.subr.mxu0 0.0
    %1691 = vmatpush1.msra.mxu0 0.0
    %1692 = vmatprep.subr.mxu0 0.0
    %1693 = vmatpush1.msra.mxu0 0.0
    %1694 = vmatprep.subr.mxu0 0.0
    %1695 = vmatpush1.msra.mxu0 0.0
    %1696 = vmatprep.subr.mxu0 0.0
    %1697 = vmatpush1.msra.mxu0 0.0
    %1698 = vmatprep.subr.mxu0 0.0
    %1699 = vmatpush1.msra.mxu0 0.0
    %1700 = vmatprep.subr.mxu0 0.0
    %1701 = vmatpush1.msra.mxu0 0.0
    %1702 = vmatprep.subr.mxu0 0.0
    %1703 = vmatpush1.msra.mxu0 0.0
    %1704 = vmatprep.subr.mxu0 0.0
    %1705 = vmatpush1.msra.mxu0 0.0
    %1706 = vmatprep.subr.mxu0 0.0
    %1707 = vmatpush1.msra.mxu0 0.0
    %1708 = vmatprep.subr.mxu0 0.0
    %1709 = vmatpush1.msra.mxu0 0.0
    %1710 = vmatprep.subr.mxu0 0.0
    %1711 = vmatpush1.msra.mxu0 0.0
    %1712 = vmatprep.mubr.f32.mxu0 0.0
    %1713 = vmatmul.mubr.f32.gmra.mrb[0].mxu0 %v1643
    %v1714 = vpop.f32.mrb[0].mxu0
    %v1715 = vadd.f32 %v1641, %v1714
    %v1716 = vpop.f32.mrb[0].mxu0
    %1717 = vmatprep.mubr.f32.mxu0 0.0
    %1718 = vmatmul.mubr.f32.gmra.mrb[0].mxu0 %v1646
    %v1719 = vpop.f32.mrb[0].mxu0
    %v1720 = vadd.f32 %v1641, %v1719
    %v1721 = vpop.f32.mrb[0].mxu0
    %1722 = vdwg.mxu0
    %v1723 = vadd.f32 %v1521, %v1715
    %v1724 = vadd.f32 %v1522, %v1720
    %v1725 = vsel %vm159, %v1723, 0.0
    %1726 = vadd.xlane.f32.xlu0 %v1725
    %v1727 = vpop.xlane.xlu0 %1726
    %v1728 = vsel %vm159, %v1724, 0.0
    %1729 = vadd.xlane.f32.xlu0 %v1728
    %v1730 = vpop.xlane.xlu0 %1729
    %v1731 = vmul.f32 %v1727, %v166
    %v1732 = vmul.f32 %v1730, %v166
    %v1733 = vsub.f32 %v1723, %v1731
    %v1734 = vsub.f32 %v1724, %v1732
    %v1735 = vmul.f32 %v1733, %v1733
    %v1736 = vmul.f32 %v1734, %v1734
    %v1737 = vsel %vm159, %v1735, 0.0
    %1738 = vadd.xlane.f32.xlu0 %v1737
    %v1739 = vpop.xlane.xlu0 %1738
    %v1740 = vsel %vm159, %v1736, 0.0
    %1741 = vadd.xlane.f32.xlu0 %v1740
    %v1742 = vpop.xlane.xlu0 %1741
    %v1743 = vmul.f32 %v1739, %v166
    %v1744 = vmul.f32 %v1742, %v166
    %v1745 = vadd.f32 %v1743, 1e-05
    %v1746 = vadd.f32 %v1744, 1e-05
    %v1747 = vrsqrt.pop %v1745
    %v1748 = vrsqrt.pop %v1746
    %v1749 = vmul.f32 %v1733, %v1747
    %v1750 = vmul.f32 %v1734, %v1748
    %v1751 = vlaneseq
    %v1752 = vshrl.u32 %v1751, 7
    %v1753 = vsub.s32 6, %v1752
    %v1754 = vrot.slane %v222, %v1753
    %v1755 = vmul.f32 %v1749, %v1754
    %v1756 = vmul.f32 %v1750, %v1754
    %v1757 = vlaneseq
    %v1758 = vshrl.u32 %v1757, 7
    %v1759 = vsub.s32 7, %v1758
    %v1760 = vrot.slane %v222, %v1759
    %v1761 = vadd.f32 %v1755, %v1760
    %v1762 = vadd.f32 %v1756, %v1760
    %s1763 = scalar_lea.vmem [#allocation2], 168
    %v1764 = vld [vmem:[%s1763 + $0xa0] sm:$0xff]
    %v1765 = vld [vmem:[%s1763] sm:$0xff]
    %v1766 = vld [vmem:[%s1763 + $0x8] sm:$0xff]
    %v1767 = vld [vmem:[%s1763 + $0x10] sm:$0xff]
    %v1768 = vld [vmem:[%s1763 + $0x18] sm:$0xff]
    %v1769 = vlaneseq
    %v1770 = vshrl.u32 %v1769, 7
    %v1771 = vsub.s32 0, %v1770
    %v1772 = vrot.slane %v1764, %v1771
    %v1774 = vsel %vm159, %v1761, 0
    %v1777 = vsel %vm159, %v1762, 0
    %1779 = vmatprep.subr.mxu0 0.0
    %1780 = vmatpush1.msra.mxu0 %v1765
    %1781 = vmatprep.subr.mxu0 0.0
    %1782 = vmatpush1.msra.mxu0 %v1766
    %1783 = vmatprep.subr.mxu0 0.0
    %1784 = vmatpush1.msra.mxu0 %v1767
    %1785 = vmatprep.subr.mxu0 0.0
    %1786 = vmatpush1.msra.mxu0 %v1768
    %1787 = vmatprep.subr.mxu0 0.0
    %1788 = vmatpush1.msra.mxu0 0.0
    %1789 = vmatprep.subr.mxu0 0.0
    %1790 = vmatpush1.msra.mxu0 0.0
    %1791 = vmatprep.subr.mxu0 0.0
    %1792 = vmatpush1.msra.mxu0 0.0
    %1793 = vmatprep.subr.mxu0 0.0
    %1794 = vmatpush1.msra.mxu0 0.0
    %1795 = vmatprep.subr.mxu0 0.0
    %1796 = vmatpush1.msra.mxu0 0.0
    %1797 = vmatprep.subr.mxu0 0.0
    %1798 = vmatpush1.msra.mxu0 0.0
    %1799 = vmatprep.subr.mxu0 0.0
    %1800 = vmatpush1.msra.mxu0 0.0
    %1801 = vmatprep.subr.mxu0 0.0
    %1802 = vmatpush1.msra.mxu0 0.0
    %1803 = vmatprep.subr.mxu0 0.0
    %1804 = vmatpush1.msra.mxu0 0.0
    %1805 = vmatprep.subr.mxu0 0.0
    %1806 = vmatpush1.msra.mxu0 0.0
    %1807 = vmatprep.subr.mxu0 0.0
    %1808 = vmatpush1.msra.mxu0 0.0
    %1809 = vmatprep.subr.mxu0 0.0
    %1810 = vmatpush1.msra.mxu0 0.0
    %1811 = vmatprep.subr.mxu0 0.0
    %1812 = vmatpush1.msra.mxu0 0.0
    %1813 = vmatprep.subr.mxu0 0.0
    %1814 = vmatpush1.msra.mxu0 0.0
    %1815 = vmatprep.subr.mxu0 0.0
    %1816 = vmatpush1.msra.mxu0 0.0
    %1817 = vmatprep.subr.mxu0 0.0
    %1818 = vmatpush1.msra.mxu0 0.0
    %1819 = vmatprep.subr.mxu0 0.0
    %1820 = vmatpush1.msra.mxu0 0.0
    %1821 = vmatprep.subr.mxu0 0.0
    %1822 = vmatpush1.msra.mxu0 0.0
    %1823 = vmatprep.subr.mxu0 0.0
    %1824 = vmatpush1.msra.mxu0 0.0
    %1825 = vmatprep.subr.mxu0 0.0
    %1826 = vmatpush1.msra.mxu0 0.0
    %1827 = vmatprep.subr.mxu0 0.0
    %1828 = vmatpush1.msra.mxu0 0.0
    %1829 = vmatprep.subr.mxu0 0.0
    %1830 = vmatpush1.msra.mxu0 0.0
    %1831 = vmatprep.subr.mxu0 0.0
    %1832 = vmatpush1.msra.mxu0 0.0
    %1833 = vmatprep.subr.mxu0 0.0
    %1834 = vmatpush1.msra.mxu0 0.0
    %1835 = vmatprep.subr.mxu0 0.0
    %1836 = vmatpush1.msra.mxu0 0.0
    %1837 = vmatprep.subr.mxu0 0.0
    %1838 = vmatpush1.msra.mxu0 0.0
    %1839 = vmatprep.subr.mxu0 0.0
    %1840 = vmatpush1.msra.mxu0 0.0
    %1841 = vmatprep.subr.mxu0 0.0
    %1842 = vmatpush1.msra.mxu0 0.0
    %1843 = vmatprep.mubr.f32.mxu0 0.0
    %1844 = vmatmul.mubr.f32.gmra.mrb[0].mxu0 %v1774
    %v1845 = vpop.f32.mrb[0].mxu0
    %v1846 = vadd.f32 %v1772, %v1845
    %v1847 = vpop.f32.mrb[0].mxu0
    %1848 = vmatprep.mubr.f32.mxu0 0.0
    %1849 = vmatmul.mubr.f32.gmra.mrb[0].mxu0 %v1777
    %v1850 = vpop.f32.mrb[0].mxu0
    %v1851 = vadd.f32 %v1772, %v1850
    %v1852 = vpop.f32.mrb[0].mxu0
    %1853 = vdwg.mxu0
    %v1856 = vcombine.high %v1846, %v1846
    %v1858 = vunpack.c.l.s4 1966171168
    %v1859 = vunpack.c.0.s8 %v1858
    %v1860 = vlaneseq
    %v1861 = vshrl.u32 %v1860, 7
    %v1862 = vsub.s32 %v1859, %v1861
    %v1863 = vrot.slane %v1846, %v1862
    %v1865 = vunpack.c.l.s4 1966171168
    %v1866 = vunpack.c.0.s8 %v1865
    %v1867 = vlaneseq
    %v1868 = vshrl.u32 %v1867, 7
    %v1869 = vsub.s32 %v1866, %v1868
    %v1870 = vrot.slane %v1856, %v1869
    %v1871 = vcombine.high %v1863, %v1863
    %v1872 = vcombine.high %v1870, %v1870
    %v1874 = vunpack.c.l.s4 1966171168
    %v1875 = vunpack.c.0.s8 %v1874
    %v1876 = vlaneseq
    %v1877 = vshrl.u32 %v1876, 7
    %v1878 = vsub.s32 %v1875, %v1877
    %v1879 = vrot.slane %v1863, %v1878
    %v1881 = vunpack.c.l.s4 1966171168
    %v1882 = vunpack.c.0.s8 %v1881
    %v1883 = vlaneseq
    %v1884 = vshrl.u32 %v1883, 7
    %v1885 = vsub.s32 %v1882, %v1884
    %v1886 = vrot.slane %v1870, %v1885
    %v1888 = vunpack.c.l.s4 1966171168
    %v1889 = vunpack.c.0.s8 %v1888
    %v1890 = vlaneseq
    %v1891 = vshrl.u32 %v1890, 7
    %v1892 = vsub.s32 %v1889, %v1891
    %v1893 = vrot.slane %v1871, %v1892
    %v1895 = vunpack.c.l.s4 1966171168
    %v1896 = vunpack.c.0.s8 %v1895
    %v1897 = vlaneseq
    %v1898 = vshrl.u32 %v1897, 7
    %v1899 = vsub.s32 %v1896, %v1898
    %v1900 = vrot.slane %v1872, %v1899
    %v1901 = vcombine.high %v1879, %v1879
    %v1902 = vcombine.high %v1886, %v1886
    %v1903 = vcombine.high %v1893, %v1893
    %v1904 = vcombine.high %v1900, %v1900
    %v1905 = vcombine.high %v1851, %v1851
    %v1907 = vunpack.c.l.s4 1966171168
    %v1908 = vunpack.c.0.s8 %v1907
    %v1909 = vlaneseq
    %v1910 = vshrl.u32 %v1909, 7
    %v1911 = vsub.s32 %v1908, %v1910
    %v1912 = vrot.slane %v1851, %v1911
    %v1914 = vunpack.c.l.s4 1966171168
    %v1915 = vunpack.c.0.s8 %v1914
    %v1916 = vlaneseq
    %v1917 = vshrl.u32 %v1916, 7
    %v1918 = vsub.s32 %v1915, %v1917
    %v1919 = vrot.slane %v1905, %v1918
    %v1920 = vcombine.high %v1912, %v1912
    %v1921 = vcombine.high %v1919, %v1919
    %v1923 = vunpack.c.l.s4 1966171168
    %v1924 = vunpack.c.0.s8 %v1923
    %v1925 = vlaneseq
    %v1926 = vshrl.u32 %v1925, 7
    %v1927 = vsub.s32 %v1924, %v1926
    %v1928 = vrot.slane %v1912, %v1927
    %v1930 = vunpack.c.l.s4 1966171168
    %v1931 = vunpack.c.0.s8 %v1930
    %v1932 = vlaneseq
    %v1933 = vshrl.u32 %v1932, 7
    %v1934 = vsub.s32 %v1931, %v1933
    %v1935 = vrot.slane %v1919, %v1934
    %v1937 = vunpack.c.l.s4 1966171168
    %v1938 = vunpack.c.0.s8 %v1937
    %v1939 = vlaneseq
    %v1940 = vshrl.u32 %v1939, 7
    %v1941 = vsub.s32 %v1938, %v1940
    %v1942 = vrot.slane %v1920, %v1941
    %v1944 = vunpack.c.l.s4 1966171168
    %v1945 = vunpack.c.0.s8 %v1944
    %v1946 = vlaneseq
    %v1947 = vshrl.u32 %v1946, 7
    %v1948 = vsub.s32 %v1945, %v1947
    %v1949 = vrot.slane %v1921, %v1948
    %v1950 = vcombine.high %v1928, %v1928
    %v1951 = vcombine.high %v1935, %v1935
    %v1952 = vcombine.high %v1942, %v1942
    %v1953 = vcombine.high %v1949, %v1949
    %v1954 = vlaneseq
    %v1955 = vshrl.u32 %v1954, 7
    %v1956 = vsub.s32 0, %v1955
    %v1957 = vrot.slane %v1879, %v1956
    %v1958 = vlaneseq
    %v1959 = vshrl.u32 %v1958, 7
    %v1960 = vsub.s32 0, %v1959
    %v1961 = vrot.slane %v1893, %v1960
    %v1962 = vlaneseq
    %v1963 = vshrl.u32 %v1962, 7
    %v1964 = vsub.s32 0, %v1963
    %v1965 = vrot.slane %v1901, %v1964
    %v1966 = vlaneseq
    %v1967 = vshrl.u32 %v1966, 7
    %v1968 = vsub.s32 0, %v1967
    %v1969 = vrot.slane %v1903, %v1968
    %v1970 = vlaneseq
    %v1971 = vshrl.u32 %v1970, 7
    %v1972 = vsub.s32 0, %v1971
    %v1973 = vrot.slane %v1886, %v1972
    %v1974 = vlaneseq
    %v1975 = vshrl.u32 %v1974, 7
    %v1976 = vsub.s32 0, %v1975
    %v1977 = vrot.slane %v1900, %v1976
    %v1978 = vlaneseq
    %v1979 = vshrl.u32 %v1978, 7
    %v1980 = vsub.s32 0, %v1979
    %v1981 = vrot.slane %v1902, %v1980
    %v1982 = vlaneseq
    %v1983 = vshrl.u32 %v1982, 7
    %v1984 = vsub.s32 0, %v1983
    %v1985 = vrot.slane %v1904, %v1984
    %v1986 = vlaneseq
    %v1987 = vshrl.u32 %v1986, 7
    %v1988 = vsub.s32 0, %v1987
    %v1989 = vrot.slane %v1928, %v1988
    %v1990 = vlaneseq
    %v1991 = vshrl.u32 %v1990, 7
    %v1992 = vsub.s32 0, %v1991
    %v1993 = vrot.slane %v1942, %v1992
    %v1994 = vlaneseq
    %v1995 = vshrl.u32 %v1994, 7
    %v1996 = vsub.s32 0, %v1995
    %v1997 = vrot.slane %v1950, %v1996
    %v1998 = vlaneseq
    %v1999 = vshrl.u32 %v1998, 7
    %v2000 = vsub.s32 0, %v1999
    %v2001 = vrot.slane %v1952, %v2000
    %v2002 = vlaneseq
    %v2003 = vshrl.u32 %v2002, 7
    %v2004 = vsub.s32 0, %v2003
    %v2005 = vrot.slane %v1935, %v2004
    %v2006 = vlaneseq
    %v2007 = vshrl.u32 %v2006, 7
    %v2008 = vsub.s32 0, %v2007
    %v2009 = vrot.slane %v1949, %v2008
    %v2010 = vlaneseq
    %v2011 = vshrl.u32 %v2010, 7
    %v2012 = vsub.s32 0, %v2011
    %v2013 = vrot.slane %v1951, %v2012
    %v2014 = vlaneseq
    %v2015 = vshrl.u32 %v2014, 7
    %v2016 = vsub.s32 0, %v2015
    %v2017 = vrot.slane %v1953, %v2016
    %2034 = vrot.lane.b32.xlu0 %v1846, 96
    %v2035 = vpop.permute.xlu0 %2034
    %2036 = vrot.lane.b32.xlu0 %v1851, 96
    %v2037 = vpop.permute.xlu0 %2036
    %v2040 = vmul.f32 %v1957, %v2035
    %v2041 = vmul.f32 %v1961, %v2035
    %v2042 = vmul.f32 %v1965, %v2035
    %v2043 = vmul.f32 %v1969, %v2035
    %v2044 = vmul.f32 %v1973, %v2035
    %v2045 = vmul.f32 %v1977, %v2035
    %v2046 = vmul.f32 %v1981, %v2035
    %v2047 = vmul.f32 %v1985, %v2035
    %v2048 = vmul.f32 %v1989, %v2037
    %v2049 = vmul.f32 %v1993, %v2037
    %v2050 = vmul.f32 %v1997, %v2037
    %v2051 = vmul.f32 %v2001, %v2037
    %v2052 = vmul.f32 %v2005, %v2037
    %v2053 = vmul.f32 %v2009, %v2037
    %v2054 = vmul.f32 %v2013, %v2037
    %v2055 = vmul.f32 %v2017, %v2037
    %v2057 = vsel %vm159, %v2040, 0
    %v2060 = vsel %vm159, %v2041, 0
    %v2063 = vsel %vm159, %v2042, 0
    %v2066 = vsel %vm159, %v2043, 0
    %v2069 = vsel %vm159, %v2044, 0
    %v2072 = vsel %vm159, %v2045, 0
    %v2075 = vsel %vm159, %v2046, 0
    %v2078 = vsel %vm159, %v2047, 0
    %v2081 = vsel %vm159, %v2048, 0
    %v2084 = vsel %vm159, %v2049, 0
    %v2087 = vsel %vm159, %v2050, 0
    %v2090 = vsel %vm159, %v2051, 0
    %v2093 = vsel %vm159, %v2052, 0
    %v2096 = vsel %vm159, %v2053, 0
    %v2099 = vsel %vm159, %v2054, 0
    %v2102 = vsel %vm159, %v2055, 0
    %2104 = vmatprep.subr.mxu0 0.0
    %2105 = vmatpush1.msra.mxu0 %v217
    %2106 = vmatprep.subr.mxu0 0.0
    %2107 = vmatpush1.msra.mxu0 %v218
    %2108 = vmatprep.subr.mxu0 0.0
    %2109 = vmatpush1.msra.mxu0 %v219
    %2110 = vmatprep.subr.mxu0 0.0
    %2111 = vmatpush1.msra.mxu0 %v220
    %2112 = vmatprep.subr.mxu0 0.0
    %2113 = vmatpush1.msra.mxu0 0.0
    %2114 = vmatprep.subr.mxu0 0.0
    %2115 = vmatpush1.msra.mxu0 0.0
    %2116 = vmatprep.subr.mxu0 0.0
    %2117 = vmatpush1.msra.mxu0 0.0
    %2118 = vmatprep.subr.mxu0 0.0
    %2119 = vmatpush1.msra.mxu0 0.0
    %2120 = vmatprep.subr.mxu0 0.0
    %2121 = vmatpush1.msra.mxu0 0.0
    %2122 = vmatprep.subr.mxu0 0.0
    %2123 = vmatpush1.msra.mxu0 0.0
    %2124 = vmatprep.subr.mxu0 0.0
    %2125 = vmatpush1.msra.mxu0 0.0
    %2126 = vmatprep.subr.mxu0 0.0
    %2127 = vmatpush1.msra.mxu0 0.0
    %2128 = vmatprep.subr.mxu0 0.0
    %2129 = vmatpush1.msra.mxu0 0.0
    %2130 = vmatprep.subr.mxu0 0.0
    %2131 = vmatpush1.msra.mxu0 0.0
    %2132 = vmatprep.subr.mxu0 0.0
    %2133 = vmatpush1.msra.mxu0 0.0
    %2134 = vmatprep.subr.mxu0 0.0
    %2135 = vmatpush1.msra.mxu0 0.0
    %2136 = vmatprep.subr.mxu0 0.0
    %2137 = vmatpush1.msra.mxu0 0.0
    %2138 = vmatprep.subr.mxu0 0.0
    %2139 = vmatpush1.msra.mxu0 0.0
    %2140 = vmatprep.subr.mxu0 0.0
    %2141 = vmatpush1.msra.mxu0 0.0
    %2142 = vmatprep.subr.mxu0 0.0
    %2143 = vmatpush1.msra.mxu0 0.0
    %2144 = vmatprep.subr.mxu0 0.0
    %2145 = vmatpush1.msra.mxu0 0.0
    %2146 = vmatprep.subr.mxu0 0.0
    %2147 = vmatpush1.msra.mxu0 0.0
    %2148 = vmatprep.subr.mxu0 0.0
    %2149 = vmatpush1.msra.mxu0 0.0
    %2150 = vmatprep.subr.mxu0 0.0
    %2151 = vmatpush1.msra.mxu0 0.0
    %2152 = vmatprep.subr.mxu0 0.0
    %2153 = vmatpush1.msra.mxu0 0.0
    %2154 = vmatprep.subr.mxu0 0.0
    %2155 = vmatpush1.msra.mxu0 0.0
    %2156 = vmatprep.subr.mxu0 0.0
    %2157 = vmatpush1.msra.mxu0 0.0
    %2158 = vmatprep.subr.mxu0 0.0
    %2159 = vmatpush1.msra.mxu0 0.0
    %2160 = vmatprep.subr.mxu0 0.0
    %2161 = vmatpush1.msra.mxu0 0.0
    %2162 = vmatprep.subr.mxu0 0.0
    %2163 = vmatpush1.msra.mxu0 0.0
    %2164 = vmatprep.subr.mxu0 0.0
    %2165 = vmatpush1.msra.mxu0 0.0
    %2166 = vmatprep.subr.mxu0 0.0
    %2167 = vmatpush1.msra.mxu0 0.0
    %2168 = vmatprep.mubr.f32.mxu0 0.0
    %2169 = vmatmul.mubr.f32.gmra.mrb[0].mxu0 %v2057
    %v2170 = vpop.f32.mrb[0].mxu0
    %v2171 = vadd.f32 0.0, %v2170
    %v2172 = vpop.f32.mrb[0].mxu0
    %2173 = vmatprep.mubr.f32.mxu0 0.0
    %2174 = vmatmul.mubr.f32.gmra.mrb[0].mxu0 %v2060
    %v2175 = vpop.f32.mrb[0].mxu0
    %v2176 = vadd.f32 0.0, %v2175
    %v2177 = vpop.f32.mrb[0].mxu0
    %2178 = vmatprep.mubr.f32.mxu0 0.0
    %2179 = vmatmul.mubr.f32.gmra.mrb[0].mxu0 %v2063
    %v2180 = vpop.f32.mrb[0].mxu0
    %v2181 = vadd.f32 0.0, %v2180
    %v2182 = vpop.f32.mrb[0].mxu0
    %2183 = vmatprep.mubr.f32.mxu0 0.0
    %2184 = vmatmul.mubr.f32.gmra.mrb[0].mxu0 %v2066
    %v2185 = vpop.f32.mrb[0].mxu0
    %v2186 = vadd.f32 0.0, %v2185
    %v2187 = vpop.f32.mrb[0].mxu0
    %2188 = vmatprep.mubr.f32.mxu0 0.0
    %2189 = vmatmul.mubr.f32.gmra.mrb[0].mxu0 %v2069
    %v2190 = vpop.f32.mrb[0].mxu0
    %v2191 = vadd.f32 0.0, %v2190
    %v2192 = vpop.f32.mrb[0].mxu0
    %2193 = vmatprep.mubr.f32.mxu0 0.0
    %2194 = vmatmul.mubr.f32.gmra.mrb[0].mxu0 %v2072
    %v2195 = vpop.f32.mrb[0].mxu0
    %v2196 = vadd.f32 0.0, %v2195
    %v2197 = vpop.f32.mrb[0].mxu0
    %2198 = vmatprep.mubr.f32.mxu0 0.0
    %2199 = vmatmul.mubr.f32.gmra.mrb[0].mxu0 %v2075
    %v2200 = vpop.f32.mrb[0].mxu0
    %v2201 = vadd.f32 0.0, %v2200
    %v2202 = vpop.f32.mrb[0].mxu0
    %2203 = vmatprep.mubr.f32.mxu0 0.0
    %2204 = vmatmul.mubr.f32.gmra.mrb[0].mxu0 %v2078
    %v2205 = vpop.f32.mrb[0].mxu0
    %v2206 = vadd.f32 0.0, %v2205
    %v2207 = vpop.f32.mrb[0].mxu0
    %2208 = vmatprep.mubr.f32.mxu0 0.0
    %2209 = vmatmul.mubr.f32.gmra.mrb[0].mxu0 %v2081
    %v2210 = vpop.f32.mrb[0].mxu0
    %v2211 = vadd.f32 0.0, %v2210
    %v2212 = vpop.f32.mrb[0].mxu0
    %2213 = vmatprep.mubr.f32.mxu0 0.0
    %2214 = vmatmul.mubr.f32.gmra.mrb[0].mxu0 %v2084
    %v2215 = vpop.f32.mrb[0].mxu0
    %v2216 = vadd.f32 0.0, %v2215
    %v2217 = vpop.f32.mrb[0].mxu0
    %2218 = vmatprep.mubr.f32.mxu0 0.0
    %2219 = vmatmul.mubr.f32.gmra.mrb[0].mxu0 %v2087
    %v2220 = vpop.f32.mrb[0].mxu0
    %v2221 = vadd.f32 0.0, %v2220
    %v2222 = vpop.f32.mrb[0].mxu0
    %2223 = vmatprep.mubr.f32.mxu0 0.0
    %2224 = vmatmul.mubr.f32.gmra.mrb[0].mxu0 %v2090
    %v2225 = vpop.f32.mrb[0].mxu0
    %v2226 = vadd.f32 0.0, %v2225
    %v2227 = vpop.f32.mrb[0].mxu0
    %2228 = vmatprep.mubr.f32.mxu0 0.0
    %2229 = vmatmul.mubr.f32.gmra.mrb[0].mxu0 %v2093
    %v2230 = vpop.f32.mrb[0].mxu0
    %v2231 = vadd.f32 0.0, %v2230
    %v2232 = vpop.f32.mrb[0].mxu0
    %2233 = vmatprep.mubr.f32.mxu0 0.0
    %2234 = vmatmul.mubr.f32.gmra.mrb[0].mxu0 %v2096
    %v2235 = vpop.f32.mrb[0].mxu0
    %v2236 = vadd.f32 0.0, %v2235
    %v2237 = vpop.f32.mrb[0].mxu0
    %2238 = vmatprep.mubr.f32.mxu0 0.0
    %2239 = vmatmul.mubr.f32.gmra.mrb[0].mxu0 %v2099
    %v2240 = vpop.f32.mrb[0].mxu0
    %v2241 = vadd.f32 0.0, %v2240
    %v2242 = vpop.f32.mrb[0].mxu0
    %2243 = vmatprep.mubr.f32.mxu0 0.0
    %2244 = vmatmul.mubr.f32.gmra.mrb[0].mxu0 %v2102
    %v2245 = vpop.f32.mrb[0].mxu0
    %v2246 = vadd.f32 0.0, %v2245
    %v2247 = vpop.f32.mrb[0].mxu0
    %2248 = vdwg.mxu0
    %v2249 = vadd.f32 %v2171, %v210
    %v2250 = vadd.f32 %v2176, %v210
    %v2251 = vadd.f32 %v2181, %v210
    %v2252 = vadd.f32 %v2186, %v210
    %v2253 = vadd.f32 %v2191, %v210
    %v2254 = vadd.f32 %v2196, %v210
    %v2255 = vadd.f32 %v2201, %v210
    %v2256 = vadd.f32 %v2206, %v210
    %v2257 = vadd.f32 %v2211, %v215
    %v2258 = vadd.f32 %v2216, %v215
    %v2259 = vadd.f32 %v2221, %v215
    %v2260 = vadd.f32 %v2226, %v215
    %v2261 = vadd.f32 %v2231, %v215
    %v2262 = vadd.f32 %v2236, %v215
    %v2263 = vadd.f32 %v2241, %v215
    %v2264 = vadd.f32 %v2246, %v215
    %v2265 = vsel %vm723, %v2249, -inf
    %v2266 = vrot.slane %v2265, 4
    %v2267 = vmax.f32 %v2265, %v2266
    %v2268 = vrot.slane %v2267, 2
    %v2269 = vmax.f32 %v2267, %v2268
    %v2270 = vrot.slane %v2269, 1
    %v2271 = vmax.f32 %v2269, %v2270
    %v2272 = vsel %vm723, %v2250, -inf
    %v2273 = vrot.slane %v2272, 4
    %v2274 = vmax.f32 %v2272, %v2273
    %v2275 = vrot.slane %v2274, 2
    %v2276 = vmax.f32 %v2274, %v2275
    %v2277 = vrot.slane %v2276, 1
    %v2278 = vmax.f32 %v2276, %v2277
    %v2279 = vsel %vm723, %v2251, -inf
    %v2280 = vrot.slane %v2279, 4
    %v2281 = vmax.f32 %v2279, %v2280
    %v2282 = vrot.slane %v2281, 2
    %v2283 = vmax.f32 %v2281, %v2282
    %v2284 = vrot.slane %v2283, 1
    %v2285 = vmax.f32 %v2283, %v2284
    %v2286 = vsel %vm723, %v2252, -inf
    %v2287 = vrot.slane %v2286, 4
    %v2288 = vmax.f32 %v2286, %v2287
    %v2289 = vrot.slane %v2288, 2
    %v2290 = vmax.f32 %v2288, %v2289
    %v2291 = vrot.slane %v2290, 1
    %v2292 = vmax.f32 %v2290, %v2291
    %v2293 = vsel %vm723, %v2253, -inf
    %v2294 = vrot.slane %v2293, 4
    %v2295 = vmax.f32 %v2293, %v2294
    %v2296 = vrot.slane %v2295, 2
    %v2297 = vmax.f32 %v2295, %v2296
    %v2298 = vrot.slane %v2297, 1
    %v2299 = vmax.f32 %v2297, %v2298
    %v2300 = vsel %vm723, %v2254, -inf
    %v2301 = vrot.slane %v2300, 4
    %v2302 = vmax.f32 %v2300, %v2301
    %v2303 = vrot.slane %v2302, 2
    %v2304 = vmax.f32 %v2302, %v2303
    %v2305 = vrot.slane %v2304, 1
    %v2306 = vmax.f32 %v2304, %v2305
    %v2307 = vsel %vm723, %v2255, -inf
    %v2308 = vrot.slane %v2307, 4
    %v2309 = vmax.f32 %v2307, %v2308
    %v2310 = vrot.slane %v2309, 2
    %v2311 = vmax.f32 %v2309, %v2310
    %v2312 = vrot.slane %v2311, 1
    %v2313 = vmax.f32 %v2311, %v2312
    %v2314 = vsel %vm723, %v2256, -inf
    %v2315 = vrot.slane %v2314, 4
    %v2316 = vmax.f32 %v2314, %v2315
    %v2317 = vrot.slane %v2316, 2
    %v2318 = vmax.f32 %v2316, %v2317
    %v2319 = vrot.slane %v2318, 1
    %v2320 = vmax.f32 %v2318, %v2319
    %v2321 = vsel %vm723, %v2257, -inf
    %v2322 = vrot.slane %v2321, 4
    %v2323 = vmax.f32 %v2321, %v2322
    %v2324 = vrot.slane %v2323, 2
    %v2325 = vmax.f32 %v2323, %v2324
    %v2326 = vrot.slane %v2325, 1
    %v2327 = vmax.f32 %v2325, %v2326
    %v2328 = vsel %vm723, %v2258, -inf
    %v2329 = vrot.slane %v2328, 4
    %v2330 = vmax.f32 %v2328, %v2329
    %v2331 = vrot.slane %v2330, 2
    %v2332 = vmax.f32 %v2330, %v2331
    %v2333 = vrot.slane %v2332, 1
    %v2334 = vmax.f32 %v2332, %v2333
    %v2335 = vsel %vm723, %v2259, -inf
    %v2336 = vrot.slane %v2335, 4
    %v2337 = vmax.f32 %v2335, %v2336
    %v2338 = vrot.slane %v2337, 2
    %v2339 = vmax.f32 %v2337, %v2338
    %v2340 = vrot.slane %v2339, 1
    %v2341 = vmax.f32 %v2339, %v2340
    %v2342 = vsel %vm723, %v2260, -inf
    %v2343 = vrot.slane %v2342, 4
    %v2344 = vmax.f32 %v2342, %v2343
    %v2345 = vrot.slane %v2344, 2
    %v2346 = vmax.f32 %v2344, %v2345
    %v2347 = vrot.slane %v2346, 1
    %v2348 = vmax.f32 %v2346, %v2347
    %v2349 = vsel %vm723, %v2261, -inf
    %v2350 = vrot.slane %v2349, 4
    %v2351 = vmax.f32 %v2349, %v2350
    %v2352 = vrot.slane %v2351, 2
    %v2353 = vmax.f32 %v2351, %v2352
    %v2354 = vrot.slane %v2353, 1
    %v2355 = vmax.f32 %v2353, %v2354
    %v2356 = vsel %vm723, %v2262, -inf
    %v2357 = vrot.slane %v2356, 4
    %v2358 = vmax.f32 %v2356, %v2357
    %v2359 = vrot.slane %v2358, 2
    %v2360 = vmax.f32 %v2358, %v2359
    %v2361 = vrot.slane %v2360, 1
    %v2362 = vmax.f32 %v2360, %v2361
    %v2363 = vsel %vm723, %v2263, -inf
    %v2364 = vrot.slane %v2363, 4
    %v2365 = vmax.f32 %v2363, %v2364
    %v2366 = vrot.slane %v2365, 2
    %v2367 = vmax.f32 %v2365, %v2366
    %v2368 = vrot.slane %v2367, 1
    %v2369 = vmax.f32 %v2367, %v2368
    %v2370 = vsel %vm723, %v2264, -inf
    %v2371 = vrot.slane %v2370, 4
    %v2372 = vmax.f32 %v2370, %v2371
    %v2373 = vrot.slane %v2372, 2
    %v2374 = vmax.f32 %v2372, %v2373
    %v2375 = vrot.slane %v2374, 1
    %v2376 = vmax.f32 %v2374, %v2375
    %v2377 = vsub.f32 %v2249, %v2271
    %v2378 = vsub.f32 %v2250, %v2278
    %v2379 = vsub.f32 %v2251, %v2285
    %v2380 = vsub.f32 %v2252, %v2292
    %v2381 = vsub.f32 %v2253, %v2299
    %v2382 = vsub.f32 %v2254, %v2306
    %v2383 = vsub.f32 %v2255, %v2313
    %v2384 = vsub.f32 %v2256, %v2320
    %v2385 = vsub.f32 %v2257, %v2327
    %v2386 = vsub.f32 %v2258, %v2334
    %v2387 = vsub.f32 %v2259, %v2341
    %v2388 = vsub.f32 %v2260, %v2348
    %v2389 = vsub.f32 %v2261, %v2355
    %v2390 = vsub.f32 %v2262, %v2362
    %v2391 = vsub.f32 %v2263, %v2369
    %v2392 = vsub.f32 %v2264, %v2376
    %v2393 = vmul.f32 %v2377, 1.442695
    %v2394 = vpow.pop %v2393
    %v2395 = vmul.f32 %v2378, 1.442695
    %v2396 = vpow.pop %v2395
    %v2397 = vmul.f32 %v2379, 1.442695
    %v2398 = vpow.pop %v2397
    %v2399 = vmul.f32 %v2380, 1.442695
    %v2400 = vpow.pop %v2399
    %v2401 = vmul.f32 %v2381, 1.442695
    %v2402 = vpow.pop %v2401
    %v2403 = vmul.f32 %v2382, 1.442695
    %v2404 = vpow.pop %v2403
    %v2405 = vmul.f32 %v2383, 1.442695
    %v2406 = vpow.pop %v2405
    %v2407 = vmul.f32 %v2384, 1.442695
    %v2408 = vpow.pop %v2407
    %v2409 = vmul.f32 %v2385, 1.442695
    %v2410 = vpow.pop %v2409
    %v2411 = vmul.f32 %v2386, 1.442695
    %v2412 = vpow.pop %v2411
    %v2413 = vmul.f32 %v2387, 1.442695
    %v2414 = vpow.pop %v2413
    %v2415 = vmul.f32 %v2388, 1.442695
    %v2416 = vpow.pop %v2415
    %v2417 = vmul.f32 %v2389, 1.442695
    %v2418 = vpow.pop %v2417
    %v2419 = vmul.f32 %v2390, 1.442695
    %v2420 = vpow.pop %v2419
    %v2421 = vmul.f32 %v2391, 1.442695
    %v2422 = vpow.pop %v2421
    %v2423 = vmul.f32 %v2392, 1.442695
    %v2424 = vpow.pop %v2423
    %v2425 = vsel %vm723, %v2394, 0.0
    %v2426 = vrot.slane %v2425, 4
    %v2427 = vadd.f32 %v2425, %v2426
    %v2428 = vrot.slane %v2427, 2
    %v2429 = vadd.f32 %v2427, %v2428
    %v2430 = vrot.slane %v2429, 1
    %v2431 = vadd.f32 %v2429, %v2430
    %v2432 = vsel %vm723, %v2396, 0.0
    %v2433 = vrot.slane %v2432, 4
    %v2434 = vadd.f32 %v2432, %v2433
    %v2435 = vrot.slane %v2434, 2
    %v2436 = vadd.f32 %v2434, %v2435
    %v2437 = vrot.slane %v2436, 1
    %v2438 = vadd.f32 %v2436, %v2437
    %v2439 = vsel %vm723, %v2398, 0.0
    %v2440 = vrot.slane %v2439, 4
    %v2441 = vadd.f32 %v2439, %v2440
    %v2442 = vrot.slane %v2441, 2
    %v2443 = vadd.f32 %v2441, %v2442
    %v2444 = vrot.slane %v2443, 1
    %v2445 = vadd.f32 %v2443, %v2444
    %v2446 = vsel %vm723, %v2400, 0.0
    %v2447 = vrot.slane %v2446, 4
    %v2448 = vadd.f32 %v2446, %v2447
    %v2449 = vrot.slane %v2448, 2
    %v2450 = vadd.f32 %v2448, %v2449
    %v2451 = vrot.slane %v2450, 1
    %v2452 = vadd.f32 %v2450, %v2451
    %v2453 = vsel %vm723, %v2402, 0.0
    %v2454 = vrot.slane %v2453, 4
    %v2455 = vadd.f32 %v2453, %v2454
    %v2456 = vrot.slane %v2455, 2
    %v2457 = vadd.f32 %v2455, %v2456
    %v2458 = vrot.slane %v2457, 1
    %v2459 = vadd.f32 %v2457, %v2458
    %v2460 = vsel %vm723, %v2404, 0.0
    %v2461 = vrot.slane %v2460, 4
    %v2462 = vadd.f32 %v2460, %v2461
    %v2463 = vrot.slane %v2462, 2
    %v2464 = vadd.f32 %v2462, %v2463
    %v2465 = vrot.slane %v2464, 1
    %v2466 = vadd.f32 %v2464, %v2465
    %v2467 = vsel %vm723, %v2406, 0.0
    %v2468 = vrot.slane %v2467, 4
    %v2469 = vadd.f32 %v2467, %v2468
    %v2470 = vrot.slane %v2469, 2
    %v2471 = vadd.f32 %v2469, %v2470
    %v2472 = vrot.slane %v2471, 1
    %v2473 = vadd.f32 %v2471, %v2472
    %v2474 = vsel %vm723, %v2408, 0.0
    %v2475 = vrot.slane %v2474, 4
    %v2476 = vadd.f32 %v2474, %v2475
    %v2477 = vrot.slane %v2476, 2
    %v2478 = vadd.f32 %v2476, %v2477
    %v2479 = vrot.slane %v2478, 1
    %v2480 = vadd.f32 %v2478, %v2479
    %v2481 = vsel %vm723, %v2410, 0.0
    %v2482 = vrot.slane %v2481, 4
    %v2483 = vadd.f32 %v2481, %v2482
    %v2484 = vrot.slane %v2483, 2
    %v2485 = vadd.f32 %v2483, %v2484
    %v2486 = vrot.slane %v2485, 1
    %v2487 = vadd.f32 %v2485, %v2486
    %v2488 = vsel %vm723, %v2412, 0.0
    %v2489 = vrot.slane %v2488, 4
    %v2490 = vadd.f32 %v2488, %v2489
    %v2491 = vrot.slane %v2490, 2
    %v2492 = vadd.f32 %v2490, %v2491
    %v2493 = vrot.slane %v2492, 1
    %v2494 = vadd.f32 %v2492, %v2493
    %v2495 = vsel %vm723, %v2414, 0.0
    %v2496 = vrot.slane %v2495, 4
    %v2497 = vadd.f32 %v2495, %v2496
    %v2498 = vrot.slane %v2497, 2
    %v2499 = vadd.f32 %v2497, %v2498
    %v2500 = vrot.slane %v2499, 1
    %v2501 = vadd.f32 %v2499, %v2500
    %v2502 = vsel %vm723, %v2416, 0.0
    %v2503 = vrot.slane %v2502, 4
    %v2504 = vadd.f32 %v2502, %v2503
    %v2505 = vrot.slane %v2504, 2
    %v2506 = vadd.f32 %v2504, %v2505
    %v2507 = vrot.slane %v2506, 1
    %v2508 = vadd.f32 %v2506, %v2507
    %v2509 = vsel %vm723, %v2418, 0.0
    %v2510 = vrot.slane %v2509, 4
    %v2511 = vadd.f32 %v2509, %v2510
    %v2512 = vrot.slane %v2511, 2
    %v2513 = vadd.f32 %v2511, %v2512
    %v2514 = vrot.slane %v2513, 1
    %v2515 = vadd.f32 %v2513, %v2514
    %v2516 = vsel %vm723, %v2420, 0.0
    %v2517 = vrot.slane %v2516, 4
    %v2518 = vadd.f32 %v2516, %v2517
    %v2519 = vrot.slane %v2518, 2
    %v2520 = vadd.f32 %v2518, %v2519
    %v2521 = vrot.slane %v2520, 1
    %v2522 = vadd.f32 %v2520, %v2521
    %v2523 = vsel %vm723, %v2422, 0.0
    %v2524 = vrot.slane %v2523, 4
    %v2525 = vadd.f32 %v2523, %v2524
    %v2526 = vrot.slane %v2525, 2
    %v2527 = vadd.f32 %v2525, %v2526
    %v2528 = vrot.slane %v2527, 1
    %v2529 = vadd.f32 %v2527, %v2528
    %v2530 = vsel %vm723, %v2424, 0.0
    %v2531 = vrot.slane %v2530, 4
    %v2532 = vadd.f32 %v2530, %v2531
    %v2533 = vrot.slane %v2532, 2
    %v2534 = vadd.f32 %v2532, %v2533
    %v2535 = vrot.slane %v2534, 1
    %v2536 = vadd.f32 %v2534, %v2535
    %v2537 = vrcp.pop %v2431
    %v2538 = vrcp.pop %v2438
    %v2539 = vrcp.pop %v2445
    %v2540 = vrcp.pop %v2452
    %v2541 = vrcp.pop %v2459
    %v2542 = vrcp.pop %v2466
    %v2543 = vrcp.pop %v2473
    %v2544 = vrcp.pop %v2480
    %v2545 = vrcp.pop %v2487
    %v2546 = vrcp.pop %v2494
    %v2547 = vrcp.pop %v2501
    %v2548 = vrcp.pop %v2508
    %v2549 = vrcp.pop %v2515
    %v2550 = vrcp.pop %v2522
    %v2551 = vrcp.pop %v2529
    %v2552 = vrcp.pop %v2536
    %v2553 = vmul.f32 %v2394, %v2537
    %v2554 = vmul.f32 %v2396, %v2538
    %v2555 = vmul.f32 %v2398, %v2539
    %v2556 = vmul.f32 %v2400, %v2540
    %v2557 = vmul.f32 %v2402, %v2541
    %v2558 = vmul.f32 %v2404, %v2542
    %v2559 = vmul.f32 %v2406, %v2543
    %v2560 = vmul.f32 %v2408, %v2544
    %v2561 = vmul.f32 %v2410, %v2545
    %v2562 = vmul.f32 %v2412, %v2546
    %v2563 = vmul.f32 %v2414, %v2547
    %v2564 = vmul.f32 %v2416, %v2548
    %v2565 = vmul.f32 %v2418, %v2549
    %v2566 = vmul.f32 %v2420, %v2550
    %v2567 = vmul.f32 %v2422, %v2551
    %v2568 = vmul.f32 %v2424, %v2552
    %v2570 = vsel %vm723, %v2553, 0
    %v2573 = vsel %vm723, %v2554, 0
    %v2576 = vsel %vm723, %v2555, 0
    %v2579 = vsel %vm723, %v2556, 0
    %v2582 = vsel %vm723, %v2557, 0
    %v2585 = vsel %vm723, %v2558, 0
    %v2588 = vsel %vm723, %v2559, 0
    %v2591 = vsel %vm723, %v2560, 0
    %v2594 = vsel %vm723, %v2561, 0
    %v2597 = vsel %vm723, %v2562, 0
    %v2600 = vsel %vm723, %v2563, 0
    %v2603 = vsel %vm723, %v2564, 0
    %v2606 = vsel %vm723, %v2565, 0
    %v2609 = vsel %vm723, %v2566, 0
    %v2612 = vsel %vm723, %v2567, 0
    %v2615 = vsel %vm723, %v2568, 0
    %2617 = vmatprep.subr.mxu0 0.0
    %2618 = vmatpush1.msra.mxu0 %v1078
    %2619 = vmatprep.subr.mxu0 0.0
    %2620 = vmatpush1.msra.mxu0 0.0
    %2621 = vmatprep.subr.mxu0 0.0
    %2622 = vmatpush1.msra.mxu0 0.0
    %2623 = vmatprep.subr.mxu0 0.0
    %2624 = vmatpush1.msra.mxu0 0.0
    %2625 = vmatprep.subr.mxu0 0.0
    %2626 = vmatpush1.msra.mxu0 0.0
    %2627 = vmatprep.subr.mxu0 0.0
    %2628 = vmatpush1.msra.mxu0 0.0
    %2629 = vmatprep.subr.mxu0 0.0
    %2630 = vmatpush1.msra.mxu0 0.0
    %2631 = vmatprep.subr.mxu0 0.0
    %2632 = vmatpush1.msra.mxu0 0.0
    %2633 = vmatprep.subr.mxu0 0.0
    %2634 = vmatpush1.msra.mxu0 0.0
    %2635 = vmatprep.subr.mxu0 0.0
    %2636 = vmatpush1.msra.mxu0 0.0
    %2637 = vmatprep.subr.mxu0 0.0
    %2638 = vmatpush1.msra.mxu0 0.0
    %2639 = vmatprep.subr.mxu0 0.0
    %2640 = vmatpush1.msra.mxu0 0.0
    %2641 = vmatprep.subr.mxu0 0.0
    %2642 = vmatpush1.msra.mxu0 0.0
    %2643 = vmatprep.subr.mxu0 0.0
    %2644 = vmatpush1.msra.mxu0 0.0
    %2645 = vmatprep.subr.mxu0 0.0
    %2646 = vmatpush1.msra.mxu0 0.0
    %2647 = vmatprep.subr.mxu0 0.0
    %2648 = vmatpush1.msra.mxu0 0.0
    %2649 = vmatprep.subr.mxu0 0.0
    %2650 = vmatpush1.msra.mxu0 0.0
    %2651 = vmatprep.subr.mxu0 0.0
    %2652 = vmatpush1.msra.mxu0 0.0
    %2653 = vmatprep.subr.mxu0 0.0
    %2654 = vmatpush1.msra.mxu0 0.0
    %2655 = vmatprep.subr.mxu0 0.0
    %2656 = vmatpush1.msra.mxu0 0.0
    %2657 = vmatprep.subr.mxu0 0.0
    %2658 = vmatpush1.msra.mxu0 0.0
    %2659 = vmatprep.subr.mxu0 0.0
    %2660 = vmatpush1.msra.mxu0 0.0
    %2661 = vmatprep.subr.mxu0 0.0
    %2662 = vmatpush1.msra.mxu0 0.0
    %2663 = vmatprep.subr.mxu0 0.0
    %2664 = vmatpush1.msra.mxu0 0.0
    %2665 = vmatprep.subr.mxu0 0.0
    %2666 = vmatpush1.msra.mxu0 0.0
    %2667 = vmatprep.subr.mxu0 0.0
    %2668 = vmatpush1.msra.mxu0 0.0
    %2669 = vmatprep.subr.mxu0 0.0
    %2670 = vmatpush1.msra.mxu0 0.0
    %2671 = vmatprep.subr.mxu0 0.0
    %2672 = vmatpush1.msra.mxu0 0.0
    %2673 = vmatprep.subr.mxu0 0.0
    %2674 = vmatpush1.msra.mxu0 0.0
    %2675 = vmatprep.subr.mxu0 0.0
    %2676 = vmatpush1.msra.mxu0 0.0
    %2677 = vmatprep.subr.mxu0 0.0
    %2678 = vmatpush1.msra.mxu0 0.0
    %2679 = vmatprep.subr.mxu0 0.0
    %2680 = vmatpush1.msra.mxu0 0.0
    %2681 = vmatprep.mubr.f32.mxu0 0.0
    %2682 = vmatmul.mubr.f32.gmra.mrb[0].mxu0 %v2570
    %v2683 = vpop.f32.mrb[0].mxu0
    %v2684 = vadd.f32 0.0, %v2683
    %v2685 = vpop.f32.mrb[0].mxu0
    %2686 = vmatprep.mubr.f32.mxu0 0.0
    %2687 = vmatmul.mubr.f32.gmra.mrb[0].mxu0 %v2573
    %v2688 = vpop.f32.mrb[0].mxu0
    %v2689 = vadd.f32 0.0, %v2688
    %v2690 = vpop.f32.mrb[0].mxu0
    %2691 = vmatprep.mubr.f32.mxu0 0.0
    %2692 = vmatmul.mubr.f32.gmra.mrb[0].mxu0 %v2576
    %v2693 = vpop.f32.mrb[0].mxu0
    %v2694 = vadd.f32 0.0, %v2693
    %v2695 = vpop.f32.mrb[0].mxu0
    %2696 = vmatprep.mubr.f32.mxu0 0.0
    %2697 = vmatmul.mubr.f32.gmra.mrb[0].mxu0 %v2579
    %v2698 = vpop.f32.mrb[0].mxu0
    %v2699 = vadd.f32 0.0, %v2698
    %v2700 = vpop.f32.mrb[0].mxu0
    %2701 = vmatprep.mubr.f32.mxu0 0.0
    %2702 = vmatmul.mubr.f32.gmra.mrb[0].mxu0 %v2582
    %v2703 = vpop.f32.mrb[0].mxu0
    %v2704 = vadd.f32 0.0, %v2703
    %v2705 = vpop.f32.mrb[0].mxu0
    %2706 = vmatprep.mubr.f32.mxu0 0.0
    %2707 = vmatmul.mubr.f32.gmra.mrb[0].mxu0 %v2585
    %v2708 = vpop.f32.mrb[0].mxu0
    %v2709 = vadd.f32 0.0, %v2708
    %v2710 = vpop.f32.mrb[0].mxu0
    %2711 = vmatprep.mubr.f32.mxu0 0.0
    %2712 = vmatmul.mubr.f32.gmra.mrb[0].mxu0 %v2588
    %v2713 = vpop.f32.mrb[0].mxu0
    %v2714 = vadd.f32 0.0, %v2713
    %v2715 = vpop.f32.mrb[0].mxu0
    %2716 = vmatprep.mubr.f32.mxu0 0.0
    %2717 = vmatmul.mubr.f32.gmra.mrb[0].mxu0 %v2591
    %v2718 = vpop.f32.mrb[0].mxu0
    %v2719 = vadd.f32 0.0, %v2718
    %v2720 = vpop.f32.mrb[0].mxu0
    %2721 = vmatprep.mubr.f32.mxu0 0.0
    %2722 = vmatmul.mubr.f32.gmra.mrb[0].mxu0 %v2594
    %v2723 = vpop.f32.mrb[0].mxu0
    %v2724 = vadd.f32 0.0, %v2723
    %v2725 = vpop.f32.mrb[0].mxu0
    %2726 = vmatprep.mubr.f32.mxu0 0.0
    %2727 = vmatmul.mubr.f32.gmra.mrb[0].mxu0 %v2597
    %v2728 = vpop.f32.mrb[0].mxu0
    %v2729 = vadd.f32 0.0, %v2728
    %v2730 = vpop.f32.mrb[0].mxu0
    %2731 = vmatprep.mubr.f32.mxu0 0.0
    %2732 = vmatmul.mubr.f32.gmra.mrb[0].mxu0 %v2600
    %v2733 = vpop.f32.mrb[0].mxu0
    %v2734 = vadd.f32 0.0, %v2733
    %v2735 = vpop.f32.mrb[0].mxu0
    %2736 = vmatprep.mubr.f32.mxu0 0.0
    %2737 = vmatmul.mubr.f32.gmra.mrb[0].mxu0 %v2603
    %v2738 = vpop.f32.mrb[0].mxu0
    %v2739 = vadd.f32 0.0, %v2738
    %v2740 = vpop.f32.mrb[0].mxu0
    %2741 = vmatprep.mubr.f32.mxu0 0.0
    %2742 = vmatmul.mubr.f32.gmra.mrb[0].mxu0 %v2606
    %v2743 = vpop.f32.mrb[0].mxu0
    %v2744 = vadd.f32 0.0, %v2743
    %v2745 = vpop.f32.mrb[0].mxu0
    %2746 = vmatprep.mubr.f32.mxu0 0.0
    %2747 = vmatmul.mubr.f32.gmra.mrb[0].mxu0 %v2609
    %v2748 = vpop.f32.mrb[0].mxu0
    %v2749 = vadd.f32 0.0, %v2748
    %v2750 = vpop.f32.mrb[0].mxu0
    %2751 = vmatprep.mubr.f32.mxu0 0.0
    %2752 = vmatmul.mubr.f32.gmra.mrb[0].mxu0 %v2612
    %v2753 = vpop.f32.mrb[0].mxu0
    %v2754 = vadd.f32 0.0, %v2753
    %v2755 = vpop.f32.mrb[0].mxu0
    %2756 = vmatprep.mubr.f32.mxu0 0.0
    %2757 = vmatmul.mubr.f32.gmra.mrb[0].mxu0 %v2615
    %v2758 = vpop.f32.mrb[0].mxu0
    %v2759 = vadd.f32 0.0, %v2758
    %v2760 = vpop.f32.mrb[0].mxu0
    %2761 = vdwg.mxu0
    %2762 = vrot.lane.b32.xlu0 %v1846, 64
    %v2763 = vpop.permute.xlu0 %2762
    %2764 = vrot.lane.b32.xlu0 %v1851, 64
    %v2765 = vpop.permute.xlu0 %2764
    %v2768 = vmul.f32 %v2684, %v2763
    %v2769 = vmul.f32 %v2689, %v2763
    %v2770 = vmul.f32 %v2694, %v2763
    %v2771 = vmul.f32 %v2699, %v2763
    %v2772 = vmul.f32 %v2704, %v2763
    %v2773 = vmul.f32 %v2709, %v2763
    %v2774 = vmul.f32 %v2714, %v2763
    %v2775 = vmul.f32 %v2719, %v2763
    %v2776 = vmul.f32 %v2724, %v2765
    %v2777 = vmul.f32 %v2729, %v2765
    %v2778 = vmul.f32 %v2734, %v2765
    %v2779 = vmul.f32 %v2739, %v2765
    %v2780 = vmul.f32 %v2744, %v2765
    %v2781 = vmul.f32 %v2749, %v2765
    %v2782 = vmul.f32 %v2754, %v2765
    %v2783 = vmul.f32 %v2759, %v2765
    %v2784 = vsel %vm159, %v2768, 0.0
    %v2785 = vrot.slane %v2784, 4
    %v2786 = vadd.f32 %v2784, %v2785
    %v2787 = vrot.slane %v2786, 2
    %v2788 = vadd.f32 %v2786, %v2787
    %v2789 = vrot.slane %v2788, 1
    %v2790 = vadd.f32 %v2788, %v2789
    %v2791 = vsel %vm159, %v2769, 0.0
    %v2792 = vrot.slane %v2791, 4
    %v2793 = vadd.f32 %v2791, %v2792
    %v2794 = vrot.slane %v2793, 2
    %v2795 = vadd.f32 %v2793, %v2794
    %v2796 = vrot.slane %v2795, 1
    %v2797 = vadd.f32 %v2795, %v2796
    %v2798 = vsel %vm159, %v2770, 0.0
    %v2799 = vrot.slane %v2798, 4
    %v2800 = vadd.f32 %v2798, %v2799
    %v2801 = vrot.slane %v2800, 2
    %v2802 = vadd.f32 %v2800, %v2801
    %v2803 = vrot.slane %v2802, 1
    %v2804 = vadd.f32 %v2802, %v2803
    %v2805 = vsel %vm159, %v2771, 0.0
    %v2806 = vrot.slane %v2805, 4
    %v2807 = vadd.f32 %v2805, %v2806
    %v2808 = vrot.slane %v2807, 2
    %v2809 = vadd.f32 %v2807, %v2808
    %v2810 = vrot.slane %v2809, 1
    %v2811 = vadd.f32 %v2809, %v2810
    %v2812 = vsel %vm159, %v2772, 0.0
    %v2813 = vrot.slane %v2812, 4
    %v2814 = vadd.f32 %v2812, %v2813
    %v2815 = vrot.slane %v2814, 2
    %v2816 = vadd.f32 %v2814, %v2815
    %v2817 = vrot.slane %v2816, 1
    %v2818 = vadd.f32 %v2816, %v2817
    %v2819 = vsel %vm159, %v2773, 0.0
    %v2820 = vrot.slane %v2819, 4
    %v2821 = vadd.f32 %v2819, %v2820
    %v2822 = vrot.slane %v2821, 2
    %v2823 = vadd.f32 %v2821, %v2822
    %v2824 = vrot.slane %v2823, 1
    %v2825 = vadd.f32 %v2823, %v2824
    %v2826 = vsel %vm159, %v2774, 0.0
    %v2827 = vrot.slane %v2826, 4
    %v2828 = vadd.f32 %v2826, %v2827
    %v2829 = vrot.slane %v2828, 2
    %v2830 = vadd.f32 %v2828, %v2829
    %v2831 = vrot.slane %v2830, 1
    %v2832 = vadd.f32 %v2830, %v2831
    %v2833 = vsel %vm159, %v2775, 0.0
    %v2834 = vrot.slane %v2833, 4
    %v2835 = vadd.f32 %v2833, %v2834
    %v2836 = vrot.slane %v2835, 2
    %v2837 = vadd.f32 %v2835, %v2836
    %v2838 = vrot.slane %v2837, 1
    %v2839 = vadd.f32 %v2837, %v2838
    %v2840 = vsel %vm159, %v2776, 0.0
    %v2841 = vrot.slane %v2840, 4
    %v2842 = vadd.f32 %v2840, %v2841
    %v2843 = vrot.slane %v2842, 2
    %v2844 = vadd.f32 %v2842, %v2843
    %v2845 = vrot.slane %v2844, 1
    %v2846 = vadd.f32 %v2844, %v2845
    %v2847 = vsel %vm159, %v2777, 0.0
    %v2848 = vrot.slane %v2847, 4
    %v2849 = vadd.f32 %v2847, %v2848
    %v2850 = vrot.slane %v2849, 2
    %v2851 = vadd.f32 %v2849, %v2850
    %v2852 = vrot.slane %v2851, 1
    %v2853 = vadd.f32 %v2851, %v2852
    %v2854 = vsel %vm159, %v2778, 0.0
    %v2855 = vrot.slane %v2854, 4
    %v2856 = vadd.f32 %v2854, %v2855
    %v2857 = vrot.slane %v2856, 2
    %v2858 = vadd.f32 %v2856, %v2857
    %v2859 = vrot.slane %v2858, 1
    %v2860 = vadd.f32 %v2858, %v2859
    %v2861 = vsel %vm159, %v2779, 0.0
    %v2862 = vrot.slane %v2861, 4
    %v2863 = vadd.f32 %v2861, %v2862
    %v2864 = vrot.slane %v2863, 2
    %v2865 = vadd.f32 %v2863, %v2864
    %v2866 = vrot.slane %v2865, 1
    %v2867 = vadd.f32 %v2865, %v2866
    %v2868 = vsel %vm159, %v2780, 0.0
    %v2869 = vrot.slane %v2868, 4
    %v2870 = vadd.f32 %v2868, %v2869
    %v2871 = vrot.slane %v2870, 2
    %v2872 = vadd.f32 %v2870, %v2871
    %v2873 = vrot.slane %v2872, 1
    %v2874 = vadd.f32 %v2872, %v2873
    %v2875 = vsel %vm159, %v2781, 0.0
    %v2876 = vrot.slane %v2875, 4
    %v2877 = vadd.f32 %v2875, %v2876
    %v2878 = vrot.slane %v2877, 2
    %v2879 = vadd.f32 %v2877, %v2878
    %v2880 = vrot.slane %v2879, 1
    %v2881 = vadd.f32 %v2879, %v2880
    %v2882 = vsel %vm159, %v2782, 0.0
    %v2883 = vrot.slane %v2882, 4
    %v2884 = vadd.f32 %v2882, %v2883
    %v2885 = vrot.slane %v2884, 2
    %v2886 = vadd.f32 %v2884, %v2885
    %v2887 = vrot.slane %v2886, 1
    %v2888 = vadd.f32 %v2886, %v2887
    %v2889 = vsel %vm159, %v2783, 0.0
    %v2890 = vrot.slane %v2889, 4
    %v2891 = vadd.f32 %v2889, %v2890
    %v2892 = vrot.slane %v2891, 2
    %v2893 = vadd.f32 %v2891, %v2892
    %v2894 = vrot.slane %v2893, 1
    %v2895 = vadd.f32 %v2893, %v2894
    %v2896 = vld [vmem:[%s1763 + $0x20] sm:$0xff]
    %v2897 = vld [vmem:[%s1763 + $0x28] sm:$0xff]
    %v2898 = vld [vmem:[%s1763 + $0x30] sm:$0xff]
    %v2899 = vld [vmem:[%s1763 + $0x38] sm:$0xff]
    %v2900 = vlaneseq
    %v2901 = vshrl.u32 %v2900, 7
    %v2902 = vsub.s32 1, %v2901
    %v2903 = vrot.slane %v1764, %v2902
    %v2920 = vsel %vm1383, %v2797, %v2790
    %v2921 = vsel %vm1385, %v2804, %v2920
    %v2922 = vsel %vm1387, %v2811, %v2921
    %v2923 = vsel %vm1389, %v2818, %v2922
    %v2924 = vsel %vm1391, %v2825, %v2923
    %v2925 = vsel %vm1393, %v2832, %v2924
    %v2926 = vsel %vm1395, %v2839, %v2925
    %v2927 = vsel %vm1383, %v2853, %v2846
    %v2928 = vsel %vm1385, %v2860, %v2927
    %v2929 = vsel %vm1387, %v2867, %v2928
    %v2930 = vsel %vm1389, %v2874, %v2929
    %v2931 = vsel %vm1391, %v2881, %v2930
    %v2932 = vsel %vm1393, %v2888, %v2931
    %v2933 = vsel %vm1395, %v2895, %v2932
    %v2934 = vsel %vm159, %v2926, 0
    %v2936 = vsel %vm159, %v2933, 0
    %2938 = vmatprep.subr.mxu0 0.0
    %2939 = vmatpush1.msra.mxu0 %v2896
    %2940 = vmatprep.subr.mxu0 0.0
    %2941 = vmatpush1.msra.mxu0 %v2897
    %2942 = vmatprep.subr.mxu0 0.0
    %2943 = vmatpush1.msra.mxu0 %v2898
    %2944 = vmatprep.subr.mxu0 0.0
    %2945 = vmatpush1.msra.mxu0 %v2899
    %2946 = vmatprep.subr.mxu0 0.0
    %2947 = vmatpush1.msra.mxu0 0.0
    %2948 = vmatprep.subr.mxu0 0.0
    %2949 = vmatpush1.msra.mxu0 0.0
    %2950 = vmatprep.subr.mxu0 0.0
    %2951 = vmatpush1.msra.mxu0 0.0
    %2952 = vmatprep.subr.mxu0 0.0
    %2953 = vmatpush1.msra.mxu0 0.0
    %2954 = vmatprep.subr.mxu0 0.0
    %2955 = vmatpush1.msra.mxu0 0.0
    %2956 = vmatprep.subr.mxu0 0.0
    %2957 = vmatpush1.msra.mxu0 0.0
    %2958 = vmatprep.subr.mxu0 0.0
    %2959 = vmatpush1.msra.mxu0 0.0
    %2960 = vmatprep.subr.mxu0 0.0
    %2961 = vmatpush1.msra.mxu0 0.0
    %2962 = vmatprep.subr.mxu0 0.0
    %2963 = vmatpush1.msra.mxu0 0.0
    %2964 = vmatprep.subr.mxu0 0.0
    %2965 = vmatpush1.msra.mxu0 0.0
    %2966 = vmatprep.subr.mxu0 0.0
    %2967 = vmatpush1.msra.mxu0 0.0
    %2968 = vmatprep.subr.mxu0 0.0
    %2969 = vmatpush1.msra.mxu0 0.0
    %2970 = vmatprep.subr.mxu0 0.0
    %2971 = vmatpush1.msra.mxu0 0.0
    %2972 = vmatprep.subr.mxu0 0.0
    %2973 = vmatpush1.msra.mxu0 0.0
    %2974 = vmatprep.subr.mxu0 0.0
    %2975 = vmatpush1.msra.mxu0 0.0
    %2976 = vmatprep.subr.mxu0 0.0
    %2977 = vmatpush1.msra.mxu0 0.0
    %2978 = vmatprep.subr.mxu0 0.0
    %2979 = vmatpush1.msra.mxu0 0.0
    %2980 = vmatprep.subr.mxu0 0.0
    %2981 = vmatpush1.msra.mxu0 0.0
    %2982 = vmatprep.subr.mxu0 0.0
    %2983 = vmatpush1.msra.mxu0 0.0
    %2984 = vmatprep.subr.mxu0 0.0
    %2985 = vmatpush1.msra.mxu0 0.0
    %2986 = vmatprep.subr.mxu0 0.0
    %2987 = vmatpush1.msra.mxu0 0.0
    %2988 = vmatprep.subr.mxu0 0.0
    %2989 = vmatpush1.msra.mxu0 0.0
    %2990 = vmatprep.subr.mxu0 0.0
    %2991 = vmatpush1.msra.mxu0 0.0
    %2992 = vmatprep.subr.mxu0 0.0
    %2993 = vmatpush1.msra.mxu0 0.0
    %2994 = vmatprep.subr.mxu0 0.0
    %2995 = vmatpush1.msra.mxu0 0.0
    %2996 = vmatprep.subr.mxu0 0.0
    %2997 = vmatpush1.msra.mxu0 0.0
    %2998 = vmatprep.subr.mxu0 0.0
    %2999 = vmatpush1.msra.mxu0 0.0
    %3000 = vmatprep.subr.mxu0 0.0
    %3001 = vmatpush1.msra.mxu0 0.0
    %3002 = vmatprep.mubr.f32.mxu0 0.0
    %3003 = vmatmul.mubr.f32.gmra.mrb[0].mxu0 %v2934
    %v3004 = vpop.f32.mrb[0].mxu0
    %v3005 = vadd.f32 %v2903, %v3004
    %v3006 = vpop.f32.mrb[0].mxu0
    %3007 = vmatprep.mubr.f32.mxu0 0.0
    %3008 = vmatmul.mubr.f32.gmra.mrb[0].mxu0 %v2936
    %v3009 = vpop.f32.mrb[0].mxu0
    %v3010 = vadd.f32 %v2903, %v3009
    %v3011 = vpop.f32.mrb[0].mxu0
    %3012 = vdwg.mxu0
    %v3013 = vadd.f32 %v1761, %v3005
    %v3014 = vadd.f32 %v1762, %v3010
    %v3015 = vsel %vm159, %v3013, 0.0
    %3016 = vadd.xlane.f32.xlu0 %v3015
    %v3017 = vpop.xlane.xlu0 %3016
    %v3018 = vsel %vm159, %v3014, 0.0
    %3019 = vadd.xlane.f32.xlu0 %v3018
    %v3020 = vpop.xlane.xlu0 %3019
    %v3021 = vmul.f32 %v3017, %v166
    %v3022 = vmul.f32 %v3020, %v166
    %v3023 = vsub.f32 %v3013, %v3021
    %v3024 = vsub.f32 %v3014, %v3022
    %v3025 = vmul.f32 %v3023, %v3023
    %v3026 = vmul.f32 %v3024, %v3024
    %v3027 = vsel %vm159, %v3025, 0.0
    %3028 = vadd.xlane.f32.xlu0 %v3027
    %v3029 = vpop.xlane.xlu0 %3028
    %v3030 = vsel %vm159, %v3026, 0.0
    %3031 = vadd.xlane.f32.xlu0 %v3030
    %v3032 = vpop.xlane.xlu0 %3031
    %v3033 = vmul.f32 %v3029, %v166
    %v3034 = vmul.f32 %v3032, %v166
    %v3035 = vadd.f32 %v3033, 1e-05
    %v3036 = vadd.f32 %v3034, 1e-05
    %v3037 = vrsqrt.pop %v3035
    %v3038 = vrsqrt.pop %v3036
    %v3039 = vmul.f32 %v3023, %v3037
    %v3040 = vmul.f32 %v3024, %v3038
    %v3041 = vlaneseq
    %v3042 = vshrl.u32 %v3041, 7
    %v3043 = vsub.s32 2, %v3042
    %v3044 = vrot.slane %v1764, %v3043
    %v3045 = vmul.f32 %v3039, %v3044
    %v3046 = vmul.f32 %v3040, %v3044
    %v3047 = vlaneseq
    %v3048 = vshrl.u32 %v3047, 7
    %v3049 = vsub.s32 3, %v3048
    %v3050 = vrot.slane %v1764, %v3049
    %v3051 = vadd.f32 %v3045, %v3050
    %v3052 = vadd.f32 %v3046, %v3050
    %v3053 = vld [vmem:[%s1763 + $0x40] sm:$0xff]
    %v3054 = vld [vmem:[%s1763 + $0x48] sm:$0xff]
    %v3055 = vld [vmem:[%s1763 + $0x50] sm:$0xff]
    %v3056 = vld [vmem:[%s1763 + $0x58] sm:$0xff]
    %v3057 = vld [vmem:[%s1763 + $0x60] sm:$0xff]
    %v3058 = vld [vmem:[%s1763 + $0x68] sm:$0xff]
    %v3059 = vld [vmem:[%s1763 + $0x70] sm:$0xff]
    %v3060 = vld [vmem:[%s1763 + $0x78] sm:$0xff]
    %v3061 = vld [vmem:[%s1763 + $0x80] sm:$0xff]
    %v3062 = vld [vmem:[%s1763 + $0x88] sm:$0xff]
    %v3063 = vld [vmem:[%s1763 + $0x90] sm:$0xff]
    %v3064 = vld [vmem:[%s1763 + $0x98] sm:$0xff]
    %v3065 = vlaneseq
    %v3066 = vshrl.u32 %v3065, 7
    %v3067 = vsub.s32 4, %v3066
    %v3068 = vrot.slane %v1764, %v3067
    %v3070 = vsel %vm159, %v3051, 0
    %v3073 = vsel %vm159, %v3052, 0
    %3075 = vmatprep.subr.mxu0 0.0
    %3076 = vmatpush1.msra.mxu0 %v3053
    %3077 = vmatprep.subr.mxu0 0.0
    %3078 = vmatpush1.msra.mxu0 %v3054
    %3079 = vmatprep.subr.mxu0 0.0
    %3080 = vmatpush1.msra.mxu0 %v3055
    %3081 = vmatprep.subr.mxu0 0.0
    %3082 = vmatpush1.msra.mxu0 %v3056
    %3083 = vmatprep.subr.mxu0 0.0
    %3084 = vmatpush1.msra.mxu0 0.0
    %3085 = vmatprep.subr.mxu0 0.0
    %3086 = vmatpush1.msra.mxu0 0.0
    %3087 = vmatprep.subr.mxu0 0.0
    %3088 = vmatpush1.msra.mxu0 0.0
    %3089 = vmatprep.subr.mxu0 0.0
    %3090 = vmatpush1.msra.mxu0 0.0
    %3091 = vmatprep.subr.mxu0 0.0
    %3092 = vmatpush1.msra.mxu0 0.0
    %3093 = vmatprep.subr.mxu0 0.0
    %3094 = vmatpush1.msra.mxu0 0.0
    %3095 = vmatprep.subr.mxu0 0.0
    %3096 = vmatpush1.msra.mxu0 0.0
    %3097 = vmatprep.subr.mxu0 0.0
    %3098 = vmatpush1.msra.mxu0 0.0
    %3099 = vmatprep.subr.mxu0 0.0
    %3100 = vmatpush1.msra.mxu0 0.0
    %3101 = vmatprep.subr.mxu0 0.0
    %3102 = vmatpush1.msra.mxu0 0.0
    %3103 = vmatprep.subr.mxu0 0.0
    %3104 = vmatpush1.msra.mxu0 0.0
    %3105 = vmatprep.subr.mxu0 0.0
    %3106 = vmatpush1.msra.mxu0 0.0
    %3107 = vmatprep.subr.mxu0 0.0
    %3108 = vmatpush1.msra.mxu0 0.0
    %3109 = vmatprep.subr.mxu0 0.0
    %3110 = vmatpush1.msra.mxu0 0.0
    %3111 = vmatprep.subr.mxu0 0.0
    %3112 = vmatpush1.msra.mxu0 0.0
    %3113 = vmatprep.subr.mxu0 0.0
    %3114 = vmatpush1.msra.mxu0 0.0
    %3115 = vmatprep.subr.mxu0 0.0
    %3116 = vmatpush1.msra.mxu0 0.0
    %3117 = vmatprep.subr.mxu0 0.0
    %3118 = vmatpush1.msra.mxu0 0.0
    %3119 = vmatprep.subr.mxu0 0.0
    %3120 = vmatpush1.msra.mxu0 0.0
    %3121 = vmatprep.subr.mxu0 0.0
    %3122 = vmatpush1.msra.mxu0 0.0
    %3123 = vmatprep.subr.mxu0 0.0
    %3124 = vmatpush1.msra.mxu0 0.0
    %3125 = vmatprep.subr.mxu0 0.0
    %3126 = vmatpush1.msra.mxu0 0.0
    %3127 = vmatprep.subr.mxu0 0.0
    %3128 = vmatpush1.msra.mxu0 0.0
    %3129 = vmatprep.subr.mxu0 0.0
    %3130 = vmatpush1.msra.mxu0 0.0
    %3131 = vmatprep.subr.mxu0 0.0
    %3132 = vmatpush1.msra.mxu0 0.0
    %3133 = vmatprep.subr.mxu0 0.0
    %3134 = vmatpush1.msra.mxu0 0.0
    %3135 = vmatprep.subr.mxu0 0.0
    %3136 = vmatpush1.msra.mxu0 0.0
    %3137 = vmatprep.subr.mxu0 0.0
    %3138 = vmatpush1.msra.mxu0 0.0
    %3139 = vmatprep.mubr.f32.mxu0 0.0
    %3140 = vmatmul.mubr.f32.gmra.mrb[0].mxu0 %v3070
    %v3141 = vpop.f32.mrb[0].mxu0
    %v3142 = vadd.f32 %v3068, %v3141
    %v3143 = vpop.f32.mrb[0].mxu0
    %3144 = vmatprep.mubr.f32.mxu0 0.0
    %3145 = vmatmul.mubr.f32.gmra.mrb[0].mxu0 %v3073
    %v3146 = vpop.f32.mrb[0].mxu0
    %v3147 = vadd.f32 %v3068, %v3146
    %v3148 = vpop.f32.mrb[0].mxu0
    %3149 = vdwg.mxu0
    %v3150 = vmul.f32 %v3142, %v3142
    %v3151 = vmul.f32 %v3147, %v3147
    %v3152 = vmul.f32 %v3142, %v3150
    %v3153 = vmul.f32 %v3147, %v3151
    %v3154 = vmul.f32 %v3152, 0.044715
    %v3155 = vmul.f32 %v3153, 0.044715
    %v3156 = vadd.f32 %v3142, %v3154
    %v3157 = vadd.f32 %v3147, %v3155
    %v3158 = vmul.f32 %v3156, 0.7978846
    %v3159 = vmul.f32 %v3157, 0.7978846
    %v3160 = vtanh.pop %v3158
    %v3161 = vtanh.pop %v3159
    %v3162 = vadd.f32 %v3160, 1.0
    %v3163 = vadd.f32 %v3161, 1.0
    %v3164 = vmul.f32 %v3162, 0.5
    %v3165 = vmul.f32 %v3163, 0.5
    %v3166 = vmul.f32 %v3142, %v3164
    %v3167 = vmul.f32 %v3147, %v3165
    %v3168 = vlaneseq
    %v3169 = vshrl.u32 %v3168, 7
    %v3170 = vsub.s32 5, %v3169
    %v3171 = vrot.slane %v1764, %v3170
    %v3173 = vsel %vm77, %v3166, 0
    %v3176 = vsel %vm77, %v3167, 0
    %3178 = vmatprep.subr.mxu0 0.0
    %3179 = vmatpush1.msra.mxu0 %v3057
    %3180 = vmatprep.subr.mxu0 0.0
    %3181 = vmatpush1.msra.mxu0 %v3058
    %3182 = vmatprep.subr.mxu0 0.0
    %3183 = vmatpush1.msra.mxu0 %v3059
    %3184 = vmatprep.subr.mxu0 0.0
    %3185 = vmatpush1.msra.mxu0 %v3060
    %3186 = vmatprep.subr.mxu0 0.0
    %3187 = vmatpush1.msra.mxu0 %v3061
    %3188 = vmatprep.subr.mxu0 0.0
    %3189 = vmatpush1.msra.mxu0 %v3062
    %3190 = vmatprep.subr.mxu0 0.0
    %3191 = vmatpush1.msra.mxu0 %v3063
    %3192 = vmatprep.subr.mxu0 0.0
    %3193 = vmatpush1.msra.mxu0 %v3064
    %3194 = vmatprep.subr.mxu0 0.0
    %3195 = vmatpush1.msra.mxu0 0.0
    %3196 = vmatprep.subr.mxu0 0.0
    %3197 = vmatpush1.msra.mxu0 0.0
    %3198 = vmatprep.subr.mxu0 0.0
    %3199 = vmatpush1.msra.mxu0 0.0
    %3200 = vmatprep.subr.mxu0 0.0
    %3201 = vmatpush1.msra.mxu0 0.0
    %3202 = vmatprep.subr.mxu0 0.0
    %3203 = vmatpush1.msra.mxu0 0.0
    %3204 = vmatprep.subr.mxu0 0.0
    %3205 = vmatpush1.msra.mxu0 0.0
    %3206 = vmatprep.subr.mxu0 0.0
    %3207 = vmatpush1.msra.mxu0 0.0
    %3208 = vmatprep.subr.mxu0 0.0
    %3209 = vmatpush1.msra.mxu0 0.0
    %3210 = vmatprep.subr.mxu0 0.0
    %3211 = vmatpush1.msra.mxu0 0.0
    %3212 = vmatprep.subr.mxu0 0.0
    %3213 = vmatpush1.msra.mxu0 0.0
    %3214 = vmatprep.subr.mxu0 0.0
    %3215 = vmatpush1.msra.mxu0 0.0
    %3216 = vmatprep.subr.mxu0 0.0
    %3217 = vmatpush1.msra.mxu0 0.0
    %3218 = vmatprep.subr.mxu0 0.0
    %3219 = vmatpush1.msra.mxu0 0.0
    %3220 = vmatprep.subr.mxu0 0.0
    %3221 = vmatpush1.msra.mxu0 0.0
    %3222 = vmatprep.subr.mxu0 0.0
    %3223 = vmatpush1.msra.mxu0 0.0
    %3224 = vmatprep.subr.mxu0 0.0
    %3225 = vmatpush1.msra.mxu0 0.0
    %3226 = vmatprep.subr.mxu0 0.0
    %3227 = vmatpush1.msra.mxu0 0.0
    %3228 = vmatprep.subr.mxu0 0.0
    %3229 = vmatpush1.msra.mxu0 0.0
    %3230 = vmatprep.subr.mxu0 0.0
    %3231 = vmatpush1.msra.mxu0 0.0
    %3232 = vmatprep.subr.mxu0 0.0
    %3233 = vmatpush1.msra.mxu0 0.0
    %3234 = vmatprep.subr.mxu0 0.0
    %3235 = vmatpush1.msra.mxu0 0.0
    %3236 = vmatprep.subr.mxu0 0.0
    %3237 = vmatpush1.msra.mxu0 0.0
    %3238 = vmatprep.subr.mxu0 0.0
    %3239 = vmatpush1.msra.mxu0 0.0
    %3240 = vmatprep.subr.mxu0 0.0
    %3241 = vmatpush1.msra.mxu0 0.0
    %3242 = vmatprep.mubr.f32.mxu0 0.0
    %3243 = vmatmul.mubr.f32.gmra.mrb[0].mxu0 %v3173
    %v3244 = vpop.f32.mrb[0].mxu0
    %v3245 = vadd.f32 %v3171, %v3244
    %v3246 = vpop.f32.mrb[0].mxu0
    %3247 = vmatprep.mubr.f32.mxu0 0.0
    %3248 = vmatmul.mubr.f32.gmra.mrb[0].mxu0 %v3176
    %v3249 = vpop.f32.mrb[0].mxu0
    %v3250 = vadd.f32 %v3171, %v3249
    %v3251 = vpop.f32.mrb[0].mxu0
    %3252 = vdwg.mxu0
    %v3253 = vadd.f32 %v3051, %v3245
    %v3254 = vadd.f32 %v3052, %v3250
    %v3255 = vsel %vm159, %v3253, 0.0
    %3256 = vadd.xlane.f32.xlu0 %v3255
    %v3257 = vpop.xlane.xlu0 %3256
    %v3258 = vsel %vm159, %v3254, 0.0
    %3259 = vadd.xlane.f32.xlu0 %v3258
    %v3260 = vpop.xlane.xlu0 %3259
    %v3261 = vmul.f32 %v3257, %v166
    %v3262 = vmul.f32 %v3260, %v166
    %v3263 = vsub.f32 %v3253, %v3261
    %v3264 = vsub.f32 %v3254, %v3262
    %v3265 = vmul.f32 %v3263, %v3263
    %v3266 = vmul.f32 %v3264, %v3264
    %v3267 = vsel %vm159, %v3265, 0.0
    %3268 = vadd.xlane.f32.xlu0 %v3267
    %v3269 = vpop.xlane.xlu0 %3268
    %v3270 = vsel %vm159, %v3266, 0.0
    %3271 = vadd.xlane.f32.xlu0 %v3270
    %v3272 = vpop.xlane.xlu0 %3271
    %v3273 = vmul.f32 %v3269, %v166
    %v3274 = vmul.f32 %v3272, %v166
    %v3275 = vadd.f32 %v3273, 1e-05
    %v3276 = vadd.f32 %v3274, 1e-05
    %v3277 = vrsqrt.pop %v3275
    %v3278 = vrsqrt.pop %v3276
    %v3279 = vmul.f32 %v3263, %v3277
    %v3280 = vmul.f32 %v3264, %v3278
    %v3281 = vlaneseq
    %v3282 = vshrl.u32 %v3281, 7
    %v3283 = vsub.s32 6, %v3282
    %v3284 = vrot.slane %v1764, %v3283
    %v3285 = vmul.f32 %v3279, %v3284
    %v3286 = vmul.f32 %v3280, %v3284
    %v3287 = vlaneseq
    %v3288 = vshrl.u32 %v3287, 7
    %v3289 = vsub.s32 7, %v3288
    %v3290 = vrot.slane %v1764, %v3289
    %v3291 = vadd.f32 %v3285, %v3290
    %v3292 = vadd.f32 %v3286, %v3290
    %v3293 = vld [vmem:[#allocation4] sm:$0xff]
    %v3294 = vld [vmem:[#allocation4 + $0x8] sm:$0xff]
    %v3295 = vld [vmem:[#allocation4 + $0x10] sm:$0xff]
    %v3296 = vld [vmem:[#allocation4 + $0x18] sm:$0xff]
    %v3297 = vld [vmem:[#allocation4 + $0x20] sm:$0xff]
    %v3298 = vld [vmem:[#allocation4 + $0x28] sm:$0xff]
    %v3299 = vld [vmem:[#allocation4 + $0x30] sm:$0xff]
    %v3300 = vld [vmem:[#allocation4 + $0x38] sm:$0xff]
    %v3301 = vld [vmem:[#allocation4 + $0x40] sm:$0xff]
    %v3302 = vld [vmem:[#allocation4 + $0x48] sm:$0xff]
    %v3303 = vld [vmem:[#allocation4 + $0x50] sm:$0xff]
    %v3304 = vld [vmem:[#allocation4 + $0x58] sm:$0xff]
    %v3305 = vld [vmem:[#allocation4 + $0x60] sm:$0xff]
    %v3306 = vld [vmem:[#allocation4 + $0x68] sm:$0xff]
    %v3307 = vld [vmem:[#allocation4 + $0x70] sm:$0xff]
    %v3308 = vld [vmem:[#allocation4 + $0x78] sm:$0xff]
    %v3309 = vld [vmem:[#allocation4 + $0x80] sm:$0xff]
    %v3310 = vld [vmem:[#allocation4 + $0x88] sm:$0xff]
    %v3311 = vld [vmem:[#allocation4 + $0x90] sm:$0xff]
    %v3312 = vld [vmem:[#allocation4 + $0x98] sm:$0xff]
    %v3313 = vld [vmem:[#allocation4 + $0xa0] sm:$0xff]
    %v3314 = vld [vmem:[#allocation4 + $0xa8] sm:$0xff]
    %v3315 = vld [vmem:[#allocation4 + $0xb0] sm:$0xff]
    %v3316 = vld [vmem:[#allocation4 + $0xb8] sm:$0xff]
    %v3317 = vld [vmem:[#allocation4 + $0xc0] sm:$0xff]
    %v3318 = vld [vmem:[#allocation4 + $0xc8] sm:$0xff]
    %v3319 = vld [vmem:[#allocation4 + $0xd0] sm:$0xff]
    %v3320 = vld [vmem:[#allocation4 + $0xd8] sm:$0xff]
    %v3321 = vld [vmem:[#allocation4 + $0xe0] sm:$0xff]
    %v3322 = vld [vmem:[#allocation4 + $0xe8] sm:$0xff]
    %v3323 = vld [vmem:[#allocation4 + $0xf0] sm:$0xff]
    %v3324 = vld [vmem:[#allocation4 + $0xf8] sm:$0xff]
    %v3325 = vld [vmem:[#allocation4 + $0x100] sm:$0xff]
    %v3326 = vld [vmem:[#allocation4 + $0x108] sm:$0xff]
    %v3327 = vld [vmem:[#allocation4 + $0x110] sm:$0xff]
    %v3328 = vld [vmem:[#allocation4 + $0x118] sm:$0xff]
    %v3329 = vld [vmem:[#allocation4 + $0x120] sm:$0xff]
    %v3330 = vld [vmem:[#allocation4 + $0x128] sm:$0xff]
    %v3331 = vld [vmem:[#allocation4 + $0x130] sm:$0xff]
    %v3332 = vld [vmem:[#allocation4 + $0x138] sm:$0xff]
    %v3333 = vld [vmem:[#allocation4 + $0x140] sm:$0xff]
    %v3334 = vld [vmem:[#allocation4 + $0x148] sm:$0xff]
    %v3335 = vld [vmem:[#allocation4 + $0x150] sm:$0xff]
    %v3336 = vld [vmem:[#allocation4 + $0x158] sm:$0xff]
    %v3337 = vld [vmem:[#allocation4 + $0x160] sm:$0xff]
    %v3338 = vld [vmem:[#allocation4 + $0x168] sm:$0xff]
    %v3339 = vld [vmem:[#allocation4 + $0x170] sm:$0xff]
    %v3340 = vld [vmem:[#allocation4 + $0x178] sm:$0xff]
    %v3341 = vld [vmem:[%s3] sm:$0x3f]
    %v3342 = vlaneseq
    %v3343 = vshrl.u32 %v3342, 7
    %v3344 = vsub.s32 2, %v3343
    %v3345 = vrot.slane %v51, %v3344
    %v3347 = vcombine.high %v3341, %v3341
    %v3349 = vunpack.c.l.s4 1983009808
    %v3350 = vunpack.c.0.s8 %v3349
    %v3351 = vlaneseq
    %v3352 = vshrl.u32 %v3351, 7
    %v3353 = vsub.s32 %v3350, %v3352
    %v3354 = vrot.slane %v3341, %v3353
    %v3356 = vunpack.c.l.s4 1983009808
    %v3357 = vunpack.c.0.s8 %v3356
    %v3358 = vlaneseq
    %v3359 = vshrl.u32 %v3358, 7
    %v3360 = vsub.s32 %v3357, %v3359
    %v3361 = vrot.slane %v3347, %v3360
    %v3362 = vcombine.high %v3354, %v3354
    %3366 = vmatprep.subr.mxu0 0.0
    %3367 = vmatpush1.msra.mxu0 %v3293
    %3368 = vmatprep.subr.mxu0 0.0
    %3369 = vmatpush1.msra.mxu0 %v3294
    %3370 = vmatprep.subr.mxu0 0.0
    %3371 = vmatpush1.msra.mxu0 %v3295
    %3372 = vmatprep.subr.mxu0 0.0
    %3373 = vmatpush1.msra.mxu0 %v3296
    %3374 = vmatprep.subr.mxu0 0.0
    %3375 = vmatpush1.msra.mxu0 %v3297
    %3376 = vmatprep.subr.mxu0 0.0
    %3377 = vmatpush1.msra.mxu0 %v3298
    %3378 = vmatprep.subr.mxu0 0.0
    %3379 = vmatpush1.msra.mxu0 %v3299
    %3380 = vmatprep.subr.mxu0 0.0
    %3381 = vmatpush1.msra.mxu0 %v3300
    %3382 = vmatprep.subr.mxu0 0.0
    %3383 = vmatpush1.msra.mxu0 %v3301
    %3384 = vmatprep.subr.mxu0 0.0
    %3385 = vmatpush1.msra.mxu0 %v3302
    %3386 = vmatprep.subr.mxu0 0.0
    %3387 = vmatpush1.msra.mxu0 %v3303
    %3388 = vmatprep.subr.mxu0 0.0
    %3389 = vmatpush1.msra.mxu0 %v3304
    %3390 = vmatprep.subr.mxu0 0.0
    %3391 = vmatpush1.msra.mxu0 %v3305
    %3392 = vmatprep.subr.mxu0 0.0
    %3393 = vmatpush1.msra.mxu0 %v3306
    %3394 = vmatprep.subr.mxu0 0.0
    %3395 = vmatpush1.msra.mxu0 %v3307
    %3396 = vmatprep.subr.mxu0 0.0
    %3397 = vmatpush1.msra.mxu0 %v3308
    %3398 = vmatprep.subr.mxu0 0.0
    %3399 = vmatpush1.msra.mxu0 %v3309
    %3400 = vmatprep.subr.mxu0 0.0
    %3401 = vmatpush1.msra.mxu0 %v3310
    %3402 = vmatprep.subr.mxu0 0.0
    %3403 = vmatpush1.msra.mxu0 %v3311
    %3404 = vmatprep.subr.mxu0 0.0
    %3405 = vmatpush1.msra.mxu0 %v3312
    %3406 = vmatprep.subr.mxu0 0.0
    %3407 = vmatpush1.msra.mxu0 %v3313
    %3408 = vmatprep.subr.mxu0 0.0
    %3409 = vmatpush1.msra.mxu0 %v3314
    %3410 = vmatprep.subr.mxu0 0.0
    %3411 = vmatpush1.msra.mxu0 %v3315
    %3412 = vmatprep.subr.mxu0 0.0
    %3413 = vmatpush1.msra.mxu0 %v3316
    %3414 = vmatprep.subr.mxu0 0.0
    %3415 = vmatpush1.msra.mxu0 %v3317
    %3416 = vmatprep.subr.mxu0 0.0
    %3417 = vmatpush1.msra.mxu0 %v3318
    %3418 = vmatprep.subr.mxu0 0.0
    %3419 = vmatpush1.msra.mxu0 %v3319
    %3420 = vmatprep.subr.mxu0 0.0
    %3421 = vmatpush1.msra.mxu0 %v3320
    %3422 = vmatprep.subr.mxu0 0.0
    %3423 = vmatpush1.msra.mxu0 %v3321
    %3424 = vmatprep.subr.mxu0 0.0
    %3425 = vmatpush1.msra.mxu0 %v3322
    %3426 = vmatprep.subr.mxu0 0.0
    %3427 = vmatpush1.msra.mxu0 %v3323
    %3428 = vmatprep.subr.mxu0 0.0
    %3429 = vmatpush1.msra.mxu0 %v3324
    %3430 = vmatprep.mubr.f32.mxu0 %v3362
    %3431 = vmatmul.mubr.f32.gmra.mrb[0].mxu0 %v3354
    %v3432 = vpop.f32.mrb[0].mxu0
    %v3433 = vadd.f32 %v3345, %v3432
    %v3434 = vpop.f32.mrb[0].mxu0
    %3435 = vdwg.mxu0
    %3436 = vmatprep.subr.mxu0 0.0
    %3437 = vmatpush1.msra.mxu0 %v3325
    %3438 = vmatprep.subr.mxu0 0.0
    %3439 = vmatpush1.msra.mxu0 %v3326
    %3440 = vmatprep.subr.mxu0 0.0
    %3441 = vmatpush1.msra.mxu0 %v3327
    %3442 = vmatprep.subr.mxu0 0.0
    %3443 = vmatpush1.msra.mxu0 %v3328
    %3444 = vmatprep.subr.mxu0 0.0
    %3445 = vmatpush1.msra.mxu0 %v3329
    %3446 = vmatprep.subr.mxu0 0.0
    %3447 = vmatpush1.msra.mxu0 %v3330
    %3448 = vmatprep.subr.mxu0 0.0
    %3449 = vmatpush1.msra.mxu0 %v3331
    %3450 = vmatprep.subr.mxu0 0.0
    %3451 = vmatpush1.msra.mxu0 %v3332
    %3452 = vmatprep.subr.mxu0 0.0
    %3453 = vmatpush1.msra.mxu0 %v3333
    %3454 = vmatprep.subr.mxu0 0.0
    %3455 = vmatpush1.msra.mxu0 %v3334
    %3456 = vmatprep.subr.mxu0 0.0
    %3457 = vmatpush1.msra.mxu0 %v3335
    %3458 = vmatprep.subr.mxu0 0.0
    %3459 = vmatpush1.msra.mxu0 %v3336
    %3460 = vmatprep.subr.mxu0 0.0
    %3461 = vmatpush1.msra.mxu0 %v3337
    %3462 = vmatprep.subr.mxu0 0.0
    %3463 = vmatpush1.msra.mxu0 %v3338
    %3464 = vmatprep.subr.mxu0 0.0
    %3465 = vmatpush1.msra.mxu0 %v3339
    %3466 = vmatprep.subr.mxu0 0.0
    %3467 = vmatpush1.msra.mxu0 %v3340
    %3468 = vmatprep.subr.mxu0 0.0
    %3469 = vmatpush1.msra.mxu0 0.0
    %3470 = vmatprep.subr.mxu0 0.0
    %3471 = vmatpush1.msra.mxu0 0.0
    %3472 = vmatprep.subr.mxu0 0.0
    %3473 = vmatpush1.msra.mxu0 0.0
    %3474 = vmatprep.subr.mxu0 0.0
    %3475 = vmatpush1.msra.mxu0 0.0
    %3476 = vmatprep.subr.mxu0 0.0
    %3477 = vmatpush1.msra.mxu0 0.0
    %3478 = vmatprep.subr.mxu0 0.0
    %3479 = vmatpush1.msra.mxu0 0.0
    %3480 = vmatprep.subr.mxu0 0.0
    %3481 = vmatpush1.msra.mxu0 0.0
    %3482 = vmatprep.subr.mxu0 0.0
    %3483 = vmatpush1.msra.mxu0 0.0
    %3484 = vmatprep.subr.mxu0 0.0
    %3485 = vmatpush1.msra.mxu0 0.0
    %3486 = vmatprep.subr.mxu0 0.0
    %3487 = vmatpush1.msra.mxu0 0.0
    %3488 = vmatprep.subr.mxu0 0.0
    %3489 = vmatpush1.msra.mxu0 0.0
    %3490 = vmatprep.subr.mxu0 0.0
    %3491 = vmatpush1.msra.mxu0 0.0
    %3492 = vmatprep.subr.mxu0 0.0
    %3493 = vmatpush1.msra.mxu0 0.0
    %3494 = vmatprep.subr.mxu0 0.0
    %3495 = vmatpush1.msra.mxu0 0.0
    %3496 = vmatprep.subr.mxu0 0.0
    %3497 = vmatpush1.msra.mxu0 0.0
    %3498 = vmatprep.subr.mxu0 0.0
    %3499 = vmatpush1.msra.mxu0 0.0
    %3500 = vmatprep.mubr.f32.mxu0 0.0
    %3501 = vmatmul.mubr.f32.gmra.mrb[0].mxu0 %v3361
    %v3502 = vpop.f32.mrb[0].mxu0
    %v3503 = vadd.f32 %v3433, %v3502
    %v3504 = vpop.f32.mrb[0].mxu0
    %3505 = vdwg.mxu0
    %v3508 = vrot.slane %v3292, 7
    %v3509 = vsel %vm1383, %v3508, %v3291
    %3512 = vrot.lane.b32.xlu0 %v3503, 32
    %v3513 = vpop.permute.xlu0 %3512
    %v3515 = vsel %vm159, %v3509, %v3513
    %v3516 = vld [vmem:[#allocation4 + $0x180] sm:$0xff]
    %v3517 = vld [vmem:[#allocation4 + $0x188] sm:$0xff]
    %v3518 = vld [vmem:[#allocation4 + $0x190] sm:$0xff]
    %v3519 = vld [vmem:[#allocation4 + $0x198] sm:$0xff]
    %v3520 = vld [vmem:[#allocation4 + $0x1a0] sm:$0xff]
    %v3521 = vld [vmem:[#allocation4 + $0x1a8] sm:$0xff]
    %v3522 = vld [vmem:[#allocation4 + $0x1b0] sm:$0xff]
    %v3523 = vld [vmem:[#allocation4 + $0x1b8] sm:$0xff]
    %v3524 = vlaneseq
    %v3525 = vshrl.u32 %v3524, 7
    %v3526 = vsub.s32 3, %v3525
    %v3527 = vrot.slane %v51, %v3526
    %v3529 = vsel %vm77, %v3515, 0
    %3531 = vmatprep.subr.mxu0 0.0
    %3532 = vmatpush1.msra.mxu0 %v3516
    %3533 = vmatprep.subr.mxu0 0.0
    %3534 = vmatpush1.msra.mxu0 %v3517
    %3535 = vmatprep.subr.mxu0 0.0
    %3536 = vmatpush1.msra.mxu0 %v3518
    %3537 = vmatprep.subr.mxu0 0.0
    %3538 = vmatpush1.msra.mxu0 %v3519
    %3539 = vmatprep.subr.mxu0 0.0
    %3540 = vmatpush1.msra.mxu0 %v3520
    %3541 = vmatprep.subr.mxu0 0.0
    %3542 = vmatpush1.msra.mxu0 %v3521
    %3543 = vmatprep.subr.mxu0 0.0
    %3544 = vmatpush1.msra.mxu0 %v3522
    %3545 = vmatprep.subr.mxu0 0.0
    %3546 = vmatpush1.msra.mxu0 %v3523
    %3547 = vmatprep.subr.mxu0 0.0
    %3548 = vmatpush1.msra.mxu0 0.0
    %3549 = vmatprep.subr.mxu0 0.0
    %3550 = vmatpush1.msra.mxu0 0.0
    %3551 = vmatprep.subr.mxu0 0.0
    %3552 = vmatpush1.msra.mxu0 0.0
    %3553 = vmatprep.subr.mxu0 0.0
    %3554 = vmatpush1.msra.mxu0 0.0
    %3555 = vmatprep.subr.mxu0 0.0
    %3556 = vmatpush1.msra.mxu0 0.0
    %3557 = vmatprep.subr.mxu0 0.0
    %3558 = vmatpush1.msra.mxu0 0.0
    %3559 = vmatprep.subr.mxu0 0.0
    %3560 = vmatpush1.msra.mxu0 0.0
    %3561 = vmatprep.subr.mxu0 0.0
    %3562 = vmatpush1.msra.mxu0 0.0
    %3563 = vmatprep.subr.mxu0 0.0
    %3564 = vmatpush1.msra.mxu0 0.0
    %3565 = vmatprep.subr.mxu0 0.0
    %3566 = vmatpush1.msra.mxu0 0.0
    %3567 = vmatprep.subr.mxu0 0.0
    %3568 = vmatpush1.msra.mxu0 0.0
    %3569 = vmatprep.subr.mxu0 0.0
    %3570 = vmatpush1.msra.mxu0 0.0
    %3571 = vmatprep.subr.mxu0 0.0
    %3572 = vmatpush1.msra.mxu0 0.0
    %3573 = vmatprep.subr.mxu0 0.0
    %3574 = vmatpush1.msra.mxu0 0.0
    %3575 = vmatprep.subr.mxu0 0.0
    %3576 = vmatpush1.msra.mxu0 0.0
    %3577 = vmatprep.subr.mxu0 0.0
    %3578 = vmatpush1.msra.mxu0 0.0
    %3579 = vmatprep.subr.mxu0 0.0
    %3580 = vmatpush1.msra.mxu0 0.0
    %3581 = vmatprep.subr.mxu0 0.0
    %3582 = vmatpush1.msra.mxu0 0.0
    %3583 = vmatprep.subr.mxu0 0.0
    %3584 = vmatpush1.msra.mxu0 0.0
    %3585 = vmatprep.subr.mxu0 0.0
    %3586 = vmatpush1.msra.mxu0 0.0
    %3587 = vmatprep.subr.mxu0 0.0
    %3588 = vmatpush1.msra.mxu0 0.0
    %3589 = vmatprep.subr.mxu0 0.0
    %3590 = vmatpush1.msra.mxu0 0.0
    %3591 = vmatprep.subr.mxu0 0.0
    %3592 = vmatpush1.msra.mxu0 0.0
    %3593 = vmatprep.subr.mxu0 0.0
    %3594 = vmatpush1.msra.mxu0 0.0
    %3595 = vmatprep.mubr.f32.mxu0 0.0
    %3596 = vmatmul.mubr.f32.gmra.mrb[0].mxu0 %v3529
    %v3597 = vpop.f32.mrb[0].mxu0
    %v3598 = vadd.f32 %v3527, %v3597
    %v3599 = vpop.f32.mrb[0].mxu0
    %3600 = vdwg.mxu0
    %v3601 = vld [vmem:[%s2] sm:$0x3]
    %3602 = vset.pattern.permute.xlu0 0
    %3603 = vperm.xlu0 %3602, %v3601
    %v3604 = vpop.permute.xlu0 %3603
    %vm3605 = vcmp.eq.s32.totalorder %v55, %v3604
    %v3606 = vsel %vm3605, 1, 0
    %v3607 = vcvt.s32.f32 %v3606
    %vm3608 = vcmask 74752
    %v3609 = vsel %vm3608, %v3598, -inf
    %3610 = vmax.xlane.f32.xlu0 %v3609
    %v3611 = vpop.xlane.xlu0 %3610
    %v3612 = vsub.f32 %v3598, %v3611
    %v3613 = vmul.f32 %v3612, 1.442695
    %v3614 = vpow.pop %v3613
    %v3615 = vsel %vm3608, %v3614, 0.0
    %3616 = vadd.xlane.f32.xlu0 %v3615
    %v3617 = vpop.xlane.xlu0 %3616
    %v3618 = vlog2.pop %v3617
    %v3619 = vmul.f32 %v3618, 0.6931472
    %v3620 = vadd.f32 %v3611, %v3619
    %v3621 = vmul.f32 %v3607, %v3598
    %v3622 = vsel %vm3608, %v3621, 0.0
    %3623 = vadd.xlane.f32.xlu0 %v3622
    %v3624 = vpop.xlane.xlu0 %3623
    %v3625 = vsub.f32 %v3620, %v3624
    %vm3626 = vcmask 1041408
    %v3627 = vsel %vm3626, %v3625, 0.0
    %v3628 = vrot.slane %v3627, 4
    %v3629 = vadd.f32 %v3627, %v3628
    %v3630 = vrot.slane %v3629, 2
    %v3631 = vadd.f32 %v3629, %v3630
    %v3632 = vrot.slane %v3631, 1
    %v3633 = vadd.f32 %v3631, %v3632
    %vm3634 = vcmask 156752
    %v3635 = vsel %vm3634, %v3598, -inf
    %3636 = vmax.xlane.f32.xlu0 %v3635
    %v3637 = vpop.xlane.xlu0 %3636
    %v3638 = vsub.f32 %v3598, %v3637
    %v3639 = vmul.f32 %v3638, 1.442695
    %v3640 = vpow.pop %v3639
    %3642 = vrot.lane.b32.xlu0 %v3640, 118
    %v3643 = vpop.permute.xlu0 %3642
    %v3645 = vsel %vm3608, %v3643, 0.0
    %3646 = vadd.xlane.f32.xlu0 %v3645
    %v3647 = vpop.xlane.xlu0 %3646
    %v3648 = vlog2.pop %v3647
    %v3649 = vmul.f32 %v3648, 0.6931472
    %v3650 = vadd.f32 %v3637, %v3649
    %3652 = vrot.lane.b32.xlu0 %v3598, 118
    %v3653 = vpop.permute.xlu0 %3652
    %v3655 = vmul.f32 %v3607, %v3653
    %v3656 = vsel %vm3608, %v3655, 0.0
    %3657 = vadd.xlane.f32.xlu0 %v3656
    %v3658 = vpop.xlane.xlu0 %3657
    %v3659 = vsub.f32 %v3650, %v3658
    %v3660 = vsel %vm3626, %v3659, 0.0
    %v3661 = vrot.slane %v3660, 4
    %v3662 = vadd.f32 %v3660, %v3661
    %v3663 = vrot.slane %v3662, 2
    %v3664 = vadd.f32 %v3662, %v3663
    %v3665 = vrot.slane %v3664, 1
    %v3666 = vadd.f32 %v3664, %v3665
    %v3667 = vmul.f32 %v3666, 0.5
    %v3668 = vadd.f32 %v3633, %v3667
    %v3669 = vmul.f32 %v3668, 0.5
    %3670 = vst [vmem:[%s6] sm:$0xff] 0.0
    %vm3671 = vcmask 156672
    %3672 = vst.msk [vmem:[%s6] sm:$0x3] %vm3671, %v3598
    %vm3673 = vcmask 0
    %3674 = vst.msk [vmem:[%s6 + $0x2] sm:$0x1] %vm3673, %v3669
    // Predicated region
    $region34: #{_forward_jit.1} parent=1 // pred_check
      _
    $region35: #{_forward_jit.1} parent=1 // pred_check_branch
      %3676 = sbr.rel (0) target = $region37
    $region36: #{_forward_jit.1} parent=1 // pred_region
      _
    $region37: #{_forward_jit.1} parent=1 // pred_fallthru
      _
    // Predicated region
    $region38: #{_forward_jit.1} parent=1 // pred_check
      _
    $region39: #{_forward_jit.1} parent=1 // pred_check_branch
      %3678 = sbr.rel (0) target = $region41
    $region40: #{_forward_jit.1} parent=1 // pred_region
      _
    $region41: #{_forward_jit.1} parent=1 // pred_fallthru
      _
    %3679 = vsyncpa [#allocation3], 1
    %3680 = vsyncpa [#allocation5], 1

</llo_original>
